<compile_context>
chip_gen: v5e
topology: v5e:2x2
jax: 0.10.0
libtpu: 0.0.40
codegen_flags: <defaults>
</compile_context>

<pallas_src>
import jax
import jax.numpy as jnp
from jax.experimental import pallas as pl
from jax.experimental.pallas import tpu as pltpu


# Safe on v5e/v6e/v7x.  Raise toward ~100 MiB on v5e/v6e (128 MiB VMEM) and keep
# <= ~48 MiB on v7x (64 MiB VMEM) when scaling tile sizes up for production M/N.
_VMEM_LIMIT_BYTES = 32 * 1024 * 1024


# ----------------------------------------------------------------------------
# Pallas kernels
# ----------------------------------------------------------------------------

def _fwd_resid_kernel(x2_ref, s_ref, e_ref, y2_ref, out_ref):
    """Fused coil-expand + NUFFT forward + k-space residual.

    Grid = (j: k-space output tile [parallel], k: pixel contraction tile
    [arbitrary, innermost]).  Output block (2C, tm) is initialized to -y at
    k==0 and accumulated in place, so the final value is
    nufft.op(x*smaps) - y with rows [Re_c...; Im_c...].
    e_ref block is (tk, 2*tm) = [Re(E^T)_tile | Im(E^T)_tile] -> one wide dot.
    """
    k = pl.program_id(1)

    @pl.when(k == 0)
    def _():
        out_ref[...] = -y2_ref[...]

    nc = s_ref.shape[0] // 2
    xr = x2_ref[0:1, :]                                  # (1, tk), broadcast over coils
    xi = x2_ref[1:2, :]
    sr = s_ref[:nc, :]                                   # (C, tk)
    si = s_ref[nc:, :]
    a_re = xr * sr - xi * si                             # Re(x * s)
    a_im = xr * si + xi * sr                             # Im(x * s)
    a2 = jnp.concatenate([a_re, a_im], axis=0).astype(e_ref.dtype)   # (2C, tk) bf16

    p = jnp.dot(a2, e_ref[...], preferred_element_type=jnp.float32)  # (2C, 2*tm)
    tm = p.shape[1] // 2
    pr = p[:, :tm]                                       # [a_re; a_im] @ Re(E^T)
    pi = p[:, tm:]                                       # [a_re; a_im] @ Im(E^T)
    out_ref[:nc, :] += pr[:nc] - pi[nc:]                 # Re = Ar@Er - Ai@Ei
    out_ref[nc:, :] += pi[:nc] + pr[nc:]                 # Im = Ar@Ei + Ai@Er


def _adj_dc_kernel(kres_ref, e_ref, seta_ref, x2_ref, out_ref, acc_ref):
    """Fused NUFFT adjoint + coil-combined DC gradient + eta step.

    Grid = (j: pixel output tile [parallel], k: k-space contraction tile
    [arbitrary, innermost]).  acc accumulates the per-coil adjoint images
    [adj_r; adj_i]; at the last contraction step the coil sum against
    eta*conj(smaps) and the x - eta*grad update are fused in, producing the
    updated image [Re; Im].
    e_ref block is (tkm, 2*tn) = [Re(conj E)_tile | Im(conj E)_tile].
    The residual LHS is kept in f32 (residual shrinks across unrolled
    iterations; bf16 truncation could stall convergence).
    """
    k = pl.program_id(1)

    @pl.when(k == 0)
    def _():
        acc_ref[...] = jnp.zeros_like(acc_ref)

    nc = kres_ref.shape[0] // 2
    lhs = kres_ref[...]                                              # (2C, tkm) f32
    p = jnp.dot(lhs, e_ref[...], preferred_element_type=jnp.float32)  # (2C, 2*tn)
    tn = p.shape[1] // 2
    pr = p[:, :tn]
    pi = p[:, tn:]
    acc_ref[:nc, :] += pr[:nc] - pi[nc:]                 # adj_r per coil
    acc_ref[nc:, :] += pi[:nc] + pr[nc:]                 # adj_i per coil

    @pl.when(k == pl.num_programs(1) - 1)
    def _():
        adj_r = acc_ref[:nc, :]
        adj_i = acc_ref[nc:, :]
        sr = seta_ref[:nc, :]                            # eta * Re(smaps)
        si = seta_ref[nc:, :]                            # eta * Im(smaps)
        # eta * sum_c adj_c * conj(s_c)
        gr = jnp.sum(adj_r * sr + adj_i * si, axis=0, keepdims=True)   # (1, tn)
        gi = jnp.sum(adj_i * sr - adj_r * si, axis=0, keepdims=True)
        out_ref[0:1, :] = x2_ref[0:1, :] - gr
        out_ref[1:2, :] = x2_ref[1:2, :] - gi


# ----------------------------------------------------------------------------
# Wrappers
# ----------------------------------------------------------------------------

def nufft_forward_residual(x2, s2, efwd, y2, *, tk, tm):
    """(2C, M) stacked residual:  [Re;Im]( (x*smaps) @ E^T ) - [Re;Im](y)."""
    two_c, n = s2.shape
    _, two_m = efwd.shape
    m = two_m // 2
    assert n % tk == 0 and m % tm == 0
    grid = (m // tm, n // tk)
    return pl.pallas_call(
        _fwd_resid_kernel,
        out_shape=jax.ShapeDtypeStruct((two_c, m), jnp.float32),
        grid_spec=pltpu.PrefetchScalarGridSpec(
            num_scalar_prefetch=0,
            grid=grid,
            in_specs=[
                pl.BlockSpec((2, tk), lambda j, k: (0, k)),          # x  [Re; Im]
                pl.BlockSpec((two_c, tk), lambda j, k: (0, k)),      # s  [Re_c; Im_c]
                pl.BlockSpec((tk, 2 * tm), lambda j, k: (k, j)),     # [Re|Im](E^T) tile pair
                pl.BlockSpec((two_c, tm), lambda j, k: (0, j)),      # y  [Re; Im]
            ],
            out_specs=pl.BlockSpec((two_c, tm), lambda j, k: (0, j)),
        ),
        compiler_params=pltpu.CompilerParams(
            dimension_semantics=("parallel", "arbitrary"),
            vmem_limit_bytes=_VMEM_LIMIT_BYTES),
    )(x2, s2, efwd, y2)


def adjoint_dc_update(kres2, eadj, s2_eta, x2, *, tkm, tn):
    """(2, N) updated image:  x - eta * sum_c op_adj(k_resid)_c * conj(s_c)."""
    two_c, m = kres2.shape
    _, two_n = eadj.shape
    n = two_n // 2
    assert m % tkm == 0 and n % tn == 0
    grid = (n // tn, m // tkm)
    return pl.pallas_call(
        _adj_dc_kernel,
        out_shape=jax.ShapeDtypeStruct((2, n), jnp.float32),
        grid_spec=pltpu.PrefetchScalarGridSpec(
            num_scalar_prefetch=0,
            grid=grid,
            in_specs=[
                pl.BlockSpec((two_c, tkm), lambda j, k: (0, k)),     # k_resid [Re; Im]
                pl.BlockSpec((tkm, 2 * tn), lambda j, k: (k, j)),    # [Re|Im](conj E) tile pair
                pl.BlockSpec((two_c, tn), lambda j, k: (0, j)),      # eta * smaps [Re; Im]
                pl.BlockSpec((2, tn), lambda j, k: (0, j)),          # x [Re; Im]
            ],
            out_specs=pl.BlockSpec((2, tn), lambda j, k: (0, j)),
            scratch_shapes=[pltpu.VMEM((two_c, tn), jnp.float32)],
        ),
        compiler_params=pltpu.CompilerParams(
            dimension_semantics=("parallel", "arbitrary"),
            vmem_limit_bytes=_VMEM_LIMIT_BYTES),
    )(kres2, eadj, s2_eta, x2)


# ----------------------------------------------------------------------------
# Hoisted preparation (once per problem, not per iteration)
# ----------------------------------------------------------------------------

def prepare_encoding(E, *, tm, tn, dtype=jnp.bfloat16):
    """Precompute merged encoding planes once (tile-interleaved Re/Im columns).

    efwd (N, 2M): for each k-space output tile j of width tm, columns
                  [2*j*tm : 2*j*tm+tm] = Re(E^T) tile, next tm = Im(E^T) tile.
    eadj (M, 2N): same layout for conj(E) over pixel tiles of width tn.
    Stored in bf16 (halves the dominant E DMA bytes, doubles MXU rate on
    v6e/v7x) with f32 accumulation in the kernels.
    """
    er = jnp.real(E).astype(jnp.float32)                 # (M, N)
    ei = jnp.imag(E).astype(jnp.float32)
    m, n = er.shape
    assert m % tm == 0 and n % tn == 0
    fr = er.T.reshape(n, m // tm, tm)
    fi = ei.T.reshape(n, m // tm, tm)
    efwd = jnp.concatenate([fr, fi], axis=2).reshape(n, 2 * m).astype(dtype)
    ar = er.reshape(m, n // tn, tn)                      # Re(conj(E)) = Re(E)
    ai = (-ei).reshape(m, n // tn, tn)                   # Im(conj(E)) = -Im(E)
    eadj = jnp.concatenate([ar, ai], axis=2).reshape(m, 2 * n).astype(dtype)
    return efwd, eadj


def prepare_coil_data(smaps, y_kspace):
    """Iteration-invariant real/imag stacking of smaps and measured k-space."""
    c = smaps.shape[0]
    sr = jnp.real(smaps).astype(jnp.float32).reshape(c, -1)
    si = jnp.imag(smaps).astype(jnp.float32).reshape(c, -1)
    s2 = jnp.concatenate([sr, si], axis=0)               # (2C, N)
    yr = jnp.real(y_kspace).astype(jnp.float32)
    yi = jnp.imag(y_kspace).astype(jnp.float32)
    y2 = jnp.concatenate([yr, yi], axis=0)               # (2C, M)
    return s2, y2


# ----------------------------------------------------------------------------
# Wavelet denoising (1-level 2D Haar + learnable soft-threshold) — plain jnp.
# XLA fuses the soft-threshold into the Haar elementwise chain; the 2x2
# de/interleave uses reshape-based indexing (no lane-strided .at[::2] scatter).
# ----------------------------------------------------------------------------

def haar_fwd(x):
    h, w = x.shape
    x4 = x.reshape(h // 2, 2, w // 2, 2)
    a = x4[:, 0, :, 0]
    b = x4[:, 0, :, 1]
    c = x4[:, 1, :, 0]
    d = x4[:, 1, :, 1]
    cA = (a + b + c + d) * 0.5
    cH = (a + b - c - d) * 0.5
    cV = (a - b + c - d) * 0.5
    cD = (a - b - c + d) * 0.5
    return cA, (cH, cV, cD)


def haar_inv(cA, details):
    cH, cV, cD = details
    a = (cA + cH + cV + cD) * 0.5
    b = (cA + cH - cV - cD) * 0.5
    c = (cA - cH + cV - cD) * 0.5
    d = (cA - cH - cV + cD) * 0.5
    top = jnp.stack([a, b], axis=-1)                     # (H/2, W/2, 2)
    bot = jnp.stack([c, d], axis=-1)
    out4 = jnp.stack([top, bot], axis=1)                 # (H/2, 2, W/2, 2)
    h2, w2 = cA.shape
    return out4.reshape(h2 * 2, w2 * 2)


def _soft_threshold(x, t):
    return jnp.sign(x) * jnp.maximum(jnp.abs(x) - t, 0.0)


def wavelet_denoise(u, thresh):
    cA, (cH, cV, cD) = haar_fwd(u)
    return haar_inv(cA, (_soft_threshold(cH, thresh),
                         _soft_threshold(cV, thresh),
                         _soft_threshold(cD, thresh)))


# ----------------------------------------------------------------------------
# Full forward pass of LearnedRegularizationIteration
# ----------------------------------------------------------------------------

def learned_reg_iteration_forward(x_k, y2, s2, efwd, eadj, eta, thresh,
                                  *, tk, tm, tkm, tn):
    h, w = x_k.shape
    n = h * w

    # Per-iteration real/imag stacking of the image estimate (x changes each iter).
    xr = jnp.real(x_k).astype(jnp.float32).reshape(1, n)
    xi = jnp.imag(x_k).astype(jnp.float32).reshape(1, n)
    x2 = jnp.concatenate([xr, xi], axis=0)               # (2, N)

    # k_resid = nufft.op(x_k[None] * smaps) - y   (one fused Pallas kernel)
    kres2 = nufft_forward_residual(x2, s2, efwd, y2, tk=tk, tm=tm)

    # x_upd = x - eta * sum_c op_adj(k_resid)_c * conj(s_c)
    # eta folded into the conj(smaps) operand (tiny per-iteration multiply).
    s2_eta = eta * s2
    x2_upd = adjoint_dc_update(kres2, eadj, s2_eta, x2, tkm=tkm, tn=tn)

    ur = x2_upd[0].reshape(h, w)
    ui = x2_upd[1].reshape(h, w)

    # Wavelet-domain denoising of real and imaginary parts (complex branch).
    out_r = wavelet_denoise(ur, thresh)
    out_i = wavelet_denoise(ui, thresh)
    return jax.lax.complex(out_r, out_i)


# ----------------------------------------------------------------------------
# Pure-JAX reference (f32 complex, HIGHEST-precision matmuls)
# ----------------------------------------------------------------------------

def reference_forward(x_k, y_kspace, smaps, E, eta, thresh):
    c = smaps.shape[0]
    h, w = x_k.shape
    xs = (x_k[None] * smaps).reshape(c, -1)                               # (C, N)
    kpred = jnp.einsum("mn,cn->cm", E, xs,
                       precision=jax.lax.Precision.HIGHEST)
    kres = kpred - y_kspace
    adj = jnp.einsum("mn,cm->cn", jnp.conj(E), kres,
                     precision=jax.lax.Precision.HIGHEST)
    grad = jnp.sum(adj.reshape(c, h, w) * jnp.conj(smaps), axis=0)
    xg = x_k - eta * grad
    out_r = wavelet_denoise(jnp.real(xg).astype(jnp.float32), thresh)
    out_i = wavelet_denoise(jnp.imag(xg).astype(jnp.float32), thresh)
    return jax.lax.complex(out_r, out_i)


# ----------------------------------------------------------------------------
# Example run
# ----------------------------------------------------------------------------

if __name__ == "__main__":
    C, H, W, M = 4, 32, 32, 512
    N = H * W

    # Tiles: every grid axis has >= 2 steps (forward grid (4, 2), adjoint (4, 2));
    # lane tiles are multiples of 128, sublane/contraction tiles multiples of 8.
    TK, TM = 512, 128      # forward: pixel contraction tile / k-space output tile
    TKM, TN = 256, 256     # adjoint: k-space contraction tile / pixel output tile

    key = jax.random.PRNGKey(0)
    ks = jax.random.split(key, 8)
    x_k = (jax.random.normal(ks[0], (H, W))
           + 1j * jax.random.normal(ks[1], (H, W))).astype(jnp.complex64)
    smaps = (jax.random.normal(ks[2], (C, H, W))
             + 1j * jax.random.normal(ks[3], (C, H, W))).astype(jnp.complex64)
    y_kspace = (jax.random.normal(ks[4], (C, M))
                + 1j * jax.random.normal(ks[5], (C, M))).astype(jnp.complex64)

    # Deterministic non-uniform trajectory -> NUDFT encoding matrix E (M, H*W).
    kx = jax.random.uniform(ks[6], (M,), minval=-jnp.pi, maxval=jnp.pi)
    ky = jax.random.uniform(ks[7], (M,), minval=-jnp.pi, maxval=jnp.pi)
    coords = jnp.stack(
        jnp.meshgrid(jnp.arange(H), jnp.arange(W), indexing="ij"), axis=-1
    ).reshape(-1, 2).astype(jnp.float32)                                  # (N, 2)
    phase = kx[:, None] * coords[None, :, 0] + ky[:, None] * coords[None, :, 1]
    E = jnp.exp(-1j * phase).astype(jnp.complex64)

    # Hoisted (once per problem): merged bf16 E planes + stacked coil data.
    efwd, eadj = prepare_encoding(E, tm=TM, tn=TN, dtype=jnp.bfloat16)
    s2, y2 = prepare_coil_data(smaps, y_kspace)

    # Deterministic "learned" parameters.
    eta = 0.1      # nn.Parameter eta (eta_init=0.1)
    thresh = 0.05  # SimpleWaveletDenoiser learnable soft-threshold

    fwd = jax.jit(learned_reg_iteration_forward,
                  static_argnames=("tk", "tm", "tkm", "tn"))
    out = fwd(x_k, y2, s2, efwd, eadj, eta, thresh, tk=TK, tm=TM, tkm=TKM, tn=TN)
    out = jax.block_until_ready(out)

    ref = jax.jit(reference_forward)(x_k, y_kspace, smaps, E, eta, thresh)
    ref = jax.block_until_ready(ref)

    rel_err = float(jnp.linalg.norm(out - ref) / jnp.linalg.norm(ref))
    assert out.shape == x_k.shape and out.dtype == jnp.complex64
    assert rel_err < 2e-2, f"relative error too large: {rel_err:.3e}"
    print("KERNEL_OK")
</pallas_src>

<mosaic_0001>
module attributes {stable_mosaic.version = 11 : i64} {
  func.func @_adj_dc_kernel(%arg0: i32, %arg1: i32, %arg2: memref<8x256xf32, #tpu.memory_space<vmem>>, %arg3: memref<256x512xbf16, #tpu.memory_space<vmem>>, %arg4: memref<8x256xf32, #tpu.memory_space<vmem>>, %arg5: memref<2x256xf32, #tpu.memory_space<vmem>>, %arg6: memref<2x256xf32, #tpu.memory_space<vmem>>, %arg7: memref<8x256xf32, #tpu.memory_space<vmem>>) attributes {dimension_semantics = [#tpu.dimension_semantics<parallel>, #tpu.dimension_semantics<arbitrary>], iteration_bounds = array<i64: 4, 2>, scalar_prefetch = 0 : i64, scratch_operands = 1 : i64, tpu.core_type = #tpu.core_type<tc>, window_params = [{transform_indices = @transform_0, window_bounds = array<i64: 8, 256>}, {transform_indices = @transform_1, window_bounds = array<i64: 256, 512>}, {transform_indices = @transform_2, window_bounds = array<i64: 8, 256>}, {transform_indices = @transform_3, window_bounds = array<i64: 2, 256>}, {transform_indices = @transform_4, window_bounds = array<i64: 2, 256>}]} {
    %c0_i32 = arith.constant 0 : i32
    %0 = arith.cmpi eq, %arg1, %c0_i32 : i32
    %1 = arith.extui %0 : i1 to i32
    %c0_i32_0 = arith.constant 0 : i32
    %2 = arith.cmpi ne, %1, %c0_i32_0 : i32
    scf.if %2 {
      %cst_12 = arith.constant 0.000000e+00 : f32
      %23 = vector.broadcast %cst_12 : f32 to vector<8x256xf32>
      %c0_13 = arith.constant 0 : index
      %c0_14 = arith.constant 0 : index
      %24 = vector.load %arg7[%c0_13, %c0_14] : memref<8x256xf32, #tpu.memory_space<vmem>>, vector<8x256xf32>
      tpu.vector_store %arg7[%c0_13, %c0_14], %23 {strides = array<i32>} : memref<8x256xf32, #tpu.memory_space<vmem>>, vector<8x256xf32>,
    } else {
    }
    %c0 = arith.constant 0 : index
    %c0_1 = arith.constant 0 : index
    %3 = vector.load %arg2[%c0, %c0_1] : memref<8x256xf32, #tpu.memory_space<vmem>>, vector<8x256xf32>
    %c0_2 = arith.constant 0 : index
    %c0_3 = arith.constant 0 : index
    %4 = vector.load %arg3[%c0_2, %c0_3] : memref<256x512xbf16, #tpu.memory_space<vmem>>, vector<256x512xbf16>
    %cst = arith.constant dense<0.000000e+00> : vector<8x512xf32>
    %5 = tpu.matmul %3, %4, %cst {dimension_numbers = #tpu.dot_dimension_numbers<[1], [0], [0], [1], [0, 0, 1, 1], [], []>} : vector<8x256xf32>, vector<256x512xbf16>, vector<8x512xf32> -> vector<8x512xf32>
    %6 = vector.extract_strided_slice %5 {offsets = [0, 0], sizes = [8, 256], strides = [1, 1]} : vector<8x512xf32> to vector<8x256xf32>
    %7 = vector.extract_strided_slice %5 {offsets = [0, 256], sizes = [8, 256], strides = [1, 1]} : vector<8x512xf32> to vector<8x256xf32>
    %c0_4 = arith.constant 0 : index
    %c0_5 = arith.constant 0 : index
    %8 = vector.load %arg7[%c0_4, %c0_5] : memref<8x256xf32, #tpu.memory_space<vmem>>, vector<4x256xf32>
    %9 = vector.extract_strided_slice %6 {offsets = [0, 0], sizes = [4, 256], strides = [1, 1]} : vector<8x256xf32> to vector<4x256xf32>
    %10 = vector.extract_strided_slice %7 {offsets = [4, 0], sizes = [4, 256], strides = [1, 1]} : vector<8x256xf32> to vector<4x256xf32>
    %11 = arith.subf %9, %10 : vector<4x256xf32>
    %12 = arith.addf %8, %11 : vector<4x256xf32>
    %c0_6 = arith.constant 0 : index
    %c0_7 = arith.constant 0 : index
    %13 = vector.load %arg7[%c0_6, %c0_7] : memref<8x256xf32, #tpu.memory_space<vmem>>, vector<4x256xf32>
    tpu.vector_store %arg7[%c0_6, %c0_7], %12 {strides = array<i32>} : memref<8x256xf32, #tpu.memory_space<vmem>>, vector<4x256xf32>,
    %c4 = arith.constant 4 : index
    %c0_8 = arith.constant 0 : index
    %14 = vector.load %arg7[%c4, %c0_8] : memref<8x256xf32, #tpu.memory_space<vmem>>, vector<4x256xf32>
    %15 = vector.extract_strided_slice %7 {offsets = [0, 0], sizes = [4, 256], strides = [1, 1]} : vector<8x256xf32> to vector<4x256xf32>
    %16 = vector.extract_strided_slice %6 {offsets = [4, 0], sizes = [4, 256], strides = [1, 1]} : vector<8x256xf32> to vector<4x256xf32>
    %17 = arith.addf %15, %16 : vector<4x256xf32>
    %18 = arith.addf %14, %17 : vector<4x256xf32>
    %c4_9 = arith.constant 4 : index
    %c0_10 = arith.constant 0 : index
    %19 = vector.load %arg7[%c4_9, %c0_10] : memref<8x256xf32, #tpu.memory_space<vmem>>, vector<4x256xf32>
    tpu.vector_store %arg7[%c4_9, %c0_10], %18 {strides = array<i32>} : memref<8x256xf32, #tpu.memory_space<vmem>>, vector<4x256xf32>,
    %c1_i32 = arith.constant 1 : i32
    %20 = arith.cmpi eq, %arg1, %c1_i32 : i32
    %21 = arith.extui %20 : i1 to i32
    %c0_i32_11 = arith.constant 0 : i32
    %22 = arith.cmpi ne, %21, %c0_i32_11 : i32
    scf.if %22 {
      %c0_12 = arith.constant 0 : index
      %c0_13 = arith.constant 0 : index
      %23 = vector.load %arg7[%c0_12, %c0_13] : memref<8x256xf32, #tpu.memory_space<vmem>>, vector<4x256xf32>
      %c4_14 = arith.constant 4 : index
      %c0_15 = arith.constant 0 : index
      %24 = vector.load %arg7[%c4_14, %c0_15] : memref<8x256xf32, #tpu.memory_space<vmem>>, vector<4x256xf32>
      %c0_16 = arith.constant 0 : index
      %c0_17 = arith.constant 0 : index
      %25 = vector.load %arg4[%c0_16, %c0_17] : memref<8x256xf32, #tpu.memory_space<vmem>>, vector<4x256xf32>
      %c4_18 = arith.constant 4 : index
      %c0_19 = arith.constant 0 : index
      %26 = vector.load %arg4[%c4_18, %c0_19] : memref<8x256xf32, #tpu.memory_space<vmem>>, vector<4x256xf32>
      %27 = arith.mulf %23, %25 : vector<4x256xf32>
      %28 = arith.mulf %24, %26 : vector<4x256xf32>
      %29 = arith.addf %27, %28 : vector<4x256xf32>
      %cst_20 = arith.constant dense<0.000000e+00> : vector<256xf32>
      %30 = vector.multi_reduction <add>, %29, %cst_20 [0] : vector<4x256xf32> to vector<256xf32>
      %31 = vector.shape_cast %30 : vector<256xf32> to vector<1x256xf32>
      %32 = arith.mulf %24, %25 : vector<4x256xf32>
      %33 = arith.mulf %23, %26 : vector<4x256xf32>
      %34 = arith.subf %32, %33 : vector<4x256xf32>
      %cst_21 = arith.constant dense<0.000000e+00> : vector<256xf32>
      %35 = vector.multi_reduction <add>, %34, %cst_21 [0] : vector<4x256xf32> to vector<256xf32>
      %36 = vector.shape_cast %35 : vector<256xf32> to vector<1x256xf32>
      %c0_22 = arith.constant 0 : index
      %c0_23 = arith.constant 0 : index
      %37 = vector.load %arg5[%c0_22, %c0_23] : memref<2x256xf32, #tpu.memory_space<vmem>>, vector<1x256xf32>
      %38 = arith.subf %37, %31 : vector<1x256xf32>
      %c0_24 = arith.constant 0 : index
      %c0_25 = arith.constant 0 : index
      %39 = vector.load %arg6[%c0_24, %c0_25] : memref<2x256xf32, #tpu.memory_space<vmem>>, vector<1x256xf32>
      tpu.vector_store %arg6[%c0_24, %c0_25], %38 {strides = array<i32>} : memref<2x256xf32, #tpu.memory_space<vmem>>, vector<1x256xf32>,
      %c1 = arith.constant 1 : index
      %c0_26 = arith.constant 0 : index
      %40 = vector.load %arg5[%c1, %c0_26] : memref<2x256xf32, #tpu.memory_space<vmem>>, vector<1x256xf32>
      %41 = arith.subf %40, %36 : vector<1x256xf32>
      %c1_27 = arith.constant 1 : index
      %c0_28 = arith.constant 0 : index
      %42 = vector.load %arg6[%c1_27, %c0_28] : memref<2x256xf32, #tpu.memory_space<vmem>>, vector<1x256xf32>
      tpu.vector_store %arg6[%c1_27, %c0_28], %41 {strides = array<i32>} : memref<2x256xf32, #tpu.memory_space<vmem>>, vector<1x256xf32>,
    } else {
    }
    return
  }
  func.func @transform_0(%arg0: i32, %arg1: i32) -> (i32, i32) {
    %c0_i32 = arith.constant 0 : i32
    %c0_i32_0 = arith.constant 0 : i32
    return %c0_i32, %arg1 : i32, i32
  }
  func.func @transform_1(%arg0: i32, %arg1: i32) -> (i32, i32) {
    %c0_i32 = arith.constant 0 : i32
    return %arg1, %arg0 : i32, i32
  }
  func.func @transform_2(%arg0: i32, %arg1: i32) -> (i32, i32) {
    %c0_i32 = arith.constant 0 : i32
    %c0_i32_0 = arith.constant 0 : i32
    return %c0_i32, %arg0 : i32, i32
  }
  func.func @transform_3(%arg0: i32, %arg1: i32) -> (i32, i32) {
    %c0_i32 = arith.constant 0 : i32
    %c0_i32_0 = arith.constant 0 : i32
    return %c0_i32, %arg0 : i32, i32
  }
  func.func @transform_4(%arg0: i32, %arg1: i32) -> (i32, i32) {
    %c0_i32 = arith.constant 0 : i32
    %c0_i32_0 = arith.constant 0 : i32
    return %c0_i32, %arg0 : i32, i32
  }
}

module attributes {stable_mosaic.version = 11 : i64} {
  func.func @_fwd_resid_kernel(%arg0: i32, %arg1: i32, %arg2: memref<2x512xf32, #tpu.memory_space<vmem>>, %arg3: memref<8x512xf32, #tpu.memory_space<vmem>>, %arg4: memref<512x256xbf16, #tpu.memory_space<vmem>>, %arg5: memref<8x128xf32, #tpu.memory_space<vmem>>, %arg6: memref<8x128xf32, #tpu.memory_space<vmem>>) attributes {dimension_semantics = [#tpu.dimension_semantics<parallel>, #tpu.dimension_semantics<arbitrary>], iteration_bounds = array<i64: 4, 2>, scalar_prefetch = 0 : i64, scratch_operands = 0 : i64, tpu.core_type = #tpu.core_type<tc>, window_params = [{transform_indices = @transform_0, window_bounds = array<i64: 2, 512>}, {transform_indices = @transform_1, window_bounds = array<i64: 8, 512>}, {transform_indices = @transform_2, window_bounds = array<i64: 512, 256>}, {transform_indices = @transform_3, window_bounds = array<i64: 8, 128>}, {transform_indices = @transform_4, window_bounds = array<i64: 8, 128>}]} {
    %c0_i32 = arith.constant 0 : i32
    %0 = arith.cmpi eq, %arg1, %c0_i32 : i32
    %1 = arith.extui %0 : i1 to i32
    %c0_i32_0 = arith.constant 0 : i32
    %2 = arith.cmpi ne, %1, %c0_i32_0 : i32
    scf.if %2 {
      %c0_16 = arith.constant 0 : index
      %c0_17 = arith.constant 0 : index
      %35 = vector.load %arg5[%c0_16, %c0_17] : memref<8x128xf32, #tpu.memory_space<vmem>>, vector<8x128xf32>
      %cst_18 = arith.constant 0.000000e+00 : f32
      %36 = vector.broadcast %cst_18 : f32 to vector<8x128xf32>
      %37 = arith.subf %36, %35 : vector<8x128xf32>
      %c0_19 = arith.constant 0 : index
      %c0_20 = arith.constant 0 : index
      %38 = vector.load %arg6[%c0_19, %c0_20] : memref<8x128xf32, #tpu.memory_space<vmem>>, vector<8x128xf32>
      tpu.vector_store %arg6[%c0_19, %c0_20], %37 {strides = array<i32>} : memref<8x128xf32, #tpu.memory_space<vmem>>, vector<8x128xf32>,
    } else {
    }
    %c0 = arith.constant 0 : index
    %c0_1 = arith.constant 0 : index
    %3 = vector.load %arg2[%c0, %c0_1] : memref<2x512xf32, #tpu.memory_space<vmem>>, vector<1x512xf32>
    %c1 = arith.constant 1 : index
    %c0_2 = arith.constant 0 : index
    %4 = vector.load %arg2[%c1, %c0_2] : memref<2x512xf32, #tpu.memory_space<vmem>>, vector<1x512xf32>
    %c0_3 = arith.constant 0 : index
    %c0_4 = arith.constant 0 : index
    %5 = vector.load %arg3[%c0_3, %c0_4] : memref<8x512xf32, #tpu.memory_space<vmem>>, vector<4x512xf32>
    %c4 = arith.constant 4 : index
    %c0_5 = arith.constant 0 : index
    %6 = vector.load %arg3[%c4, %c0_5] : memref<8x512xf32, #tpu.memory_space<vmem>>, vector<4x512xf32>
    %7 = vector.broadcast %3 : vector<1x512xf32> to vector<4x512xf32>
    %8 = arith.mulf %7, %5 : vector<4x512xf32>
    %9 = vector.broadcast %4 : vector<1x512xf32> to vector<4x512xf32>
    %10 = arith.mulf %9, %6 : vector<4x512xf32>
    %11 = arith.subf %8, %10 : vector<4x512xf32>
    %12 = vector.broadcast %3 : vector<1x512xf32> to vector<4x512xf32>
    %13 = arith.mulf %12, %6 : vector<4x512xf32>
    %14 = vector.broadcast %4 : vector<1x512xf32> to vector<4x512xf32>
    %15 = arith.mulf %14, %5 : vector<4x512xf32>
    %16 = arith.addf %13, %15 : vector<4x512xf32>
    %17 = tpu.concatenate %11, %16 in 0 : vector<4x512xf32>, vector<4x512xf32> -> vector<8x512xf32>
    %18 = arith.truncf %17 : vector<8x512xf32> to vector<8x512xbf16>
    %c0_6 = arith.constant 0 : index
    %c0_7 = arith.constant 0 : index
    %19 = vector.load %arg4[%c0_6, %c0_7] : memref<512x256xbf16, #tpu.memory_space<vmem>>, vector<512x256xbf16>
    %cst = arith.constant dense<0.000000e+00> : vector<8x256xf32>
    %20 = tpu.matmul %18, %19, %cst {dimension_numbers = #tpu.dot_dimension_numbers<[1], [0], [0], [1], [0, 0, 1, 1], [], []>} : vector<8x512xbf16>, vector<512x256xbf16>, vector<8x256xf32> -> vector<8x256xf32>
    %21 = vector.extract_strided_slice %20 {offsets = [0, 0], sizes = [8, 128], strides = [1, 1]} : vector<8x256xf32> to vector<8x128xf32>
    %22 = vector.extract_strided_slice %20 {offsets = [0, 128], sizes = [8, 128], strides = [1, 1]} : vector<8x256xf32> to vector<8x128xf32>
    %c0_8 = arith.constant 0 : index
    %c0_9 = arith.constant 0 : index
    %23 = vector.load %arg6[%c0_8, %c0_9] : memref<8x128xf32, #tpu.memory_space<vmem>>, vector<4x128xf32>
    %24 = vector.extract_strided_slice %21 {offsets = [0, 0], sizes = [4, 128], strides = [1, 1]} : vector<8x128xf32> to vector<4x128xf32>
    %25 = vector.extract_strided_slice %22 {offsets = [4, 0], sizes = [4, 128], strides = [1, 1]} : vector<8x128xf32> to vector<4x128xf32>
    %26 = arith.subf %24, %25 : vector<4x128xf32>
    %27 = arith.addf %23, %26 : vector<4x128xf32>
    %c0_10 = arith.constant 0 : index
    %c0_11 = arith.constant 0 : index
    %28 = vector.load %arg6[%c0_10, %c0_11] : memref<8x128xf32, #tpu.memory_space<vmem>>, vector<4x128xf32>
    tpu.vector_store %arg6[%c0_10, %c0_11], %27 {strides = array<i32>} : memref<8x128xf32, #tpu.memory_space<vmem>>, vector<4x128xf32>,
    %c4_12 = arith.constant 4 : index
    %c0_13 = arith.constant 0 : index
    %29 = vector.load %arg6[%c4_12, %c0_13] : memref<8x128xf32, #tpu.memory_space<vmem>>, vector<4x128xf32>
    %30 = vector.extract_strided_slice %22 {offsets = [0, 0], sizes = [4, 128], strides = [1, 1]} : vector<8x128xf32> to vector<4x128xf32>
    %31 = vector.extract_strided_slice %21 {offsets = [4, 0], sizes = [4, 128], strides = [1, 1]} : vector<8x128xf32> to vector<4x128xf32>
    %32 = arith.addf %30, %31 : vector<4x128xf32>
    %33 = arith.addf %29, %32 : vector<4x128xf32>
    %c4_14 = arith.constant 4 : index
    %c0_15 = arith.constant 0 : index
    %34 = vector.load %arg6[%c4_14, %c0_15] : memref<8x128xf32, #tpu.memory_space<vmem>>, vector<4x128xf32>
    tpu.vector_store %arg6[%c4_14, %c0_15], %33 {strides = array<i32>} : memref<8x128xf32, #tpu.memory_space<vmem>>, vector<4x128xf32>,
    return
  }
  func.func @transform_0(%arg0: i32, %arg1: i32) -> (i32, i32) {
    %c0_i32 = arith.constant 0 : i32
    %c0_i32_0 = arith.constant 0 : i32
    return %c0_i32, %arg1 : i32, i32
  }
  func.func @transform_1(%arg0: i32, %arg1: i32) -> (i32, i32) {
    %c0_i32 = arith.constant 0 : i32
    %c0_i32_0 = arith.constant 0 : i32
    return %c0_i32, %arg1 : i32, i32
  }
  func.func @transform_2(%arg0: i32, %arg1: i32) -> (i32, i32) {
    %c0_i32 = arith.constant 0 : i32
    return %arg1, %arg0 : i32, i32
  }
  func.func @transform_3(%arg0: i32, %arg1: i32) -> (i32, i32) {
    %c0_i32 = arith.constant 0 : i32
    %c0_i32_0 = arith.constant 0 : i32
    return %c0_i32, %arg0 : i32, i32
  }
  func.func @transform_4(%arg0: i32, %arg1: i32) -> (i32, i32) {
    %c0_i32 = arith.constant 0 : i32
    %c0_i32_0 = arith.constant 0 : i32
    return %c0_i32, %arg0 : i32, i32
  }
}

</mosaic_0001>

<llo_original>
// kernel: custom-call
$region0: #{custom-call}
  %s0 = inlined_call_operand.hbm [shape: c64[32,32], index: 0, kind: input, shape index: {}]
  %s1 = inlined_call_operand.vmem [shape: f32[32,32], index: 1, kind: output, shape index: {}]
  $region1: #{custom-call} parent=0
    #allocation0 [shape = 's32[1]{0}', space=sflag, size = 0x4, scoped, tag = 'scoped memory for custom-call']
    %2 = vsyncpa [#allocation0], 0
    %s4 = sshll.u32 %s0, 4
    %s5 = int_to_ptr.hbm [resolvable:$true] %s4
    %s6 = sshll.u32 %s1, 4
    %s7 = int_to_ptr.vmem [resolvable:$true] %s6
    %9 = dma.hbm_to_vmem [thread:$0]  %s5, 512, %s7, [#allocation0]
    %11 = dma.done [#allocation0], 512
    %12 = vsyncpa [#allocation0], 1

// kernel: custom-call.1
$region0: #{custom-call.1}
  %s0 = inlined_call_operand.hbm [shape: c64[32,32], index: 0, kind: input, shape index: {}]
  %s1 = inlined_call_operand.vmem [shape: f32[32,32], index: 1, kind: output, shape index: {}]
  %s2 = scalar_lea.hbm %s0, 32
  $region1: #{custom-call.1} parent=0
    #allocation0 [shape = 's32[1]{0}', space=sflag, size = 0x4, scoped, tag = 'scoped memory for custom-call.1']
    %3 = vsyncpa [#allocation0], 0
    %s5 = sshll.u32 %s2, 4
    %s6 = int_to_ptr.hbm [resolvable:$true] %s5
    %s7 = sshll.u32 %s1, 4
    %s8 = int_to_ptr.vmem [resolvable:$true] %s7
    %10 = dma.hbm_to_vmem [thread:$0]  %s6, 512, %s8, [#allocation0]
    %12 = dma.done [#allocation0], 512
    %13 = vsyncpa [#allocation0], 1

// kernel: squeeze.15
$region0: #{squeeze.15}
  %s0 = inlined_call_operand.vmem [shape: f32[1024], index: 0, kind: input, shape index: {}]
  %s1 = inlined_call_operand.vmem [shape: f32[16,2,16,2], index: 1, kind: output, shape index: {}]
  %v2 = vld [vmem:[%s0] sm:$0xff]
  %vm3 = vcmask 15360
  %4 = vst.msk [vmem:[%s1] sm:$0x1] %vm3, %v2
  %s5 = scalar_lea.vmem %s1, 63
  %6 = vst.msk [vmem:[%s5] sm:$0x2] %vm3, %v2
  %s7 = scalar_lea.vmem %s1, 126
  %8 = vst.msk [vmem:[%s7] sm:$0x4] %vm3, %v2
  %s9 = scalar_lea.vmem %s1, 189
  %10 = vst.msk [vmem:[%s9] sm:$0x8] %vm3, %v2
  %s11 = scalar_lea.vmem %s1, 252
  %12 = vst.msk [vmem:[%s11] sm:$0x10] %vm3, %v2
  %s13 = scalar_lea.vmem %s1, 315
  %14 = vst.msk [vmem:[%s13] sm:$0x20] %vm3, %v2
  %s15 = scalar_lea.vmem %s1, 378
  %16 = vst.msk [vmem:[%s15] sm:$0x40] %vm3, %v2
  %s17 = scalar_lea.vmem %s1, 441
  %18 = vst.msk [vmem:[%s17] sm:$0x80] %vm3, %v2
  %v19 = vld [vmem:[%s0] sm:$0xff]
  %20 = vrot.lane.b32.xlu0 %v19, 126
  %v21 = vpop.permute.xlu0 %20
  %vm22 = vcmask 15360
  %s23 = scalar_lea.vmem %s1, 1
  %24 = vst.msk [vmem:[%s23] sm:$0x1] %vm22, %v21
  %s25 = scalar_lea.vmem %s1, 64
  %26 = vst.msk [vmem:[%s25] sm:$0x2] %vm22, %v21
  %s27 = scalar_lea.vmem %s1, 127
  %28 = vst.msk [vmem:[%s27] sm:$0x4] %vm22, %v21
  %s29 = scalar_lea.vmem %s1, 190
  %30 = vst.msk [vmem:[%s29] sm:$0x8] %vm22, %v21
  %s31 = scalar_lea.vmem %s1, 253
  %32 = vst.msk [vmem:[%s31] sm:$0x10] %vm22, %v21
  %s33 = scalar_lea.vmem %s1, 316
  %34 = vst.msk [vmem:[%s33] sm:$0x20] %vm22, %v21
  %s35 = scalar_lea.vmem %s1, 379
  %36 = vst.msk [vmem:[%s35] sm:$0x40] %vm22, %v21
  %s37 = scalar_lea.vmem %s1, 442
  %38 = vst.msk [vmem:[%s37] sm:$0x80] %vm22, %v21
  %v39 = vld [vmem:[%s0] sm:$0xff]
  %40 = vrot.lane.b32.xlu0 %v39, 124
  %v41 = vpop.permute.xlu0 %40
  %vm42 = vcmask 15360
  %s43 = scalar_lea.vmem %s1, 2
  %44 = vst.msk [vmem:[%s43] sm:$0x1] %vm42, %v41
  %s45 = scalar_lea.vmem %s1, 65
  %46 = vst.msk [vmem:[%s45] sm:$0x2] %vm42, %v41
  %s47 = scalar_lea.vmem %s1, 128
  %48 = vst.msk [vmem:[%s47] sm:$0x4] %vm42, %v41
  %s49 = scalar_lea.vmem %s1, 191
  %50 = vst.msk [vmem:[%s49] sm:$0x8] %vm42, %v41
  %s51 = scalar_lea.vmem %s1, 254
  %52 = vst.msk [vmem:[%s51] sm:$0x10] %vm42, %v41
  %s53 = scalar_lea.vmem %s1, 317
  %54 = vst.msk [vmem:[%s53] sm:$0x20] %vm42, %v41
  %s55 = scalar_lea.vmem %s1, 380
  %56 = vst.msk [vmem:[%s55] sm:$0x40] %vm42, %v41
  %s57 = scalar_lea.vmem %s1, 443
  %58 = vst.msk [vmem:[%s57] sm:$0x80] %vm42, %v41
  %v59 = vld [vmem:[%s0] sm:$0xff]
  %60 = vrot.lane.b32.xlu0 %v59, 122
  %v61 = vpop.permute.xlu0 %60
  %vm62 = vcmask 15360
  %s63 = scalar_lea.vmem %s1, 3
  %64 = vst.msk [vmem:[%s63] sm:$0x1] %vm62, %v61
  %s65 = scalar_lea.vmem %s1, 66
  %66 = vst.msk [vmem:[%s65] sm:$0x2] %vm62, %v61
  %s67 = scalar_lea.vmem %s1, 129
  %68 = vst.msk [vmem:[%s67] sm:$0x4] %vm62, %v61
  %s69 = scalar_lea.vmem %s1, 192
  %70 = vst.msk [vmem:[%s69] sm:$0x8] %vm62, %v61
  %s71 = scalar_lea.vmem %s1, 255
  %72 = vst.msk [vmem:[%s71] sm:$0x10] %vm62, %v61
  %s73 = scalar_lea.vmem %s1, 318
  %74 = vst.msk [vmem:[%s73] sm:$0x20] %vm62, %v61
  %s75 = scalar_lea.vmem %s1, 381
  %76 = vst.msk [vmem:[%s75] sm:$0x40] %vm62, %v61
  %s77 = scalar_lea.vmem %s1, 444
  %78 = vst.msk [vmem:[%s77] sm:$0x80] %vm62, %v61
  %v79 = vld [vmem:[%s0] sm:$0xff]
  %80 = vrot.lane.b32.xlu0 %v79, 120
  %v81 = vpop.permute.xlu0 %80
  %vm82 = vcmask 15360
  %s83 = scalar_lea.vmem %s1, 4
  %84 = vst.msk [vmem:[%s83] sm:$0x1] %vm82, %v81
  %s85 = scalar_lea.vmem %s1, 67
  %86 = vst.msk [vmem:[%s85] sm:$0x2] %vm82, %v81
  %s87 = scalar_lea.vmem %s1, 130
  %88 = vst.msk [vmem:[%s87] sm:$0x4] %vm82, %v81
  %s89 = scalar_lea.vmem %s1, 193
  %90 = vst.msk [vmem:[%s89] sm:$0x8] %vm82, %v81
  %s91 = scalar_lea.vmem %s1, 256
  %92 = vst.msk [vmem:[%s91] sm:$0x10] %vm82, %v81
  %s93 = scalar_lea.vmem %s1, 319
  %94 = vst.msk [vmem:[%s93] sm:$0x20] %vm82, %v81
  %s95 = scalar_lea.vmem %s1, 382
  %96 = vst.msk [vmem:[%s95] sm:$0x40] %vm82, %v81
  %s97 = scalar_lea.vmem %s1, 445
  %98 = vst.msk [vmem:[%s97] sm:$0x80] %vm82, %v81
  %v99 = vld [vmem:[%s0] sm:$0xff]
  %100 = vrot.lane.b32.xlu0 %v99, 118
  %v101 = vpop.permute.xlu0 %100
  %vm102 = vcmask 15360
  %s103 = scalar_lea.vmem %s1, 5
  %104 = vst.msk [vmem:[%s103] sm:$0x1] %vm102, %v101
  %s105 = scalar_lea.vmem %s1, 68
  %106 = vst.msk [vmem:[%s105] sm:$0x2] %vm102, %v101
  %s107 = scalar_lea.vmem %s1, 131
  %108 = vst.msk [vmem:[%s107] sm:$0x4] %vm102, %v101
  %s109 = scalar_lea.vmem %s1, 194
  %110 = vst.msk [vmem:[%s109] sm:$0x8] %vm102, %v101
  %s111 = scalar_lea.vmem %s1, 257
  %112 = vst.msk [vmem:[%s111] sm:$0x10] %vm102, %v101
  %s113 = scalar_lea.vmem %s1, 320
  %114 = vst.msk [vmem:[%s113] sm:$0x20] %vm102, %v101
  %s115 = scalar_lea.vmem %s1, 383
  %116 = vst.msk [vmem:[%s115] sm:$0x40] %vm102, %v101
  %s117 = scalar_lea.vmem %s1, 446
  %118 = vst.msk [vmem:[%s117] sm:$0x80] %vm102, %v101
  %v119 = vld [vmem:[%s0] sm:$0xff]
  %120 = vrot.lane.b32.xlu0 %v119, 116
  %v121 = vpop.permute.xlu0 %120
  %vm122 = vcmask 15360
  %s123 = scalar_lea.vmem %s1, 6
  %124 = vst.msk [vmem:[%s123] sm:$0x1] %vm122, %v121
  %s125 = scalar_lea.vmem %s1, 69
  %126 = vst.msk [vmem:[%s125] sm:$0x2] %vm122, %v121
  %s127 = scalar_lea.vmem %s1, 132
  %128 = vst.msk [vmem:[%s127] sm:$0x4] %vm122, %v121
  %s129 = scalar_lea.vmem %s1, 195
  %130 = vst.msk [vmem:[%s129] sm:$0x8] %vm122, %v121
  %s131 = scalar_lea.vmem %s1, 258
  %132 = vst.msk [vmem:[%s131] sm:$0x10] %vm122, %v121
  %s133 = scalar_lea.vmem %s1, 321
  %134 = vst.msk [vmem:[%s133] sm:$0x20] %vm122, %v121
  %s135 = scalar_lea.vmem %s1, 384
  %136 = vst.msk [vmem:[%s135] sm:$0x40] %vm122, %v121
  %s137 = scalar_lea.vmem %s1, 447
  %138 = vst.msk [vmem:[%s137] sm:$0x80] %vm122, %v121
  %v139 = vld [vmem:[%s0] sm:$0xff]
  %140 = vrot.lane.b32.xlu0 %v139, 114
  %v141 = vpop.permute.xlu0 %140
  %vm142 = vcmask 15360
  %s143 = scalar_lea.vmem %s1, 7
  %144 = vst.msk [vmem:[%s143] sm:$0x1] %vm142, %v141
  %s145 = scalar_lea.vmem %s1, 70
  %146 = vst.msk [vmem:[%s145] sm:$0x2] %vm142, %v141
  %s147 = scalar_lea.vmem %s1, 133
  %148 = vst.msk [vmem:[%s147] sm:$0x4] %vm142, %v141
  %s149 = scalar_lea.vmem %s1, 196
  %150 = vst.msk [vmem:[%s149] sm:$0x8] %vm142, %v141
  %s151 = scalar_lea.vmem %s1, 259
  %152 = vst.msk [vmem:[%s151] sm:$0x10] %vm142, %v141
  %s153 = scalar_lea.vmem %s1, 322
  %154 = vst.msk [vmem:[%s153] sm:$0x20] %vm142, %v141
  %s155 = scalar_lea.vmem %s1, 385
  %156 = vst.msk [vmem:[%s155] sm:$0x40] %vm142, %v141
  %s157 = scalar_lea.vmem %s1, 448
  %158 = vst.msk [vmem:[%s157] sm:$0x80] %vm142, %v141
  %v159 = vld [vmem:[%s0] sm:$0xff]
  %160 = vrot.lane.b32.xlu0 %v159, 112
  %v161 = vpop.permute.xlu0 %160
  %vm162 = vcmask 15360
  %s163 = scalar_lea.vmem %s1, 8
  %164 = vst.msk [vmem:[%s163] sm:$0x1] %vm162, %v161
  %s165 = scalar_lea.vmem %s1, 71
  %166 = vst.msk [vmem:[%s165] sm:$0x2] %vm162, %v161
  %s167 = scalar_lea.vmem %s1, 134
  %168 = vst.msk [vmem:[%s167] sm:$0x4] %vm162, %v161
  %s169 = scalar_lea.vmem %s1, 197
  %170 = vst.msk [vmem:[%s169] sm:$0x8] %vm162, %v161
  %s171 = scalar_lea.vmem %s1, 260
  %172 = vst.msk [vmem:[%s171] sm:$0x10] %vm162, %v161
  %s173 = scalar_lea.vmem %s1, 323
  %174 = vst.msk [vmem:[%s173] sm:$0x20] %vm162, %v161
  %s175 = scalar_lea.vmem %s1, 386
  %176 = vst.msk [vmem:[%s175] sm:$0x40] %vm162, %v161
  %s177 = scalar_lea.vmem %s1, 449
  %178 = vst.msk [vmem:[%s177] sm:$0x80] %vm162, %v161
  %v179 = vld [vmem:[%s0] sm:$0xff]
  %180 = vrot.lane.b32.xlu0 %v179, 110
  %v181 = vpop.permute.xlu0 %180
  %vm182 = vcmask 15360
  %s183 = scalar_lea.vmem %s1, 9
  %184 = vst.msk [vmem:[%s183] sm:$0x1] %vm182, %v181
  %s185 = scalar_lea.vmem %s1, 72
  %186 = vst.msk [vmem:[%s185] sm:$0x2] %vm182, %v181
  %s187 = scalar_lea.vmem %s1, 135
  %188 = vst.msk [vmem:[%s187] sm:$0x4] %vm182, %v181
  %s189 = scalar_lea.vmem %s1, 198
  %190 = vst.msk [vmem:[%s189] sm:$0x8] %vm182, %v181
  %s191 = scalar_lea.vmem %s1, 261
  %192 = vst.msk [vmem:[%s191] sm:$0x10] %vm182, %v181
  %s193 = scalar_lea.vmem %s1, 324
  %194 = vst.msk [vmem:[%s193] sm:$0x20] %vm182, %v181
  %s195 = scalar_lea.vmem %s1, 387
  %196 = vst.msk [vmem:[%s195] sm:$0x40] %vm182, %v181
  %s197 = scalar_lea.vmem %s1, 450
  %198 = vst.msk [vmem:[%s197] sm:$0x80] %vm182, %v181
  %v199 = vld [vmem:[%s0] sm:$0xff]
  %200 = vrot.lane.b32.xlu0 %v199, 108
  %v201 = vpop.permute.xlu0 %200
  %vm202 = vcmask 15360
  %s203 = scalar_lea.vmem %s1, 10
  %204 = vst.msk [vmem:[%s203] sm:$0x1] %vm202, %v201
  %s205 = scalar_lea.vmem %s1, 73
  %206 = vst.msk [vmem:[%s205] sm:$0x2] %vm202, %v201
  %s207 = scalar_lea.vmem %s1, 136
  %208 = vst.msk [vmem:[%s207] sm:$0x4] %vm202, %v201
  %s209 = scalar_lea.vmem %s1, 199
  %210 = vst.msk [vmem:[%s209] sm:$0x8] %vm202, %v201
  %s211 = scalar_lea.vmem %s1, 262
  %212 = vst.msk [vmem:[%s211] sm:$0x10] %vm202, %v201
  %s213 = scalar_lea.vmem %s1, 325
  %214 = vst.msk [vmem:[%s213] sm:$0x20] %vm202, %v201
  %s215 = scalar_lea.vmem %s1, 388
  %216 = vst.msk [vmem:[%s215] sm:$0x40] %vm202, %v201
  %s217 = scalar_lea.vmem %s1, 451
  %218 = vst.msk [vmem:[%s217] sm:$0x80] %vm202, %v201
  %v219 = vld [vmem:[%s0] sm:$0xff]
  %220 = vrot.lane.b32.xlu0 %v219, 106
  %v221 = vpop.permute.xlu0 %220
  %vm222 = vcmask 15360
  %s223 = scalar_lea.vmem %s1, 11
  %224 = vst.msk [vmem:[%s223] sm:$0x1] %vm222, %v221
  %s225 = scalar_lea.vmem %s1, 74
  %226 = vst.msk [vmem:[%s225] sm:$0x2] %vm222, %v221
  %s227 = scalar_lea.vmem %s1, 137
  %228 = vst.msk [vmem:[%s227] sm:$0x4] %vm222, %v221
  %s229 = scalar_lea.vmem %s1, 200
  %230 = vst.msk [vmem:[%s229] sm:$0x8] %vm222, %v221
  %s231 = scalar_lea.vmem %s1, 263
  %232 = vst.msk [vmem:[%s231] sm:$0x10] %vm222, %v221
  %s233 = scalar_lea.vmem %s1, 326
  %234 = vst.msk [vmem:[%s233] sm:$0x20] %vm222, %v221
  %s235 = scalar_lea.vmem %s1, 389
  %236 = vst.msk [vmem:[%s235] sm:$0x40] %vm222, %v221
  %s237 = scalar_lea.vmem %s1, 452
  %238 = vst.msk [vmem:[%s237] sm:$0x80] %vm222, %v221
  %v239 = vld [vmem:[%s0] sm:$0xff]
  %240 = vrot.lane.b32.xlu0 %v239, 104
  %v241 = vpop.permute.xlu0 %240
  %vm242 = vcmask 15360
  %s243 = scalar_lea.vmem %s1, 12
  %244 = vst.msk [vmem:[%s243] sm:$0x1] %vm242, %v241
  %s245 = scalar_lea.vmem %s1, 75
  %246 = vst.msk [vmem:[%s245] sm:$0x2] %vm242, %v241
  %s247 = scalar_lea.vmem %s1, 138
  %248 = vst.msk [vmem:[%s247] sm:$0x4] %vm242, %v241
  %s249 = scalar_lea.vmem %s1, 201
  %250 = vst.msk [vmem:[%s249] sm:$0x8] %vm242, %v241
  %s251 = scalar_lea.vmem %s1, 264
  %252 = vst.msk [vmem:[%s251] sm:$0x10] %vm242, %v241
  %s253 = scalar_lea.vmem %s1, 327
  %254 = vst.msk [vmem:[%s253] sm:$0x20] %vm242, %v241
  %s255 = scalar_lea.vmem %s1, 390
  %256 = vst.msk [vmem:[%s255] sm:$0x40] %vm242, %v241
  %s257 = scalar_lea.vmem %s1, 453
  %258 = vst.msk [vmem:[%s257] sm:$0x80] %vm242, %v241
  %v259 = vld [vmem:[%s0] sm:$0xff]
  %260 = vrot.lane.b32.xlu0 %v259, 102
  %v261 = vpop.permute.xlu0 %260
  %vm262 = vcmask 15360
  %s263 = scalar_lea.vmem %s1, 13
  %264 = vst.msk [vmem:[%s263] sm:$0x1] %vm262, %v261
  %s265 = scalar_lea.vmem %s1, 76
  %266 = vst.msk [vmem:[%s265] sm:$0x2] %vm262, %v261
  %s267 = scalar_lea.vmem %s1, 139
  %268 = vst.msk [vmem:[%s267] sm:$0x4] %vm262, %v261
  %s269 = scalar_lea.vmem %s1, 202
  %270 = vst.msk [vmem:[%s269] sm:$0x8] %vm262, %v261
  %s271 = scalar_lea.vmem %s1, 265
  %272 = vst.msk [vmem:[%s271] sm:$0x10] %vm262, %v261
  %s273 = scalar_lea.vmem %s1, 328
  %274 = vst.msk [vmem:[%s273] sm:$0x20] %vm262, %v261
  %s275 = scalar_lea.vmem %s1, 391
  %276 = vst.msk [vmem:[%s275] sm:$0x40] %vm262, %v261
  %s277 = scalar_lea.vmem %s1, 454
  %278 = vst.msk [vmem:[%s277] sm:$0x80] %vm262, %v261
  %v279 = vld [vmem:[%s0] sm:$0xff]
  %280 = vrot.lane.b32.xlu0 %v279, 100
  %v281 = vpop.permute.xlu0 %280
  %vm282 = vcmask 15360
  %s283 = scalar_lea.vmem %s1, 14
  %284 = vst.msk [vmem:[%s283] sm:$0x1] %vm282, %v281
  %s285 = scalar_lea.vmem %s1, 77
  %286 = vst.msk [vmem:[%s285] sm:$0x2] %vm282, %v281
  %s287 = scalar_lea.vmem %s1, 140
  %288 = vst.msk [vmem:[%s287] sm:$0x4] %vm282, %v281
  %s289 = scalar_lea.vmem %s1, 203
  %290 = vst.msk [vmem:[%s289] sm:$0x8] %vm282, %v281
  %s291 = scalar_lea.vmem %s1, 266
  %292 = vst.msk [vmem:[%s291] sm:$0x10] %vm282, %v281
  %s293 = scalar_lea.vmem %s1, 329
  %294 = vst.msk [vmem:[%s293] sm:$0x20] %vm282, %v281
  %s295 = scalar_lea.vmem %s1, 392
  %296 = vst.msk [vmem:[%s295] sm:$0x40] %vm282, %v281
  %s297 = scalar_lea.vmem %s1, 455
  %298 = vst.msk [vmem:[%s297] sm:$0x80] %vm282, %v281
  %v299 = vld [vmem:[%s0] sm:$0xff]
  %300 = vrot.lane.b32.xlu0 %v299, 98
  %v301 = vpop.permute.xlu0 %300
  %vm302 = vcmask 15360
  %s303 = scalar_lea.vmem %s1, 15
  %304 = vst.msk [vmem:[%s303] sm:$0x1] %vm302, %v301
  %s305 = scalar_lea.vmem %s1, 78
  %306 = vst.msk [vmem:[%s305] sm:$0x2] %vm302, %v301
  %s307 = scalar_lea.vmem %s1, 141
  %308 = vst.msk [vmem:[%s307] sm:$0x4] %vm302, %v301
  %s309 = scalar_lea.vmem %s1, 204
  %310 = vst.msk [vmem:[%s309] sm:$0x8] %vm302, %v301
  %s311 = scalar_lea.vmem %s1, 267
  %312 = vst.msk [vmem:[%s311] sm:$0x10] %vm302, %v301
  %s313 = scalar_lea.vmem %s1, 330
  %314 = vst.msk [vmem:[%s313] sm:$0x20] %vm302, %v301
  %s315 = scalar_lea.vmem %s1, 393
  %316 = vst.msk [vmem:[%s315] sm:$0x40] %vm302, %v301
  %s317 = scalar_lea.vmem %s1, 456
  %318 = vst.msk [vmem:[%s317] sm:$0x80] %vm302, %v301
  %v319 = vld [vmem:[%s0] sm:$0xff]
  %320 = vrot.lane.b32.xlu0 %v319, 96
  %v321 = vpop.permute.xlu0 %320
  %vm322 = vcmask 15360
  %s323 = scalar_lea.vmem %s1, 16
  %324 = vst.msk [vmem:[%s323] sm:$0x1] %vm322, %v321
  %s325 = scalar_lea.vmem %s1, 79
  %326 = vst.msk [vmem:[%s325] sm:$0x2] %vm322, %v321
  %s327 = scalar_lea.vmem %s1, 142
  %328 = vst.msk [vmem:[%s327] sm:$0x4] %vm322, %v321
  %s329 = scalar_lea.vmem %s1, 205
  %330 = vst.msk [vmem:[%s329] sm:$0x8] %vm322, %v321
  %s331 = scalar_lea.vmem %s1, 268
  %332 = vst.msk [vmem:[%s331] sm:$0x10] %vm322, %v321
  %s333 = scalar_lea.vmem %s1, 331
  %334 = vst.msk [vmem:[%s333] sm:$0x20] %vm322, %v321
  %s335 = scalar_lea.vmem %s1, 394
  %336 = vst.msk [vmem:[%s335] sm:$0x40] %vm322, %v321
  %s337 = scalar_lea.vmem %s1, 457
  %338 = vst.msk [vmem:[%s337] sm:$0x80] %vm322, %v321
  %v339 = vld [vmem:[%s0] sm:$0xff]
  %340 = vrot.lane.b32.xlu0 %v339, 94
  %v341 = vpop.permute.xlu0 %340
  %vm342 = vcmask 15360
  %s343 = scalar_lea.vmem %s1, 17
  %344 = vst.msk [vmem:[%s343] sm:$0x1] %vm342, %v341
  %s345 = scalar_lea.vmem %s1, 80
  %346 = vst.msk [vmem:[%s345] sm:$0x2] %vm342, %v341
  %s347 = scalar_lea.vmem %s1, 143
  %348 = vst.msk [vmem:[%s347] sm:$0x4] %vm342, %v341
  %s349 = scalar_lea.vmem %s1, 206
  %350 = vst.msk [vmem:[%s349] sm:$0x8] %vm342, %v341
  %s351 = scalar_lea.vmem %s1, 269
  %352 = vst.msk [vmem:[%s351] sm:$0x10] %vm342, %v341
  %s353 = scalar_lea.vmem %s1, 332
  %354 = vst.msk [vmem:[%s353] sm:$0x20] %vm342, %v341
  %s355 = scalar_lea.vmem %s1, 395
  %356 = vst.msk [vmem:[%s355] sm:$0x40] %vm342, %v341
  %s357 = scalar_lea.vmem %s1, 458
  %358 = vst.msk [vmem:[%s357] sm:$0x80] %vm342, %v341
  %v359 = vld [vmem:[%s0] sm:$0xff]
  %360 = vrot.lane.b32.xlu0 %v359, 92
  %v361 = vpop.permute.xlu0 %360
  %vm362 = vcmask 15360
  %s363 = scalar_lea.vmem %s1, 18
  %364 = vst.msk [vmem:[%s363] sm:$0x1] %vm362, %v361
  %s365 = scalar_lea.vmem %s1, 81
  %366 = vst.msk [vmem:[%s365] sm:$0x2] %vm362, %v361
  %s367 = scalar_lea.vmem %s1, 144
  %368 = vst.msk [vmem:[%s367] sm:$0x4] %vm362, %v361
  %s369 = scalar_lea.vmem %s1, 207
  %370 = vst.msk [vmem:[%s369] sm:$0x8] %vm362, %v361
  %s371 = scalar_lea.vmem %s1, 270
  %372 = vst.msk [vmem:[%s371] sm:$0x10] %vm362, %v361
  %s373 = scalar_lea.vmem %s1, 333
  %374 = vst.msk [vmem:[%s373] sm:$0x20] %vm362, %v361
  %s375 = scalar_lea.vmem %s1, 396
  %376 = vst.msk [vmem:[%s375] sm:$0x40] %vm362, %v361
  %s377 = scalar_lea.vmem %s1, 459
  %378 = vst.msk [vmem:[%s377] sm:$0x80] %vm362, %v361
  %v379 = vld [vmem:[%s0] sm:$0xff]
  %380 = vrot.lane.b32.xlu0 %v379, 90
  %v381 = vpop.permute.xlu0 %380
  %vm382 = vcmask 15360
  %s383 = scalar_lea.vmem %s1, 19
  %384 = vst.msk [vmem:[%s383] sm:$0x1] %vm382, %v381
  %s385 = scalar_lea.vmem %s1, 82
  %386 = vst.msk [vmem:[%s385] sm:$0x2] %vm382, %v381
  %s387 = scalar_lea.vmem %s1, 145
  %388 = vst.msk [vmem:[%s387] sm:$0x4] %vm382, %v381
  %s389 = scalar_lea.vmem %s1, 208
  %390 = vst.msk [vmem:[%s389] sm:$0x8] %vm382, %v381
  %s391 = scalar_lea.vmem %s1, 271
  %392 = vst.msk [vmem:[%s391] sm:$0x10] %vm382, %v381
  %s393 = scalar_lea.vmem %s1, 334
  %394 = vst.msk [vmem:[%s393] sm:$0x20] %vm382, %v381
  %s395 = scalar_lea.vmem %s1, 397
  %396 = vst.msk [vmem:[%s395] sm:$0x40] %vm382, %v381
  %s397 = scalar_lea.vmem %s1, 460
  %398 = vst.msk [vmem:[%s397] sm:$0x80] %vm382, %v381
  %v399 = vld [vmem:[%s0] sm:$0xff]
  %400 = vrot.lane.b32.xlu0 %v399, 88
  %v401 = vpop.permute.xlu0 %400
  %vm402 = vcmask 15360
  %s403 = scalar_lea.vmem %s1, 20
  %404 = vst.msk [vmem:[%s403] sm:$0x1] %vm402, %v401
  %s405 = scalar_lea.vmem %s1, 83
  %406 = vst.msk [vmem:[%s405] sm:$0x2] %vm402, %v401
  %s407 = scalar_lea.vmem %s1, 146
  %408 = vst.msk [vmem:[%s407] sm:$0x4] %vm402, %v401
  %s409 = scalar_lea.vmem %s1, 209
  %410 = vst.msk [vmem:[%s409] sm:$0x8] %vm402, %v401
  %s411 = scalar_lea.vmem %s1, 272
  %412 = vst.msk [vmem:[%s411] sm:$0x10] %vm402, %v401
  %s413 = scalar_lea.vmem %s1, 335
  %414 = vst.msk [vmem:[%s413] sm:$0x20] %vm402, %v401
  %s415 = scalar_lea.vmem %s1, 398
  %416 = vst.msk [vmem:[%s415] sm:$0x40] %vm402, %v401
  %s417 = scalar_lea.vmem %s1, 461
  %418 = vst.msk [vmem:[%s417] sm:$0x80] %vm402, %v401
  %v419 = vld [vmem:[%s0] sm:$0xff]
  %420 = vrot.lane.b32.xlu0 %v419, 86
  %v421 = vpop.permute.xlu0 %420
  %vm422 = vcmask 15360
  %s423 = scalar_lea.vmem %s1, 21
  %424 = vst.msk [vmem:[%s423] sm:$0x1] %vm422, %v421
  %s425 = scalar_lea.vmem %s1, 84
  %426 = vst.msk [vmem:[%s425] sm:$0x2] %vm422, %v421
  %s427 = scalar_lea.vmem %s1, 147
  %428 = vst.msk [vmem:[%s427] sm:$0x4] %vm422, %v421
  %s429 = scalar_lea.vmem %s1, 210
  %430 = vst.msk [vmem:[%s429] sm:$0x8] %vm422, %v421
  %s431 = scalar_lea.vmem %s1, 273
  %432 = vst.msk [vmem:[%s431] sm:$0x10] %vm422, %v421
  %s433 = scalar_lea.vmem %s1, 336
  %434 = vst.msk [vmem:[%s433] sm:$0x20] %vm422, %v421
  %s435 = scalar_lea.vmem %s1, 399
  %436 = vst.msk [vmem:[%s435] sm:$0x40] %vm422, %v421
  %s437 = scalar_lea.vmem %s1, 462
  %438 = vst.msk [vmem:[%s437] sm:$0x80] %vm422, %v421
  %v439 = vld [vmem:[%s0] sm:$0xff]
  %440 = vrot.lane.b32.xlu0 %v439, 84
  %v441 = vpop.permute.xlu0 %440
  %vm442 = vcmask 15360
  %s443 = scalar_lea.vmem %s1, 22
  %444 = vst.msk [vmem:[%s443] sm:$0x1] %vm442, %v441
  %s445 = scalar_lea.vmem %s1, 85
  %446 = vst.msk [vmem:[%s445] sm:$0x2] %vm442, %v441
  %s447 = scalar_lea.vmem %s1, 148
  %448 = vst.msk [vmem:[%s447] sm:$0x4] %vm442, %v441
  %s449 = scalar_lea.vmem %s1, 211
  %450 = vst.msk [vmem:[%s449] sm:$0x8] %vm442, %v441
  %s451 = scalar_lea.vmem %s1, 274
  %452 = vst.msk [vmem:[%s451] sm:$0x10] %vm442, %v441
  %s453 = scalar_lea.vmem %s1, 337
  %454 = vst.msk [vmem:[%s453] sm:$0x20] %vm442, %v441
  %s455 = scalar_lea.vmem %s1, 400
  %456 = vst.msk [vmem:[%s455] sm:$0x40] %vm442, %v441
  %s457 = scalar_lea.vmem %s1, 463
  %458 = vst.msk [vmem:[%s457] sm:$0x80] %vm442, %v441
  %v459 = vld [vmem:[%s0] sm:$0xff]
  %460 = vrot.lane.b32.xlu0 %v459, 82
  %v461 = vpop.permute.xlu0 %460
  %vm462 = vcmask 15360
  %s463 = scalar_lea.vmem %s1, 23
  %464 = vst.msk [vmem:[%s463] sm:$0x1] %vm462, %v461
  %s465 = scalar_lea.vmem %s1, 86
  %466 = vst.msk [vmem:[%s465] sm:$0x2] %vm462, %v461
  %s467 = scalar_lea.vmem %s1, 149
  %468 = vst.msk [vmem:[%s467] sm:$0x4] %vm462, %v461
  %s469 = scalar_lea.vmem %s1, 212
  %470 = vst.msk [vmem:[%s469] sm:$0x8] %vm462, %v461
  %s471 = scalar_lea.vmem %s1, 275
  %472 = vst.msk [vmem:[%s471] sm:$0x10] %vm462, %v461
  %s473 = scalar_lea.vmem %s1, 338
  %474 = vst.msk [vmem:[%s473] sm:$0x20] %vm462, %v461
  %s475 = scalar_lea.vmem %s1, 401
  %476 = vst.msk [vmem:[%s475] sm:$0x40] %vm462, %v461
  %s477 = scalar_lea.vmem %s1, 464
  %478 = vst.msk [vmem:[%s477] sm:$0x80] %vm462, %v461
  %v479 = vld [vmem:[%s0] sm:$0xff]
  %480 = vrot.lane.b32.xlu0 %v479, 80
  %v481 = vpop.permute.xlu0 %480
  %vm482 = vcmask 15360
  %s483 = scalar_lea.vmem %s1, 24
  %484 = vst.msk [vmem:[%s483] sm:$0x1] %vm482, %v481
  %s485 = scalar_lea.vmem %s1, 87
  %486 = vst.msk [vmem:[%s485] sm:$0x2] %vm482, %v481
  %s487 = scalar_lea.vmem %s1, 150
  %488 = vst.msk [vmem:[%s487] sm:$0x4] %vm482, %v481
  %s489 = scalar_lea.vmem %s1, 213
  %490 = vst.msk [vmem:[%s489] sm:$0x8] %vm482, %v481
  %s491 = scalar_lea.vmem %s1, 276
  %492 = vst.msk [vmem:[%s491] sm:$0x10] %vm482, %v481
  %s493 = scalar_lea.vmem %s1, 339
  %494 = vst.msk [vmem:[%s493] sm:$0x20] %vm482, %v481
  %s495 = scalar_lea.vmem %s1, 402
  %496 = vst.msk [vmem:[%s495] sm:$0x40] %vm482, %v481
  %s497 = scalar_lea.vmem %s1, 465
  %498 = vst.msk [vmem:[%s497] sm:$0x80] %vm482, %v481
  %v499 = vld [vmem:[%s0] sm:$0xff]
  %500 = vrot.lane.b32.xlu0 %v499, 78
  %v501 = vpop.permute.xlu0 %500
  %vm502 = vcmask 15360
  %s503 = scalar_lea.vmem %s1, 25
  %504 = vst.msk [vmem:[%s503] sm:$0x1] %vm502, %v501
  %s505 = scalar_lea.vmem %s1, 88
  %506 = vst.msk [vmem:[%s505] sm:$0x2] %vm502, %v501
  %s507 = scalar_lea.vmem %s1, 151
  %508 = vst.msk [vmem:[%s507] sm:$0x4] %vm502, %v501
  %s509 = scalar_lea.vmem %s1, 214
  %510 = vst.msk [vmem:[%s509] sm:$0x8] %vm502, %v501
  %s511 = scalar_lea.vmem %s1, 277
  %512 = vst.msk [vmem:[%s511] sm:$0x10] %vm502, %v501
  %s513 = scalar_lea.vmem %s1, 340
  %514 = vst.msk [vmem:[%s513] sm:$0x20] %vm502, %v501
  %s515 = scalar_lea.vmem %s1, 403
  %516 = vst.msk [vmem:[%s515] sm:$0x40] %vm502, %v501
  %s517 = scalar_lea.vmem %s1, 466
  %518 = vst.msk [vmem:[%s517] sm:$0x80] %vm502, %v501
  %v519 = vld [vmem:[%s0] sm:$0xff]
  %520 = vrot.lane.b32.xlu0 %v519, 76
  %v521 = vpop.permute.xlu0 %520
  %vm522 = vcmask 15360
  %s523 = scalar_lea.vmem %s1, 26
  %524 = vst.msk [vmem:[%s523] sm:$0x1] %vm522, %v521
  %s525 = scalar_lea.vmem %s1, 89
  %526 = vst.msk [vmem:[%s525] sm:$0x2] %vm522, %v521
  %s527 = scalar_lea.vmem %s1, 152
  %528 = vst.msk [vmem:[%s527] sm:$0x4] %vm522, %v521
  %s529 = scalar_lea.vmem %s1, 215
  %530 = vst.msk [vmem:[%s529] sm:$0x8] %vm522, %v521
  %s531 = scalar_lea.vmem %s1, 278
  %532 = vst.msk [vmem:[%s531] sm:$0x10] %vm522, %v521
  %s533 = scalar_lea.vmem %s1, 341
  %534 = vst.msk [vmem:[%s533] sm:$0x20] %vm522, %v521
  %s535 = scalar_lea.vmem %s1, 404
  %536 = vst.msk [vmem:[%s535] sm:$0x40] %vm522, %v521
  %s537 = scalar_lea.vmem %s1, 467
  %538 = vst.msk [vmem:[%s537] sm:$0x80] %vm522, %v521
  %v539 = vld [vmem:[%s0] sm:$0xff]
  %540 = vrot.lane.b32.xlu0 %v539, 74
  %v541 = vpop.permute.xlu0 %540
  %vm542 = vcmask 15360
  %s543 = scalar_lea.vmem %s1, 27
  %544 = vst.msk [vmem:[%s543] sm:$0x1] %vm542, %v541
  %s545 = scalar_lea.vmem %s1, 90
  %546 = vst.msk [vmem:[%s545] sm:$0x2] %vm542, %v541
  %s547 = scalar_lea.vmem %s1, 153
  %548 = vst.msk [vmem:[%s547] sm:$0x4] %vm542, %v541
  %s549 = scalar_lea.vmem %s1, 216
  %550 = vst.msk [vmem:[%s549] sm:$0x8] %vm542, %v541
  %s551 = scalar_lea.vmem %s1, 279
  %552 = vst.msk [vmem:[%s551] sm:$0x10] %vm542, %v541
  %s553 = scalar_lea.vmem %s1, 342
  %554 = vst.msk [vmem:[%s553] sm:$0x20] %vm542, %v541
  %s555 = scalar_lea.vmem %s1, 405
  %556 = vst.msk [vmem:[%s555] sm:$0x40] %vm542, %v541
  %s557 = scalar_lea.vmem %s1, 468
  %558 = vst.msk [vmem:[%s557] sm:$0x80] %vm542, %v541
  %v559 = vld [vmem:[%s0] sm:$0xff]
  %560 = vrot.lane.b32.xlu0 %v559, 72
  %v561 = vpop.permute.xlu0 %560
  %vm562 = vcmask 15360
  %s563 = scalar_lea.vmem %s1, 28
  %564 = vst.msk [vmem:[%s563] sm:$0x1] %vm562, %v561
  %s565 = scalar_lea.vmem %s1, 91
  %566 = vst.msk [vmem:[%s565] sm:$0x2] %vm562, %v561
  %s567 = scalar_lea.vmem %s1, 154
  %568 = vst.msk [vmem:[%s567] sm:$0x4] %vm562, %v561
  %s569 = scalar_lea.vmem %s1, 217
  %570 = vst.msk [vmem:[%s569] sm:$0x8] %vm562, %v561
  %s571 = scalar_lea.vmem %s1, 280
  %572 = vst.msk [vmem:[%s571] sm:$0x10] %vm562, %v561
  %s573 = scalar_lea.vmem %s1, 343
  %574 = vst.msk [vmem:[%s573] sm:$0x20] %vm562, %v561
  %s575 = scalar_lea.vmem %s1, 406
  %576 = vst.msk [vmem:[%s575] sm:$0x40] %vm562, %v561
  %s577 = scalar_lea.vmem %s1, 469
  %578 = vst.msk [vmem:[%s577] sm:$0x80] %vm562, %v561
  %v579 = vld [vmem:[%s0] sm:$0xff]
  %580 = vrot.lane.b32.xlu0 %v579, 70
  %v581 = vpop.permute.xlu0 %580
  %vm582 = vcmask 15360
  %s583 = scalar_lea.vmem %s1, 29
  %584 = vst.msk [vmem:[%s583] sm:$0x1] %vm582, %v581
  %s585 = scalar_lea.vmem %s1, 92
  %586 = vst.msk [vmem:[%s585] sm:$0x2] %vm582, %v581
  %s587 = scalar_lea.vmem %s1, 155
  %588 = vst.msk [vmem:[%s587] sm:$0x4] %vm582, %v581
  %s589 = scalar_lea.vmem %s1, 218
  %590 = vst.msk [vmem:[%s589] sm:$0x8] %vm582, %v581
  %s591 = scalar_lea.vmem %s1, 281
  %592 = vst.msk [vmem:[%s591] sm:$0x10] %vm582, %v581
  %s593 = scalar_lea.vmem %s1, 344
  %594 = vst.msk [vmem:[%s593] sm:$0x20] %vm582, %v581
  %s595 = scalar_lea.vmem %s1, 407
  %596 = vst.msk [vmem:[%s595] sm:$0x40] %vm582, %v581
  %s597 = scalar_lea.vmem %s1, 470
  %598 = vst.msk [vmem:[%s597] sm:$0x80] %vm582, %v581
  %v599 = vld [vmem:[%s0] sm:$0xff]
  %600 = vrot.lane.b32.xlu0 %v599, 68
  %v601 = vpop.permute.xlu0 %600
  %vm602 = vcmask 15360
  %s603 = scalar_lea.vmem %s1, 30
  %604 = vst.msk [vmem:[%s603] sm:$0x1] %vm602, %v601
  %s605 = scalar_lea.vmem %s1, 93
  %606 = vst.msk [vmem:[%s605] sm:$0x2] %vm602, %v601
  %s607 = scalar_lea.vmem %s1, 156
  %608 = vst.msk [vmem:[%s607] sm:$0x4] %vm602, %v601
  %s609 = scalar_lea.vmem %s1, 219
  %610 = vst.msk [vmem:[%s609] sm:$0x8] %vm602, %v601
  %s611 = scalar_lea.vmem %s1, 282
  %612 = vst.msk [vmem:[%s611] sm:$0x10] %vm602, %v601
  %s613 = scalar_lea.vmem %s1, 345
  %614 = vst.msk [vmem:[%s613] sm:$0x20] %vm602, %v601
  %s615 = scalar_lea.vmem %s1, 408
  %616 = vst.msk [vmem:[%s615] sm:$0x40] %vm602, %v601
  %s617 = scalar_lea.vmem %s1, 471
  %618 = vst.msk [vmem:[%s617] sm:$0x80] %vm602, %v601
  %v619 = vld [vmem:[%s0] sm:$0xff]
  %620 = vrot.lane.b32.xlu0 %v619, 66
  %v621 = vpop.permute.xlu0 %620
  %vm622 = vcmask 15360
  %s623 = scalar_lea.vmem %s1, 31
  %624 = vst.msk [vmem:[%s623] sm:$0x1] %vm622, %v621
  %s625 = scalar_lea.vmem %s1, 94
  %626 = vst.msk [vmem:[%s625] sm:$0x2] %vm622, %v621
  %s627 = scalar_lea.vmem %s1, 157
  %628 = vst.msk [vmem:[%s627] sm:$0x4] %vm622, %v621
  %s629 = scalar_lea.vmem %s1, 220
  %630 = vst.msk [vmem:[%s629] sm:$0x8] %vm622, %v621
  %s631 = scalar_lea.vmem %s1, 283
  %632 = vst.msk [vmem:[%s631] sm:$0x10] %vm622, %v621
  %s633 = scalar_lea.vmem %s1, 346
  %634 = vst.msk [vmem:[%s633] sm:$0x20] %vm622, %v621
  %s635 = scalar_lea.vmem %s1, 409
  %636 = vst.msk [vmem:[%s635] sm:$0x40] %vm622, %v621
  %s637 = scalar_lea.vmem %s1, 472
  %638 = vst.msk [vmem:[%s637] sm:$0x80] %vm622, %v621
  %v639 = vld [vmem:[%s0] sm:$0xff]
  %640 = vrot.lane.b32.xlu0 %v639, 64
  %v641 = vpop.permute.xlu0 %640
  %vm642 = vcmask 15360
  %s643 = scalar_lea.vmem %s1, 32
  %644 = vst.msk [vmem:[%s643] sm:$0x1] %vm642, %v641
  %s645 = scalar_lea.vmem %s1, 95
  %646 = vst.msk [vmem:[%s645] sm:$0x2] %vm642, %v641
  %s647 = scalar_lea.vmem %s1, 158
  %648 = vst.msk [vmem:[%s647] sm:$0x4] %vm642, %v641
  %s649 = scalar_lea.vmem %s1, 221
  %650 = vst.msk [vmem:[%s649] sm:$0x8] %vm642, %v641
  %s651 = scalar_lea.vmem %s1, 284
  %652 = vst.msk [vmem:[%s651] sm:$0x10] %vm642, %v641
  %s653 = scalar_lea.vmem %s1, 347
  %654 = vst.msk [vmem:[%s653] sm:$0x20] %vm642, %v641
  %s655 = scalar_lea.vmem %s1, 410
  %656 = vst.msk [vmem:[%s655] sm:$0x40] %vm642, %v641
  %s657 = scalar_lea.vmem %s1, 473
  %658 = vst.msk [vmem:[%s657] sm:$0x80] %vm642, %v641
  %v659 = vld [vmem:[%s0] sm:$0xff]
  %660 = vrot.lane.b32.xlu0 %v659, 62
  %v661 = vpop.permute.xlu0 %660
  %vm662 = vcmask 15360
  %s663 = scalar_lea.vmem %s1, 33
  %664 = vst.msk [vmem:[%s663] sm:$0x1] %vm662, %v661
  %s665 = scalar_lea.vmem %s1, 96
  %666 = vst.msk [vmem:[%s665] sm:$0x2] %vm662, %v661
  %s667 = scalar_lea.vmem %s1, 159
  %668 = vst.msk [vmem:[%s667] sm:$0x4] %vm662, %v661
  %s669 = scalar_lea.vmem %s1, 222
  %670 = vst.msk [vmem:[%s669] sm:$0x8] %vm662, %v661
  %s671 = scalar_lea.vmem %s1, 285
  %672 = vst.msk [vmem:[%s671] sm:$0x10] %vm662, %v661
  %s673 = scalar_lea.vmem %s1, 348
  %674 = vst.msk [vmem:[%s673] sm:$0x20] %vm662, %v661
  %s675 = scalar_lea.vmem %s1, 411
  %676 = vst.msk [vmem:[%s675] sm:$0x40] %vm662, %v661
  %s677 = scalar_lea.vmem %s1, 474
  %678 = vst.msk [vmem:[%s677] sm:$0x80] %vm662, %v661
  %v679 = vld [vmem:[%s0] sm:$0xff]
  %680 = vrot.lane.b32.xlu0 %v679, 60
  %v681 = vpop.permute.xlu0 %680
  %vm682 = vcmask 15360
  %s683 = scalar_lea.vmem %s1, 34
  %684 = vst.msk [vmem:[%s683] sm:$0x1] %vm682, %v681
  %s685 = scalar_lea.vmem %s1, 97
  %686 = vst.msk [vmem:[%s685] sm:$0x2] %vm682, %v681
  %s687 = scalar_lea.vmem %s1, 160
  %688 = vst.msk [vmem:[%s687] sm:$0x4] %vm682, %v681
  %s689 = scalar_lea.vmem %s1, 223
  %690 = vst.msk [vmem:[%s689] sm:$0x8] %vm682, %v681
  %s691 = scalar_lea.vmem %s1, 286
  %692 = vst.msk [vmem:[%s691] sm:$0x10] %vm682, %v681
  %s693 = scalar_lea.vmem %s1, 349
  %694 = vst.msk [vmem:[%s693] sm:$0x20] %vm682, %v681
  %s695 = scalar_lea.vmem %s1, 412
  %696 = vst.msk [vmem:[%s695] sm:$0x40] %vm682, %v681
  %s697 = scalar_lea.vmem %s1, 475
  %698 = vst.msk [vmem:[%s697] sm:$0x80] %vm682, %v681
  %v699 = vld [vmem:[%s0] sm:$0xff]
  %700 = vrot.lane.b32.xlu0 %v699, 58
  %v701 = vpop.permute.xlu0 %700
  %vm702 = vcmask 15360
  %s703 = scalar_lea.vmem %s1, 35
  %704 = vst.msk [vmem:[%s703] sm:$0x1] %vm702, %v701
  %s705 = scalar_lea.vmem %s1, 98
  %706 = vst.msk [vmem:[%s705] sm:$0x2] %vm702, %v701
  %s707 = scalar_lea.vmem %s1, 161
  %708 = vst.msk [vmem:[%s707] sm:$0x4] %vm702, %v701
  %s709 = scalar_lea.vmem %s1, 224
  %710 = vst.msk [vmem:[%s709] sm:$0x8] %vm702, %v701
  %s711 = scalar_lea.vmem %s1, 287
  %712 = vst.msk [vmem:[%s711] sm:$0x10] %vm702, %v701
  %s713 = scalar_lea.vmem %s1, 350
  %714 = vst.msk [vmem:[%s713] sm:$0x20] %vm702, %v701
  %s715 = scalar_lea.vmem %s1, 413
  %716 = vst.msk [vmem:[%s715] sm:$0x40] %vm702, %v701
  %s717 = scalar_lea.vmem %s1, 476
  %718 = vst.msk [vmem:[%s717] sm:$0x80] %vm702, %v701
  %v719 = vld [vmem:[%s0] sm:$0xff]
  %720 = vrot.lane.b32.xlu0 %v719, 56
  %v721 = vpop.permute.xlu0 %720
  %vm722 = vcmask 15360
  %s723 = scalar_lea.vmem %s1, 36
  %724 = vst.msk [vmem:[%s723] sm:$0x1] %vm722, %v721
  %s725 = scalar_lea.vmem %s1, 99
  %726 = vst.msk [vmem:[%s725] sm:$0x2] %vm722, %v721
  %s727 = scalar_lea.vmem %s1, 162
  %728 = vst.msk [vmem:[%s727] sm:$0x4] %vm722, %v721
  %s729 = scalar_lea.vmem %s1, 225
  %730 = vst.msk [vmem:[%s729] sm:$0x8] %vm722, %v721
  %s731 = scalar_lea.vmem %s1, 288
  %732 = vst.msk [vmem:[%s731] sm:$0x10] %vm722, %v721
  %s733 = scalar_lea.vmem %s1, 351
  %734 = vst.msk [vmem:[%s733] sm:$0x20] %vm722, %v721
  %s735 = scalar_lea.vmem %s1, 414
  %736 = vst.msk [vmem:[%s735] sm:$0x40] %vm722, %v721
  %s737 = scalar_lea.vmem %s1, 477
  %738 = vst.msk [vmem:[%s737] sm:$0x80] %vm722, %v721
  %v739 = vld [vmem:[%s0] sm:$0xff]
  %740 = vrot.lane.b32.xlu0 %v739, 54
  %v741 = vpop.permute.xlu0 %740
  %vm742 = vcmask 15360
  %s743 = scalar_lea.vmem %s1, 37
  %744 = vst.msk [vmem:[%s743] sm:$0x1] %vm742, %v741
  %s745 = scalar_lea.vmem %s1, 100
  %746 = vst.msk [vmem:[%s745] sm:$0x2] %vm742, %v741
  %s747 = scalar_lea.vmem %s1, 163
  %748 = vst.msk [vmem:[%s747] sm:$0x4] %vm742, %v741
  %s749 = scalar_lea.vmem %s1, 226
  %750 = vst.msk [vmem:[%s749] sm:$0x8] %vm742, %v741
  %s751 = scalar_lea.vmem %s1, 289
  %752 = vst.msk [vmem:[%s751] sm:$0x10] %vm742, %v741
  %s753 = scalar_lea.vmem %s1, 352
  %754 = vst.msk [vmem:[%s753] sm:$0x20] %vm742, %v741
  %s755 = scalar_lea.vmem %s1, 415
  %756 = vst.msk [vmem:[%s755] sm:$0x40] %vm742, %v741
  %s757 = scalar_lea.vmem %s1, 478
  %758 = vst.msk [vmem:[%s757] sm:$0x80] %vm742, %v741
  %v759 = vld [vmem:[%s0] sm:$0xff]
  %760 = vrot.lane.b32.xlu0 %v759, 52
  %v761 = vpop.permute.xlu0 %760
  %vm762 = vcmask 15360
  %s763 = scalar_lea.vmem %s1, 38
  %764 = vst.msk [vmem:[%s763] sm:$0x1] %vm762, %v761
  %s765 = scalar_lea.vmem %s1, 101
  %766 = vst.msk [vmem:[%s765] sm:$0x2] %vm762, %v761
  %s767 = scalar_lea.vmem %s1, 164
  %768 = vst.msk [vmem:[%s767] sm:$0x4] %vm762, %v761
  %s769 = scalar_lea.vmem %s1, 227
  %770 = vst.msk [vmem:[%s769] sm:$0x8] %vm762, %v761
  %s771 = scalar_lea.vmem %s1, 290
  %772 = vst.msk [vmem:[%s771] sm:$0x10] %vm762, %v761
  %s773 = scalar_lea.vmem %s1, 353
  %774 = vst.msk [vmem:[%s773] sm:$0x20] %vm762, %v761
  %s775 = scalar_lea.vmem %s1, 416
  %776 = vst.msk [vmem:[%s775] sm:$0x40] %vm762, %v761
  %s777 = scalar_lea.vmem %s1, 479
  %778 = vst.msk [vmem:[%s777] sm:$0x80] %vm762, %v761
  %v779 = vld [vmem:[%s0] sm:$0xff]
  %780 = vrot.lane.b32.xlu0 %v779, 50
  %v781 = vpop.permute.xlu0 %780
  %vm782 = vcmask 15360
  %s783 = scalar_lea.vmem %s1, 39
  %784 = vst.msk [vmem:[%s783] sm:$0x1] %vm782, %v781
  %s785 = scalar_lea.vmem %s1, 102
  %786 = vst.msk [vmem:[%s785] sm:$0x2] %vm782, %v781
  %s787 = scalar_lea.vmem %s1, 165
  %788 = vst.msk [vmem:[%s787] sm:$0x4] %vm782, %v781
  %s789 = scalar_lea.vmem %s1, 228
  %790 = vst.msk [vmem:[%s789] sm:$0x8] %vm782, %v781
  %s791 = scalar_lea.vmem %s1, 291
  %792 = vst.msk [vmem:[%s791] sm:$0x10] %vm782, %v781
  %s793 = scalar_lea.vmem %s1, 354
  %794 = vst.msk [vmem:[%s793] sm:$0x20] %vm782, %v781
  %s795 = scalar_lea.vmem %s1, 417
  %796 = vst.msk [vmem:[%s795] sm:$0x40] %vm782, %v781
  %s797 = scalar_lea.vmem %s1, 480
  %798 = vst.msk [vmem:[%s797] sm:$0x80] %vm782, %v781
  %v799 = vld [vmem:[%s0] sm:$0xff]
  %800 = vrot.lane.b32.xlu0 %v799, 48
  %v801 = vpop.permute.xlu0 %800
  %vm802 = vcmask 15360
  %s803 = scalar_lea.vmem %s1, 40
  %804 = vst.msk [vmem:[%s803] sm:$0x1] %vm802, %v801
  %s805 = scalar_lea.vmem %s1, 103
  %806 = vst.msk [vmem:[%s805] sm:$0x2] %vm802, %v801
  %s807 = scalar_lea.vmem %s1, 166
  %808 = vst.msk [vmem:[%s807] sm:$0x4] %vm802, %v801
  %s809 = scalar_lea.vmem %s1, 229
  %810 = vst.msk [vmem:[%s809] sm:$0x8] %vm802, %v801
  %s811 = scalar_lea.vmem %s1, 292
  %812 = vst.msk [vmem:[%s811] sm:$0x10] %vm802, %v801
  %s813 = scalar_lea.vmem %s1, 355
  %814 = vst.msk [vmem:[%s813] sm:$0x20] %vm802, %v801
  %s815 = scalar_lea.vmem %s1, 418
  %816 = vst.msk [vmem:[%s815] sm:$0x40] %vm802, %v801
  %s817 = scalar_lea.vmem %s1, 481
  %818 = vst.msk [vmem:[%s817] sm:$0x80] %vm802, %v801
  %v819 = vld [vmem:[%s0] sm:$0xff]
  %820 = vrot.lane.b32.xlu0 %v819, 46
  %v821 = vpop.permute.xlu0 %820
  %vm822 = vcmask 15360
  %s823 = scalar_lea.vmem %s1, 41
  %824 = vst.msk [vmem:[%s823] sm:$0x1] %vm822, %v821
  %s825 = scalar_lea.vmem %s1, 104
  %826 = vst.msk [vmem:[%s825] sm:$0x2] %vm822, %v821
  %s827 = scalar_lea.vmem %s1, 167
  %828 = vst.msk [vmem:[%s827] sm:$0x4] %vm822, %v821
  %s829 = scalar_lea.vmem %s1, 230
  %830 = vst.msk [vmem:[%s829] sm:$0x8] %vm822, %v821
  %s831 = scalar_lea.vmem %s1, 293
  %832 = vst.msk [vmem:[%s831] sm:$0x10] %vm822, %v821
  %s833 = scalar_lea.vmem %s1, 356
  %834 = vst.msk [vmem:[%s833] sm:$0x20] %vm822, %v821
  %s835 = scalar_lea.vmem %s1, 419
  %836 = vst.msk [vmem:[%s835] sm:$0x40] %vm822, %v821
  %s837 = scalar_lea.vmem %s1, 482
  %838 = vst.msk [vmem:[%s837] sm:$0x80] %vm822, %v821
  %v839 = vld [vmem:[%s0] sm:$0xff]
  %840 = vrot.lane.b32.xlu0 %v839, 44
  %v841 = vpop.permute.xlu0 %840
  %vm842 = vcmask 15360
  %s843 = scalar_lea.vmem %s1, 42
  %844 = vst.msk [vmem:[%s843] sm:$0x1] %vm842, %v841
  %s845 = scalar_lea.vmem %s1, 105
  %846 = vst.msk [vmem:[%s845] sm:$0x2] %vm842, %v841
  %s847 = scalar_lea.vmem %s1, 168
  %848 = vst.msk [vmem:[%s847] sm:$0x4] %vm842, %v841
  %s849 = scalar_lea.vmem %s1, 231
  %850 = vst.msk [vmem:[%s849] sm:$0x8] %vm842, %v841
  %s851 = scalar_lea.vmem %s1, 294
  %852 = vst.msk [vmem:[%s851] sm:$0x10] %vm842, %v841
  %s853 = scalar_lea.vmem %s1, 357
  %854 = vst.msk [vmem:[%s853] sm:$0x20] %vm842, %v841
  %s855 = scalar_lea.vmem %s1, 420
  %856 = vst.msk [vmem:[%s855] sm:$0x40] %vm842, %v841
  %s857 = scalar_lea.vmem %s1, 483
  %858 = vst.msk [vmem:[%s857] sm:$0x80] %vm842, %v841
  %v859 = vld [vmem:[%s0] sm:$0xff]
  %860 = vrot.lane.b32.xlu0 %v859, 42
  %v861 = vpop.permute.xlu0 %860
  %vm862 = vcmask 15360
  %s863 = scalar_lea.vmem %s1, 43
  %864 = vst.msk [vmem:[%s863] sm:$0x1] %vm862, %v861
  %s865 = scalar_lea.vmem %s1, 106
  %866 = vst.msk [vmem:[%s865] sm:$0x2] %vm862, %v861
  %s867 = scalar_lea.vmem %s1, 169
  %868 = vst.msk [vmem:[%s867] sm:$0x4] %vm862, %v861
  %s869 = scalar_lea.vmem %s1, 232
  %870 = vst.msk [vmem:[%s869] sm:$0x8] %vm862, %v861
  %s871 = scalar_lea.vmem %s1, 295
  %872 = vst.msk [vmem:[%s871] sm:$0x10] %vm862, %v861
  %s873 = scalar_lea.vmem %s1, 358
  %874 = vst.msk [vmem:[%s873] sm:$0x20] %vm862, %v861
  %s875 = scalar_lea.vmem %s1, 421
  %876 = vst.msk [vmem:[%s875] sm:$0x40] %vm862, %v861
  %s877 = scalar_lea.vmem %s1, 484
  %878 = vst.msk [vmem:[%s877] sm:$0x80] %vm862, %v861
  %v879 = vld [vmem:[%s0] sm:$0xff]
  %880 = vrot.lane.b32.xlu0 %v879, 40
  %v881 = vpop.permute.xlu0 %880
  %vm882 = vcmask 15360
  %s883 = scalar_lea.vmem %s1, 44
  %884 = vst.msk [vmem:[%s883] sm:$0x1] %vm882, %v881
  %s885 = scalar_lea.vmem %s1, 107
  %886 = vst.msk [vmem:[%s885] sm:$0x2] %vm882, %v881
  %s887 = scalar_lea.vmem %s1, 170
  %888 = vst.msk [vmem:[%s887] sm:$0x4] %vm882, %v881
  %s889 = scalar_lea.vmem %s1, 233
  %890 = vst.msk [vmem:[%s889] sm:$0x8] %vm882, %v881
  %s891 = scalar_lea.vmem %s1, 296
  %892 = vst.msk [vmem:[%s891] sm:$0x10] %vm882, %v881
  %s893 = scalar_lea.vmem %s1, 359
  %894 = vst.msk [vmem:[%s893] sm:$0x20] %vm882, %v881
  %s895 = scalar_lea.vmem %s1, 422
  %896 = vst.msk [vmem:[%s895] sm:$0x40] %vm882, %v881
  %s897 = scalar_lea.vmem %s1, 485
  %898 = vst.msk [vmem:[%s897] sm:$0x80] %vm882, %v881
  %v899 = vld [vmem:[%s0] sm:$0xff]
  %900 = vrot.lane.b32.xlu0 %v899, 38
  %v901 = vpop.permute.xlu0 %900
  %vm902 = vcmask 15360
  %s903 = scalar_lea.vmem %s1, 45
  %904 = vst.msk [vmem:[%s903] sm:$0x1] %vm902, %v901
  %s905 = scalar_lea.vmem %s1, 108
  %906 = vst.msk [vmem:[%s905] sm:$0x2] %vm902, %v901
  %s907 = scalar_lea.vmem %s1, 171
  %908 = vst.msk [vmem:[%s907] sm:$0x4] %vm902, %v901
  %s909 = scalar_lea.vmem %s1, 234
  %910 = vst.msk [vmem:[%s909] sm:$0x8] %vm902, %v901
  %s911 = scalar_lea.vmem %s1, 297
  %912 = vst.msk [vmem:[%s911] sm:$0x10] %vm902, %v901
  %s913 = scalar_lea.vmem %s1, 360
  %914 = vst.msk [vmem:[%s913] sm:$0x20] %vm902, %v901
  %s915 = scalar_lea.vmem %s1, 423
  %916 = vst.msk [vmem:[%s915] sm:$0x40] %vm902, %v901
  %s917 = scalar_lea.vmem %s1, 486
  %918 = vst.msk [vmem:[%s917] sm:$0x80] %vm902, %v901
  %v919 = vld [vmem:[%s0] sm:$0xff]
  %920 = vrot.lane.b32.xlu0 %v919, 36
  %v921 = vpop.permute.xlu0 %920
  %vm922 = vcmask 15360
  %s923 = scalar_lea.vmem %s1, 46
  %924 = vst.msk [vmem:[%s923] sm:$0x1] %vm922, %v921
  %s925 = scalar_lea.vmem %s1, 109
  %926 = vst.msk [vmem:[%s925] sm:$0x2] %vm922, %v921
  %s927 = scalar_lea.vmem %s1, 172
  %928 = vst.msk [vmem:[%s927] sm:$0x4] %vm922, %v921
  %s929 = scalar_lea.vmem %s1, 235
  %930 = vst.msk [vmem:[%s929] sm:$0x8] %vm922, %v921
  %s931 = scalar_lea.vmem %s1, 298
  %932 = vst.msk [vmem:[%s931] sm:$0x10] %vm922, %v921
  %s933 = scalar_lea.vmem %s1, 361
  %934 = vst.msk [vmem:[%s933] sm:$0x20] %vm922, %v921
  %s935 = scalar_lea.vmem %s1, 424
  %936 = vst.msk [vmem:[%s935] sm:$0x40] %vm922, %v921
  %s937 = scalar_lea.vmem %s1, 487
  %938 = vst.msk [vmem:[%s937] sm:$0x80] %vm922, %v921
  %v939 = vld [vmem:[%s0] sm:$0xff]
  %940 = vrot.lane.b32.xlu0 %v939, 34
  %v941 = vpop.permute.xlu0 %940
  %vm942 = vcmask 15360
  %s943 = scalar_lea.vmem %s1, 47
  %944 = vst.msk [vmem:[%s943] sm:$0x1] %vm942, %v941
  %s945 = scalar_lea.vmem %s1, 110
  %946 = vst.msk [vmem:[%s945] sm:$0x2] %vm942, %v941
  %s947 = scalar_lea.vmem %s1, 173
  %948 = vst.msk [vmem:[%s947] sm:$0x4] %vm942, %v941
  %s949 = scalar_lea.vmem %s1, 236
  %950 = vst.msk [vmem:[%s949] sm:$0x8] %vm942, %v941
  %s951 = scalar_lea.vmem %s1, 299
  %952 = vst.msk [vmem:[%s951] sm:$0x10] %vm942, %v941
  %s953 = scalar_lea.vmem %s1, 362
  %954 = vst.msk [vmem:[%s953] sm:$0x20] %vm942, %v941
  %s955 = scalar_lea.vmem %s1, 425
  %956 = vst.msk [vmem:[%s955] sm:$0x40] %vm942, %v941
  %s957 = scalar_lea.vmem %s1, 488
  %958 = vst.msk [vmem:[%s957] sm:$0x80] %vm942, %v941
  %v959 = vld [vmem:[%s0] sm:$0xff]
  %960 = vrot.lane.b32.xlu0 %v959, 32
  %v961 = vpop.permute.xlu0 %960
  %vm962 = vcmask 15360
  %s963 = scalar_lea.vmem %s1, 48
  %964 = vst.msk [vmem:[%s963] sm:$0x1] %vm962, %v961
  %s965 = scalar_lea.vmem %s1, 111
  %966 = vst.msk [vmem:[%s965] sm:$0x2] %vm962, %v961
  %s967 = scalar_lea.vmem %s1, 174
  %968 = vst.msk [vmem:[%s967] sm:$0x4] %vm962, %v961
  %s969 = scalar_lea.vmem %s1, 237
  %970 = vst.msk [vmem:[%s969] sm:$0x8] %vm962, %v961
  %s971 = scalar_lea.vmem %s1, 300
  %972 = vst.msk [vmem:[%s971] sm:$0x10] %vm962, %v961
  %s973 = scalar_lea.vmem %s1, 363
  %974 = vst.msk [vmem:[%s973] sm:$0x20] %vm962, %v961
  %s975 = scalar_lea.vmem %s1, 426
  %976 = vst.msk [vmem:[%s975] sm:$0x40] %vm962, %v961
  %s977 = scalar_lea.vmem %s1, 489
  %978 = vst.msk [vmem:[%s977] sm:$0x80] %vm962, %v961
  %v979 = vld [vmem:[%s0] sm:$0xff]
  %980 = vrot.lane.b32.xlu0 %v979, 30
  %v981 = vpop.permute.xlu0 %980
  %vm982 = vcmask 15360
  %s983 = scalar_lea.vmem %s1, 49
  %984 = vst.msk [vmem:[%s983] sm:$0x1] %vm982, %v981
  %s985 = scalar_lea.vmem %s1, 112
  %986 = vst.msk [vmem:[%s985] sm:$0x2] %vm982, %v981
  %s987 = scalar_lea.vmem %s1, 175
  %988 = vst.msk [vmem:[%s987] sm:$0x4] %vm982, %v981
  %s989 = scalar_lea.vmem %s1, 238
  %990 = vst.msk [vmem:[%s989] sm:$0x8] %vm982, %v981
  %s991 = scalar_lea.vmem %s1, 301
  %992 = vst.msk [vmem:[%s991] sm:$0x10] %vm982, %v981
  %s993 = scalar_lea.vmem %s1, 364
  %994 = vst.msk [vmem:[%s993] sm:$0x20] %vm982, %v981
  %s995 = scalar_lea.vmem %s1, 427
  %996 = vst.msk [vmem:[%s995] sm:$0x40] %vm982, %v981
  %s997 = scalar_lea.vmem %s1, 490
  %998 = vst.msk [vmem:[%s997] sm:$0x80] %vm982, %v981
  %v999 = vld [vmem:[%s0] sm:$0xff]
  %1000 = vrot.lane.b32.xlu0 %v999, 28
  %v1001 = vpop.permute.xlu0 %1000
  %vm1002 = vcmask 15360
  %s1003 = scalar_lea.vmem %s1, 50
  %1004 = vst.msk [vmem:[%s1003] sm:$0x1] %vm1002, %v1001
  %s1005 = scalar_lea.vmem %s1, 113
  %1006 = vst.msk [vmem:[%s1005] sm:$0x2] %vm1002, %v1001
  %s1007 = scalar_lea.vmem %s1, 176
  %1008 = vst.msk [vmem:[%s1007] sm:$0x4] %vm1002, %v1001
  %s1009 = scalar_lea.vmem %s1, 239
  %1010 = vst.msk [vmem:[%s1009] sm:$0x8] %vm1002, %v1001
  %s1011 = scalar_lea.vmem %s1, 302
  %1012 = vst.msk [vmem:[%s1011] sm:$0x10] %vm1002, %v1001
  %s1013 = scalar_lea.vmem %s1, 365
  %1014 = vst.msk [vmem:[%s1013] sm:$0x20] %vm1002, %v1001
  %s1015 = scalar_lea.vmem %s1, 428
  %1016 = vst.msk [vmem:[%s1015] sm:$0x40] %vm1002, %v1001
  %s1017 = scalar_lea.vmem %s1, 491
  %1018 = vst.msk [vmem:[%s1017] sm:$0x80] %vm1002, %v1001
  %v1019 = vld [vmem:[%s0] sm:$0xff]
  %1020 = vrot.lane.b32.xlu0 %v1019, 26
  %v1021 = vpop.permute.xlu0 %1020
  %vm1022 = vcmask 15360
  %s1023 = scalar_lea.vmem %s1, 51
  %1024 = vst.msk [vmem:[%s1023] sm:$0x1] %vm1022, %v1021
  %s1025 = scalar_lea.vmem %s1, 114
  %1026 = vst.msk [vmem:[%s1025] sm:$0x2] %vm1022, %v1021
  %s1027 = scalar_lea.vmem %s1, 177
  %1028 = vst.msk [vmem:[%s1027] sm:$0x4] %vm1022, %v1021
  %s1029 = scalar_lea.vmem %s1, 240
  %1030 = vst.msk [vmem:[%s1029] sm:$0x8] %vm1022, %v1021
  %s1031 = scalar_lea.vmem %s1, 303
  %1032 = vst.msk [vmem:[%s1031] sm:$0x10] %vm1022, %v1021
  %s1033 = scalar_lea.vmem %s1, 366
  %1034 = vst.msk [vmem:[%s1033] sm:$0x20] %vm1022, %v1021
  %s1035 = scalar_lea.vmem %s1, 429
  %1036 = vst.msk [vmem:[%s1035] sm:$0x40] %vm1022, %v1021
  %s1037 = scalar_lea.vmem %s1, 492
  %1038 = vst.msk [vmem:[%s1037] sm:$0x80] %vm1022, %v1021
  %v1039 = vld [vmem:[%s0] sm:$0xff]
  %1040 = vrot.lane.b32.xlu0 %v1039, 24
  %v1041 = vpop.permute.xlu0 %1040
  %vm1042 = vcmask 15360
  %s1043 = scalar_lea.vmem %s1, 52
  %1044 = vst.msk [vmem:[%s1043] sm:$0x1] %vm1042, %v1041
  %s1045 = scalar_lea.vmem %s1, 115
  %1046 = vst.msk [vmem:[%s1045] sm:$0x2] %vm1042, %v1041
  %s1047 = scalar_lea.vmem %s1, 178
  %1048 = vst.msk [vmem:[%s1047] sm:$0x4] %vm1042, %v1041
  %s1049 = scalar_lea.vmem %s1, 241
  %1050 = vst.msk [vmem:[%s1049] sm:$0x8] %vm1042, %v1041
  %s1051 = scalar_lea.vmem %s1, 304
  %1052 = vst.msk [vmem:[%s1051] sm:$0x10] %vm1042, %v1041
  %s1053 = scalar_lea.vmem %s1, 367
  %1054 = vst.msk [vmem:[%s1053] sm:$0x20] %vm1042, %v1041
  %s1055 = scalar_lea.vmem %s1, 430
  %1056 = vst.msk [vmem:[%s1055] sm:$0x40] %vm1042, %v1041
  %s1057 = scalar_lea.vmem %s1, 493
  %1058 = vst.msk [vmem:[%s1057] sm:$0x80] %vm1042, %v1041
  %v1059 = vld [vmem:[%s0] sm:$0xff]
  %1060 = vrot.lane.b32.xlu0 %v1059, 22
  %v1061 = vpop.permute.xlu0 %1060
  %vm1062 = vcmask 15360
  %s1063 = scalar_lea.vmem %s1, 53
  %1064 = vst.msk [vmem:[%s1063] sm:$0x1] %vm1062, %v1061
  %s1065 = scalar_lea.vmem %s1, 116
  %1066 = vst.msk [vmem:[%s1065] sm:$0x2] %vm1062, %v1061
  %s1067 = scalar_lea.vmem %s1, 179
  %1068 = vst.msk [vmem:[%s1067] sm:$0x4] %vm1062, %v1061
  %s1069 = scalar_lea.vmem %s1, 242
  %1070 = vst.msk [vmem:[%s1069] sm:$0x8] %vm1062, %v1061
  %s1071 = scalar_lea.vmem %s1, 305
  %1072 = vst.msk [vmem:[%s1071] sm:$0x10] %vm1062, %v1061
  %s1073 = scalar_lea.vmem %s1, 368
  %1074 = vst.msk [vmem:[%s1073] sm:$0x20] %vm1062, %v1061
  %s1075 = scalar_lea.vmem %s1, 431
  %1076 = vst.msk [vmem:[%s1075] sm:$0x40] %vm1062, %v1061
  %s1077 = scalar_lea.vmem %s1, 494
  %1078 = vst.msk [vmem:[%s1077] sm:$0x80] %vm1062, %v1061
  %v1079 = vld [vmem:[%s0] sm:$0xff]
  %1080 = vrot.lane.b32.xlu0 %v1079, 20
  %v1081 = vpop.permute.xlu0 %1080
  %vm1082 = vcmask 15360
  %s1083 = scalar_lea.vmem %s1, 54
  %1084 = vst.msk [vmem:[%s1083] sm:$0x1] %vm1082, %v1081
  %s1085 = scalar_lea.vmem %s1, 117
  %1086 = vst.msk [vmem:[%s1085] sm:$0x2] %vm1082, %v1081
  %s1087 = scalar_lea.vmem %s1, 180
  %1088 = vst.msk [vmem:[%s1087] sm:$0x4] %vm1082, %v1081
  %s1089 = scalar_lea.vmem %s1, 243
  %1090 = vst.msk [vmem:[%s1089] sm:$0x8] %vm1082, %v1081
  %s1091 = scalar_lea.vmem %s1, 306
  %1092 = vst.msk [vmem:[%s1091] sm:$0x10] %vm1082, %v1081
  %s1093 = scalar_lea.vmem %s1, 369
  %1094 = vst.msk [vmem:[%s1093] sm:$0x20] %vm1082, %v1081
  %s1095 = scalar_lea.vmem %s1, 432
  %1096 = vst.msk [vmem:[%s1095] sm:$0x40] %vm1082, %v1081
  %s1097 = scalar_lea.vmem %s1, 495
  %1098 = vst.msk [vmem:[%s1097] sm:$0x80] %vm1082, %v1081
  %v1099 = vld [vmem:[%s0] sm:$0xff]
  %1100 = vrot.lane.b32.xlu0 %v1099, 18
  %v1101 = vpop.permute.xlu0 %1100
  %vm1102 = vcmask 15360
  %s1103 = scalar_lea.vmem %s1, 55
  %1104 = vst.msk [vmem:[%s1103] sm:$0x1] %vm1102, %v1101
  %s1105 = scalar_lea.vmem %s1, 118
  %1106 = vst.msk [vmem:[%s1105] sm:$0x2] %vm1102, %v1101
  %s1107 = scalar_lea.vmem %s1, 181
  %1108 = vst.msk [vmem:[%s1107] sm:$0x4] %vm1102, %v1101
  %s1109 = scalar_lea.vmem %s1, 244
  %1110 = vst.msk [vmem:[%s1109] sm:$0x8] %vm1102, %v1101
  %s1111 = scalar_lea.vmem %s1, 307
  %1112 = vst.msk [vmem:[%s1111] sm:$0x10] %vm1102, %v1101
  %s1113 = scalar_lea.vmem %s1, 370
  %1114 = vst.msk [vmem:[%s1113] sm:$0x20] %vm1102, %v1101
  %s1115 = scalar_lea.vmem %s1, 433
  %1116 = vst.msk [vmem:[%s1115] sm:$0x40] %vm1102, %v1101
  %s1117 = scalar_lea.vmem %s1, 496
  %1118 = vst.msk [vmem:[%s1117] sm:$0x80] %vm1102, %v1101
  %v1119 = vld [vmem:[%s0] sm:$0xff]
  %1120 = vrot.lane.b32.xlu0 %v1119, 16
  %v1121 = vpop.permute.xlu0 %1120
  %vm1122 = vcmask 15360
  %s1123 = scalar_lea.vmem %s1, 56
  %1124 = vst.msk [vmem:[%s1123] sm:$0x1] %vm1122, %v1121
  %s1125 = scalar_lea.vmem %s1, 119
  %1126 = vst.msk [vmem:[%s1125] sm:$0x2] %vm1122, %v1121
  %s1127 = scalar_lea.vmem %s1, 182
  %1128 = vst.msk [vmem:[%s1127] sm:$0x4] %vm1122, %v1121
  %s1129 = scalar_lea.vmem %s1, 245
  %1130 = vst.msk [vmem:[%s1129] sm:$0x8] %vm1122, %v1121
  %s1131 = scalar_lea.vmem %s1, 308
  %1132 = vst.msk [vmem:[%s1131] sm:$0x10] %vm1122, %v1121
  %s1133 = scalar_lea.vmem %s1, 371
  %1134 = vst.msk [vmem:[%s1133] sm:$0x20] %vm1122, %v1121
  %s1135 = scalar_lea.vmem %s1, 434
  %1136 = vst.msk [vmem:[%s1135] sm:$0x40] %vm1122, %v1121
  %s1137 = scalar_lea.vmem %s1, 497
  %1138 = vst.msk [vmem:[%s1137] sm:$0x80] %vm1122, %v1121
  %v1139 = vld [vmem:[%s0] sm:$0xff]
  %1140 = vrot.lane.b32.xlu0 %v1139, 14
  %v1141 = vpop.permute.xlu0 %1140
  %vm1142 = vcmask 15360
  %s1143 = scalar_lea.vmem %s1, 57
  %1144 = vst.msk [vmem:[%s1143] sm:$0x1] %vm1142, %v1141
  %s1145 = scalar_lea.vmem %s1, 120
  %1146 = vst.msk [vmem:[%s1145] sm:$0x2] %vm1142, %v1141
  %s1147 = scalar_lea.vmem %s1, 183
  %1148 = vst.msk [vmem:[%s1147] sm:$0x4] %vm1142, %v1141
  %s1149 = scalar_lea.vmem %s1, 246
  %1150 = vst.msk [vmem:[%s1149] sm:$0x8] %vm1142, %v1141
  %s1151 = scalar_lea.vmem %s1, 309
  %1152 = vst.msk [vmem:[%s1151] sm:$0x10] %vm1142, %v1141
  %s1153 = scalar_lea.vmem %s1, 372
  %1154 = vst.msk [vmem:[%s1153] sm:$0x20] %vm1142, %v1141
  %s1155 = scalar_lea.vmem %s1, 435
  %1156 = vst.msk [vmem:[%s1155] sm:$0x40] %vm1142, %v1141
  %s1157 = scalar_lea.vmem %s1, 498
  %1158 = vst.msk [vmem:[%s1157] sm:$0x80] %vm1142, %v1141
  %v1159 = vld [vmem:[%s0] sm:$0xff]
  %1160 = vrot.lane.b32.xlu0 %v1159, 12
  %v1161 = vpop.permute.xlu0 %1160
  %vm1162 = vcmask 15360
  %s1163 = scalar_lea.vmem %s1, 58
  %1164 = vst.msk [vmem:[%s1163] sm:$0x1] %vm1162, %v1161
  %s1165 = scalar_lea.vmem %s1, 121
  %1166 = vst.msk [vmem:[%s1165] sm:$0x2] %vm1162, %v1161
  %s1167 = scalar_lea.vmem %s1, 184
  %1168 = vst.msk [vmem:[%s1167] sm:$0x4] %vm1162, %v1161
  %s1169 = scalar_lea.vmem %s1, 247
  %1170 = vst.msk [vmem:[%s1169] sm:$0x8] %vm1162, %v1161
  %s1171 = scalar_lea.vmem %s1, 310
  %1172 = vst.msk [vmem:[%s1171] sm:$0x10] %vm1162, %v1161
  %s1173 = scalar_lea.vmem %s1, 373
  %1174 = vst.msk [vmem:[%s1173] sm:$0x20] %vm1162, %v1161
  %s1175 = scalar_lea.vmem %s1, 436
  %1176 = vst.msk [vmem:[%s1175] sm:$0x40] %vm1162, %v1161
  %s1177 = scalar_lea.vmem %s1, 499
  %1178 = vst.msk [vmem:[%s1177] sm:$0x80] %vm1162, %v1161
  %v1179 = vld [vmem:[%s0] sm:$0xff]
  %1180 = vrot.lane.b32.xlu0 %v1179, 10
  %v1181 = vpop.permute.xlu0 %1180
  %vm1182 = vcmask 15360
  %s1183 = scalar_lea.vmem %s1, 59
  %1184 = vst.msk [vmem:[%s1183] sm:$0x1] %vm1182, %v1181
  %s1185 = scalar_lea.vmem %s1, 122
  %1186 = vst.msk [vmem:[%s1185] sm:$0x2] %vm1182, %v1181
  %s1187 = scalar_lea.vmem %s1, 185
  %1188 = vst.msk [vmem:[%s1187] sm:$0x4] %vm1182, %v1181
  %s1189 = scalar_lea.vmem %s1, 248
  %1190 = vst.msk [vmem:[%s1189] sm:$0x8] %vm1182, %v1181
  %s1191 = scalar_lea.vmem %s1, 311
  %1192 = vst.msk [vmem:[%s1191] sm:$0x10] %vm1182, %v1181
  %s1193 = scalar_lea.vmem %s1, 374
  %1194 = vst.msk [vmem:[%s1193] sm:$0x20] %vm1182, %v1181
  %s1195 = scalar_lea.vmem %s1, 437
  %1196 = vst.msk [vmem:[%s1195] sm:$0x40] %vm1182, %v1181
  %s1197 = scalar_lea.vmem %s1, 500
  %1198 = vst.msk [vmem:[%s1197] sm:$0x80] %vm1182, %v1181
  %v1199 = vld [vmem:[%s0] sm:$0xff]
  %1200 = vrot.lane.b32.xlu0 %v1199, 8
  %v1201 = vpop.permute.xlu0 %1200
  %vm1202 = vcmask 15360
  %s1203 = scalar_lea.vmem %s1, 60
  %1204 = vst.msk [vmem:[%s1203] sm:$0x1] %vm1202, %v1201
  %s1205 = scalar_lea.vmem %s1, 123
  %1206 = vst.msk [vmem:[%s1205] sm:$0x2] %vm1202, %v1201
  %s1207 = scalar_lea.vmem %s1, 186
  %1208 = vst.msk [vmem:[%s1207] sm:$0x4] %vm1202, %v1201
  %s1209 = scalar_lea.vmem %s1, 249
  %1210 = vst.msk [vmem:[%s1209] sm:$0x8] %vm1202, %v1201
  %s1211 = scalar_lea.vmem %s1, 312
  %1212 = vst.msk [vmem:[%s1211] sm:$0x10] %vm1202, %v1201
  %s1213 = scalar_lea.vmem %s1, 375
  %1214 = vst.msk [vmem:[%s1213] sm:$0x20] %vm1202, %v1201
  %s1215 = scalar_lea.vmem %s1, 438
  %1216 = vst.msk [vmem:[%s1215] sm:$0x40] %vm1202, %v1201
  %s1217 = scalar_lea.vmem %s1, 501
  %1218 = vst.msk [vmem:[%s1217] sm:$0x80] %vm1202, %v1201
  %v1219 = vld [vmem:[%s0] sm:$0xff]
  %1220 = vrot.lane.b32.xlu0 %v1219, 6
  %v1221 = vpop.permute.xlu0 %1220
  %vm1222 = vcmask 15360
  %s1223 = scalar_lea.vmem %s1, 61
  %1224 = vst.msk [vmem:[%s1223] sm:$0x1] %vm1222, %v1221
  %s1225 = scalar_lea.vmem %s1, 124
  %1226 = vst.msk [vmem:[%s1225] sm:$0x2] %vm1222, %v1221
  %s1227 = scalar_lea.vmem %s1, 187
  %1228 = vst.msk [vmem:[%s1227] sm:$0x4] %vm1222, %v1221
  %s1229 = scalar_lea.vmem %s1, 250
  %1230 = vst.msk [vmem:[%s1229] sm:$0x8] %vm1222, %v1221
  %s1231 = scalar_lea.vmem %s1, 313
  %1232 = vst.msk [vmem:[%s1231] sm:$0x10] %vm1222, %v1221
  %s1233 = scalar_lea.vmem %s1, 376
  %1234 = vst.msk [vmem:[%s1233] sm:$0x20] %vm1222, %v1221
  %s1235 = scalar_lea.vmem %s1, 439
  %1236 = vst.msk [vmem:[%s1235] sm:$0x40] %vm1222, %v1221
  %s1237 = scalar_lea.vmem %s1, 502
  %1238 = vst.msk [vmem:[%s1237] sm:$0x80] %vm1222, %v1221
  %v1239 = vld [vmem:[%s0] sm:$0xff]
  %1240 = vrot.lane.b32.xlu0 %v1239, 4
  %v1241 = vpop.permute.xlu0 %1240
  %vm1242 = vcmask 15360
  %s1243 = scalar_lea.vmem %s1, 62
  %1244 = vst.msk [vmem:[%s1243] sm:$0x1] %vm1242, %v1241
  %s1245 = scalar_lea.vmem %s1, 125
  %1246 = vst.msk [vmem:[%s1245] sm:$0x2] %vm1242, %v1241
  %s1247 = scalar_lea.vmem %s1, 188
  %1248 = vst.msk [vmem:[%s1247] sm:$0x4] %vm1242, %v1241
  %s1249 = scalar_lea.vmem %s1, 251
  %1250 = vst.msk [vmem:[%s1249] sm:$0x8] %vm1242, %v1241
  %s1251 = scalar_lea.vmem %s1, 314
  %1252 = vst.msk [vmem:[%s1251] sm:$0x10] %vm1242, %v1241
  %s1253 = scalar_lea.vmem %s1, 377
  %1254 = vst.msk [vmem:[%s1253] sm:$0x20] %vm1242, %v1241
  %s1255 = scalar_lea.vmem %s1, 440
  %1256 = vst.msk [vmem:[%s1255] sm:$0x40] %vm1242, %v1241
  %s1257 = scalar_lea.vmem %s1, 503
  %1258 = vst.msk [vmem:[%s1257] sm:$0x80] %vm1242, %v1241
  %v1259 = vld [vmem:[%s0] sm:$0xff]
  %1260 = vrot.lane.b32.xlu0 %v1259, 2
  %v1261 = vpop.permute.xlu0 %1260
  %vm1262 = vcmask 15360
  %s1263 = scalar_lea.vmem %s1, 63
  %1264 = vst.msk [vmem:[%s1263] sm:$0x1] %vm1262, %v1261
  %s1265 = scalar_lea.vmem %s1, 126
  %1266 = vst.msk [vmem:[%s1265] sm:$0x2] %vm1262, %v1261
  %s1267 = scalar_lea.vmem %s1, 189
  %1268 = vst.msk [vmem:[%s1267] sm:$0x4] %vm1262, %v1261
  %s1269 = scalar_lea.vmem %s1, 252
  %1270 = vst.msk [vmem:[%s1269] sm:$0x8] %vm1262, %v1261
  %s1271 = scalar_lea.vmem %s1, 315
  %1272 = vst.msk [vmem:[%s1271] sm:$0x10] %vm1262, %v1261
  %s1273 = scalar_lea.vmem %s1, 378
  %1274 = vst.msk [vmem:[%s1273] sm:$0x20] %vm1262, %v1261
  %s1275 = scalar_lea.vmem %s1, 441
  %1276 = vst.msk [vmem:[%s1275] sm:$0x40] %vm1262, %v1261
  %s1277 = scalar_lea.vmem %s1, 504
  %1278 = vst.msk [vmem:[%s1277] sm:$0x80] %vm1262, %v1261

// kernel: custom-call.2
$region0: #{custom-call.2}
  %s0 = inlined_call_operand.vmem [shape: f32[32,32], index: 0, kind: input, shape index: {}]
  %s1 = inlined_call_operand.vmem [shape: f32[32,32], index: 1, kind: input, shape index: {}]
  %s2 = inlined_call_operand.hbm [shape: c64[32,32], index: 2, kind: output, shape index: {}]
  %s3 = scalar_lea.hbm %s2, 32
  $region1: #{custom-call.2} parent=0
    #allocation0 [shape = 's32[1]{0}', space=sflag, size = 0x4, scoped, tag = 'scoped memory for custom-call.2']
    %4 = vsyncpa [#allocation0], 0
    %s6 = sshll.u32 %s0, 4
    %s7 = int_to_ptr.vmem [resolvable:$true] %s6
    %s8 = sshll.u32 %s2, 4
    %s9 = int_to_ptr.hbm [resolvable:$true] %s8
    %11 = dma.vmem_to_hbm [thread:$0]  %s7, 512, %s9, [#allocation0]
    %13 = dma.done [#allocation0], 512
    %14 = vsyncpa [#allocation0], 1
  $region2: #{custom-call.2} parent=0
    #allocation1 [shape = 's32[1]{0}', space=sflag, size = 0x4, scoped, tag = 'scoped memory for custom-call.2']
    %15 = vsyncpa [#allocation1], 0
    %s17 = sshll.u32 %s1, 4
    %s18 = int_to_ptr.vmem [resolvable:$true] %s17
    %s19 = sshll.u32 %s3, 4
    %s20 = int_to_ptr.hbm [resolvable:$true] %s19
    %22 = dma.vmem_to_hbm [thread:$0]  %s18, 512, %s20, [#allocation1]
    %24 = dma.done [#allocation1], 512
    %25 = vsyncpa [#allocation1], 1

// kernel: learned_reg_iteration_forward.2
$region0: #{learned_reg_iteration_forward.2}
  #allocation0 [shape = 'u32[]', space=smem, size = 0x4, offset = 0x4, fixed_abs, tag = 'smem constant byte address 0x4 - core index']
  #allocation1 [shape = 'u32[72,128]{1,0:T(1,128)}', space=vmem, size = 0x9000, scoped, tag = 'internal scratch']
  %s0 = inlined_call_operand.vmem [shape: f32[2,1024], index: 0, kind: input, shape index: {}]
  %s1 = inlined_call_operand.hbm [shape: f32[8,1024], index: 1, kind: input, shape index: {}]
  %s2 = inlined_call_operand.hbm [shape: bf16[1024,1024], index: 2, kind: input, shape index: {}]
  %s3 = inlined_call_operand.hbm [shape: f32[8,512], index: 3, kind: input, shape index: {}]
  %s4 = inlined_call_operand.vmem [shape: f32[8,512], index: 4, kind: output, shape index: {}]
  %s5 = sld [smem:[#allocation0]]
  $region65: #{learned_reg_iteration_forward.2} parent=0
    _
  %s7 = ssub.s32 1, %s5
  %s8 = scalar_select 0, %s7, %s5
  $region1: #{learned_reg_iteration_forward.2} parent=0
    #allocation2 [shape = 'u8[32768]{0}', space=vmem, size = 0x8000, scoped, tag = 'input window, operand 1']
    #allocation3 [shape = 's32[2]{0}', space=sflag, size = 0x8, scoped, tag = 'scoped memory for learned_reg_iteration_forward.2']
    #allocation4 [shape = 'u8[524288]{0}', space=vmem, size = 0x80000, scoped, tag = 'input window, operand 2']
    #allocation5 [shape = 's32[2]{0}', space=sflag, size = 0x8, scoped, tag = 'scoped memory for learned_reg_iteration_forward.2']
    #allocation6 [shape = 'u8[8192]{0}', space=vmem, size = 0x2000, scoped, tag = 'input window, operand 3']
    %9 = vsyncpa [#allocation3], 0
    %s10 = scalar_lea.sflag [#allocation3], 1
    %11 = vsyncpa %s10, 0
    %12 = vsyncpa [#allocation5], 0
    %s13 = scalar_lea.sflag [#allocation5], 1
    %14 = vsyncpa %s13, 0
    loop: start=0, step=1, limit=10
    $region2: #{learned_reg_iteration_forward.2} parent=1 // loop_pre_header
      _
    $region3: #{learned_reg_iteration_forward.2} parent=1 // loop_header
      %s16 = sphi 0, %s20
      %p17 = scmp.ge.s32.totalorder %s16, 10
      %s23 = sphi 0, %s35
      %s24 = sphi 0, %s31
      %s25 = sphi 0, %s23
      %s26 = sphi 0, %s24
      %s27 = sphi 0, %s25
      %s28 = sphi 0, %s26
      %s38 = sphi 0, %s40
      %s41 = sphi 0, %s38
      %s42 = sphi 0, %s41
      %s58 = sphi 0, %s42
      %s64 = sphi 0, %s66
      %s67 = sphi 0, %s64
      %s68 = sphi 0, %s67
      %s84 = sphi 0, %s68
      %s92 = sphi 0, %s94
      %s95 = sphi 0, %s92
      %s96 = sphi 0, %s95
      %s112 = sphi 0, %s96
      %s118 = sphi 0, %s120
      %s121 = sphi 0, %s118
      %s122 = sphi 0, %s121
      %s138 = sphi 0, %s122
      %s144 = sphi 0, %s146
      %s147 = sphi 0, %s144
      %s148 = sphi 0, %s147
      %s164 = sphi 0, %s148
    $region4: #{learned_reg_iteration_forward.2} parent=1 // loop_header_branch
      %19 = sbr.rel (%p17) target = $region8
    $region5: #{learned_reg_iteration_forward.2} parent=1 // loop_body
      %s21 = ssub.s32 %s16, 1
      %s22 = ssub.s32 %s16, 2
      %s29 = sadd.s32 1, %s24
      %p30 = scmp.ge.s32.totalorder %s29, 2
      %s31 = scalar_select %p30, 0, %s29
      %s32 = sadd.s32 1, %s23
      %s33 = scalar_select %p30, %s32, %s23
      %p34 = scmp.ge.s32.totalorder %s33, 4
      %s35 = scalar_select %p34, 0, %s33
      %s36 = ssub.s32 %s24, %s31
      %p37 = scmp.eq.s32.totalorder %s36, 0
      %s39 = sadd.s32 %s38, 1
      %s40 = scalar_select %p37, %s38, %s39
      %p43 = pneg %p37
      %p44 = scmp.eq.s32.totalorder %s16, 7
      %p45 = por %p43, %p44
      %p46 = scmp.ne.s32.totalorder %s38, %s41
      %p47 = scmp.eq.s32.totalorder %s16, 0
      %p48 = por %p46, %p47
      %p49 = scmp.ne.s32.totalorder %s38, %s41
      %p50 = scmp.eq.s32.totalorder %s21, 7
      %p51 = por %p49, %p50
      %p52 = scmp.ne.s32.totalorder %s41, %s42
      %p53 = scmp.eq.s32.totalorder %s21, 0
      %p54 = por %p52, %p53
      %p55 = scmp.ne.s32.totalorder %s41, %s42
      %p56 = scmp.eq.s32.totalorder %s22, 7
      %p57 = por %p55, %p56
      %p59 = scmp.ne.s32.totalorder %s42, %s58
      %p60 = scmp.eq.s32.totalorder %s22, 0
      %p61 = por %p59, %p60
      %s62 = ssub.s32 %s24, %s31
      %p63 = scmp.eq.s32.totalorder %s62, 0
      %s65 = sadd.s32 %s64, 1
      %s66 = scalar_select %p63, %s64, %s65
      %p69 = pneg %p63
      %p70 = scmp.eq.s32.totalorder %s16, 7
      %p71 = por %p69, %p70
      %p72 = scmp.ne.s32.totalorder %s64, %s67
      %p73 = scmp.eq.s32.totalorder %s16, 0
      %p74 = por %p72, %p73
      %p75 = scmp.ne.s32.totalorder %s64, %s67
      %p76 = scmp.eq.s32.totalorder %s21, 7
      %p77 = por %p75, %p76
      %p78 = scmp.ne.s32.totalorder %s67, %s68
      %p79 = scmp.eq.s32.totalorder %s21, 0
      %p80 = por %p78, %p79
      %p81 = scmp.ne.s32.totalorder %s67, %s68
      %p82 = scmp.eq.s32.totalorder %s22, 7
      %p83 = por %p81, %p82
      %p85 = scmp.ne.s32.totalorder %s68, %s84
      %p86 = scmp.eq.s32.totalorder %s22, 0
      %p87 = por %p85, %p86
      %s88 = ssub.s32 %s24, %s31
      %s89 = ssub.s32 %s23, %s35
      %s90 = sor.u32 %s88, %s89
      %p91 = scmp.eq.s32.totalorder %s90, 0
      %s93 = sadd.s32 %s92, 1
      %s94 = scalar_select %p91, %s92, %s93
      %p97 = pneg %p91
      %p98 = scmp.eq.s32.totalorder %s16, 7
      %p99 = por %p97, %p98
      %p100 = scmp.ne.s32.totalorder %s92, %s95
      %p101 = scmp.eq.s32.totalorder %s16, 0
      %p102 = por %p100, %p101
      %p103 = scmp.ne.s32.totalorder %s92, %s95
      %p104 = scmp.eq.s32.totalorder %s21, 7
      %p105 = por %p103, %p104
      %p106 = scmp.ne.s32.totalorder %s95, %s96
      %p107 = scmp.eq.s32.totalorder %s21, 0
      %p108 = por %p106, %p107
      %p109 = scmp.ne.s32.totalorder %s95, %s96
      %p110 = scmp.eq.s32.totalorder %s22, 7
      %p111 = por %p109, %p110
      %p113 = scmp.ne.s32.totalorder %s96, %s112
      %p114 = scmp.eq.s32.totalorder %s22, 0
      %p115 = por %p113, %p114
      %s116 = ssub.s32 %s23, %s35
      %p117 = scmp.eq.s32.totalorder %s116, 0
      %s119 = sadd.s32 %s118, 1
      %s120 = scalar_select %p117, %s118, %s119
      %p123 = pneg %p117
      %p124 = scmp.eq.s32.totalorder %s16, 7
      %p125 = por %p123, %p124
      %p126 = scmp.ne.s32.totalorder %s118, %s121
      %p127 = scmp.eq.s32.totalorder %s16, 0
      %p128 = por %p126, %p127
      %p129 = scmp.ne.s32.totalorder %s118, %s121
      %p130 = scmp.eq.s32.totalorder %s21, 7
      %p131 = por %p129, %p130
      %p132 = scmp.ne.s32.totalorder %s121, %s122
      %p133 = scmp.eq.s32.totalorder %s21, 0
      %p134 = por %p132, %p133
      %p135 = scmp.ne.s32.totalorder %s121, %s122
      %p136 = scmp.eq.s32.totalorder %s22, 7
      %p137 = por %p135, %p136
      %p139 = scmp.ne.s32.totalorder %s122, %s138
      %p140 = scmp.eq.s32.totalorder %s22, 0
      %p141 = por %p139, %p140
      %s142 = ssub.s32 %s23, %s35
      %p143 = scmp.eq.s32.totalorder %s142, 0
      %s145 = sadd.s32 %s144, 1
      %s146 = scalar_select %p143, %s144, %s145
      %p149 = pneg %p143
      %p150 = scmp.eq.s32.totalorder %s16, 7
      %p151 = por %p149, %p150
      %p152 = scmp.ne.s32.totalorder %s144, %s147
      %p153 = scmp.eq.s32.totalorder %s16, 0
      %p154 = por %p152, %p153
      %p155 = scmp.ne.s32.totalorder %s144, %s147
      %p156 = scmp.eq.s32.totalorder %s21, 7
      %p157 = por %p155, %p156
      %p158 = scmp.ne.s32.totalorder %s147, %s148
      %p159 = scmp.eq.s32.totalorder %s21, 0
      %p160 = por %p158, %p159
      %p161 = scmp.ne.s32.totalorder %s147, %s148
      %p162 = scmp.eq.s32.totalorder %s22, 7
      %p163 = por %p161, %p162
      %p165 = scmp.ne.s32.totalorder %s148, %s164
      %p166 = scmp.eq.s32.totalorder %s22, 0
      %p167 = por %p165, %p166
      %p168 = scmp.le.s32.totalorder 1, %s16
      %p169 = scmp.lt.s32.totalorder %s16, 9
      %p170 = pnand %p168, %p169
      %p171 = pneg %p170
      // Predicated region
      $region9: #{learned_reg_iteration_forward.2} parent=5 // pred_check
        _
      $region10: #{learned_reg_iteration_forward.2} parent=5 // pred_check_branch
        %173 = sbr.rel (%p170) target = $region12
      $region11: #{learned_reg_iteration_forward.2} parent=5 // pred_region
        %s174 = ssub.s32 %s16, 1
      $region12: #{learned_reg_iteration_forward.2} parent=5 // pred_fallthru
        _
      %p175 = scmp.lt.s32.totalorder %s16, 8
      // Predicated region
      $region13: #{learned_reg_iteration_forward.2} parent=5 // pred_check
        %p176 = pneg %p175
      $region14: #{learned_reg_iteration_forward.2} parent=5 // pred_check_branch
        %178 = sbr.rel (%p176) target = $region16
      $region15: #{learned_reg_iteration_forward.2} parent=5 // pred_region
        // Predicated region
        $region17: #{learned_reg_iteration_forward.2} parent=15 // pred_check
          %p179 = pneg %p48
        $region18: #{learned_reg_iteration_forward.2} parent=15 // pred_check_branch
          %181 = sbr.rel (%p179) target = $region20
        $region19: #{learned_reg_iteration_forward.2} parent=15 // pred_region
          %s182 = smul.u32 4, %s24
          %p183 = scmp.lt.s32.totalorder %s182, 7
          %s184 = scalar_select %p183, %s182, 7
          %s185 = smul.addr %s184, 2
          %s186 = scalar_lea.vmem %s0, %s185
          %s187 = smul.u32 4, %s24
        $region20: #{learned_reg_iteration_forward.2} parent=15 // pred_fallthru
          _
        // Predicated region
        $region21: #{learned_reg_iteration_forward.2} parent=15 // pred_check
          %p188 = pneg %p74
        $region22: #{learned_reg_iteration_forward.2} parent=15 // pred_check_branch
          %190 = sbr.rel (%p188) target = $region24
        $region23: #{learned_reg_iteration_forward.2} parent=15 // pred_region
          %s191 = sand.u32 %s64, 1
          %s192 = scalar_lea.sflag [#allocation3], %s191
          %s193 = sand.u32 %s64, 1
          %s194 = smul.addr %s193, 32
          %s195 = scalar_lea.vmem [#allocation2], %s194
          %s196 = smul.u32 4, %s24
          %198 = vsyncadd %s192, 0
          %s199 = smul.addr %s196, 8
          %s200 = scalar_lea.hbm %s1, %s199
          %s202 = sshll.u32 %s200, 4
          %s203 = int_to_ptr.hbm [resolvable:$true] %s202
          %s204 = sshll.u32 %s195, 4
          %s205 = int_to_ptr.vmem [resolvable:$true] %s204
          %207 = dma.hbm_to_vmem [thread:$0]  %s203, 512, %s205, %s192
        $region24: #{learned_reg_iteration_forward.2} parent=15 // pred_fallthru
          _
        // Predicated region
        $region25: #{learned_reg_iteration_forward.2} parent=15 // pred_check
          %p208 = pneg %p102
        $region26: #{learned_reg_iteration_forward.2} parent=15 // pred_check_branch
          %210 = sbr.rel (%p208) target = $region28
        $region27: #{learned_reg_iteration_forward.2} parent=15 // pred_region
          %s211 = sand.u32 %s16, 1
          %s212 = scalar_lea.sflag [#allocation5], %s211
          %s213 = sand.u32 %s92, 1
          %s214 = smul.addr %s213, 512
          %s215 = scalar_lea.vmem [#allocation4], %s214
          %s216 = smul.u32 64, %s24
          %s217 = smul.u32 2, %s23
          %219 = vsyncadd %s212, 0
          %s220 = smul.addr %s216, 8
          %s221 = sadd.s32 %s217, %s220
          %s222 = smul.addr %s221, 4
          %s223 = scalar_lea.hbm %s2, %s222
          %s224 = sshll.u32 %s223, 4
          %s225 = int_to_ptr.hbm [resolvable:$true] %s224
          %s226 = sshll.u32 %s215, 4
          %s227 = int_to_ptr.vmem [resolvable:$true] %s226
          %232 = dma.hbm_to_vmem [thread:$0]  %s225, 8192, %s227, %s212, 512, 128, 8
        $region28: #{learned_reg_iteration_forward.2} parent=15 // pred_fallthru
          _
        // Predicated region
        $region29: #{learned_reg_iteration_forward.2} parent=15 // pred_check
          %p233 = pneg %p128
        $region30: #{learned_reg_iteration_forward.2} parent=15 // pred_check_branch
          %235 = sbr.rel (%p233) target = $region32
        $region31: #{learned_reg_iteration_forward.2} parent=15 // pred_region
          %s236 = sand.u32 %s16, 1
          %s237 = scalar_lea.sflag [#allocation5], %s236
          %s238 = sand.u32 %s118, 1
          %s239 = smul.addr %s238, 8
          %s240 = scalar_lea.vmem [#allocation6], %s239
          %242 = vsyncadd %s237, 0
          %s243 = smul.addr %s23, 8
          %s244 = scalar_lea.hbm %s3, %s243
          %s246 = sshll.u32 %s244, 4
          %s247 = int_to_ptr.hbm [resolvable:$true] %s246
          %s248 = sshll.u32 %s240, 4
          %s249 = int_to_ptr.vmem [resolvable:$true] %s248
          %251 = dma.hbm_to_vmem [thread:$0]  %s247, 128, %s249, %s237
        $region32: #{learned_reg_iteration_forward.2} parent=15 // pred_fallthru
          _
      $region16: #{learned_reg_iteration_forward.2} parent=5 // pred_fallthru
        _
      %p252 = scmp.le.s32.totalorder 1, %s16
      %p253 = scmp.lt.s32.totalorder %s16, 9
      %p254 = pnand %p252, %p253
      %p255 = pneg %p254
      // Predicated region
      $region33: #{learned_reg_iteration_forward.2} parent=5 // pred_check
        _
      $region34: #{learned_reg_iteration_forward.2} parent=5 // pred_check_branch
        %257 = sbr.rel (%p254) target = $region36
      $region35: #{learned_reg_iteration_forward.2} parent=5 // pred_region
        %s258 = ssub.s32 %s16, 1
        %s259 = sand.u32 %s67, 1
        %s260 = scalar_lea.sflag [#allocation3], %s259
        %s261 = sand.u32 %s67, 1
        %s262 = smul.addr %s261, 32
        %s263 = scalar_lea.vmem [#allocation2], %s262
        // Predicated region
        $region37: #{learned_reg_iteration_forward.2} parent=35 // pred_check
          %p264 = pneg %p80
        $region38: #{learned_reg_iteration_forward.2} parent=35 // pred_check_branch
          %266 = sbr.rel (%p264) target = $region40
        $region39: #{learned_reg_iteration_forward.2} parent=35 // pred_region
          %268 = dma.done %s260, 512
        $region40: #{learned_reg_iteration_forward.2} parent=35 // pred_fallthru
          _
        %s269 = sand.u32 %s21, 1
        %s270 = scalar_lea.sflag [#allocation5], %s269
        %s271 = sand.u32 %s95, 1
        %s272 = smul.addr %s271, 512
        %s273 = scalar_lea.vmem [#allocation4], %s272
        // Predicated region
        $region41: #{learned_reg_iteration_forward.2} parent=35 // pred_check
          %p274 = pneg %p108
        $region42: #{learned_reg_iteration_forward.2} parent=35 // pred_check_branch
          %276 = sbr.rel (%p274) target = $region44
        $region43: #{learned_reg_iteration_forward.2} parent=35 // pred_region
          %278 = dma.done %s270, 8192
        $region44: #{learned_reg_iteration_forward.2} parent=35 // pred_fallthru
          _
        %s279 = sand.u32 %s21, 1
        %s280 = scalar_lea.sflag [#allocation5], %s279
        %s281 = sand.u32 %s121, 1
        %s282 = smul.addr %s281, 8
        %s283 = scalar_lea.vmem [#allocation6], %s282
        // Predicated region
        $region45: #{learned_reg_iteration_forward.2} parent=35 // pred_check
          %p284 = pneg %p134
        $region46: #{learned_reg_iteration_forward.2} parent=35 // pred_check_branch
          %286 = sbr.rel (%p284) target = $region48
        $region47: #{learned_reg_iteration_forward.2} parent=35 // pred_region
          %288 = dma.done %s280, 128
        $region48: #{learned_reg_iteration_forward.2} parent=35 // pred_fallthru
          _
        %s289 = smul.u32 4, %s26
        %p290 = scmp.lt.s32.totalorder %s289, 7
        %s291 = scalar_select %p290, %s289, 7
        %s292 = smul.addr %s291, 2
        %s293 = scalar_lea.vmem %s0, %s292
        %p294 = pneg %p54
        %p295 = pneg %p51
        %s296 = sand.u32 %s67, 1
        %s297 = scalar_lea.sflag [#allocation3], %s296
        %s298 = sand.u32 %s67, 1
        %s299 = smul.addr %s298, 32
        %s300 = scalar_lea.vmem [#allocation2], %s299
        %p301 = pneg %p80
        %p302 = pneg %p77
        %s303 = sand.u32 %s21, 1
        %s304 = scalar_lea.sflag [#allocation5], %s303
        %s305 = sand.u32 %s95, 1
        %s306 = smul.addr %s305, 512
        %s307 = scalar_lea.vmem [#allocation4], %s306
        %p308 = pneg %p108
        %p309 = pneg %p105
        %s310 = sand.u32 %s21, 1
        %s311 = scalar_lea.sflag [#allocation5], %s310
        %s312 = sand.u32 %s121, 1
        %s313 = smul.addr %s312, 8
        %s314 = scalar_lea.vmem [#allocation6], %s313
        %p315 = pneg %p134
        %p316 = pneg %p131
        %p317 = pneg %p160
        %p318 = pneg %p157
        %p319 = scmp.lt.s32.totalorder %s25, 3
        %s320 = scalar_select %p319, %s25, 3
        %s321 = smul.addr %s320, 8
        %s322 = scalar_lea.vmem %s4, %s321
        %s323 = smul.u32 4, %s26
        %p324 = scmp.lt.s32.totalorder %s323, 7
        %s325 = scalar_select %p324, %s323, 7
        %s326 = smul.addr %s325, 2
        %s327 = scalar_lea.vmem %s0, %s326
        %s328 = smul.u32 4, %s26
        %s329 = smul.u32 4, %s26
        %s330 = smul.u32 64, %s26
        %s331 = smul.u32 2, %s25
        %p332 = scmp.lt.s32.totalorder %s25, 3
        %s333 = scalar_select %p332, %s25, 3
        %s334 = smul.addr %s333, 8
        %s335 = scalar_lea.vmem %s4, %s334
        %p336 = scmp.eq.s32.totalorder %s26, 0
        // Predicated region
        $region49: #{learned_reg_iteration_forward.2} parent=35 // pred_check
          %p337 = pneg %p336
        $region50: #{learned_reg_iteration_forward.2} parent=35 // pred_check_branch
          %339 = sbr.rel (%p337) target = $region52
        $region51: #{learned_reg_iteration_forward.2} parent=35 // pred_region
          %v340 = vld [vmem:[%s283] sm:$0xff]
          %v341 = vsub.f32 0.0, %v340
          %342 = vst [vmem:[%s335] sm:$0xff] %v341
        $region52: #{learned_reg_iteration_forward.2} parent=35 // pred_fallthru
          _
        %v343 = vld [vmem:[%s327] ss:$2 sm:$0xf]
        %s344 = scalar_lea.vmem %s327, 1
        %v345 = vld [vmem:[%s344] ss:$2 sm:$0xf]
        %v346 = vld [vmem:[%s263] sm:$0xf]
        %v347 = vld [vmem:[%s263 + $0x8] sm:$0xf]
        %v348 = vld [vmem:[%s263 + $0x10] sm:$0xf]
        %v349 = vld [vmem:[%s263 + $0x18] sm:$0xf]
        %v350 = vld [vmem:[%s263] sm:$0xf0]
        %v351 = vld [vmem:[%s263 + $0x8] sm:$0xf0]
        %v352 = vld [vmem:[%s263 + $0x10] sm:$0xf0]
        %v353 = vld [vmem:[%s263 + $0x18] sm:$0xf0]
        %v355 = vperm.slane %v343, 0
        %v356 = vperm.slane %v343, 1
        %v357 = vperm.slane %v343, 2
        %v358 = vperm.slane %v343, 3
        %v363 = vmul.f32 %v355, %v346
        %v364 = vmul.f32 %v356, %v347
        %v365 = vmul.f32 %v357, %v348
        %v366 = vmul.f32 %v358, %v349
        %v368 = vperm.slane %v345, 0
        %v369 = vperm.slane %v345, 1
        %v370 = vperm.slane %v345, 2
        %v371 = vperm.slane %v345, 3
        %v376 = vmul.f32 %v368, %v350
        %v377 = vmul.f32 %v369, %v351
        %v378 = vmul.f32 %v370, %v352
        %v379 = vmul.f32 %v371, %v353
        %v384 = vrot.slane %v376, 4
        %v385 = vrot.slane %v377, 4
        %v386 = vrot.slane %v378, 4
        %v387 = vrot.slane %v379, 4
        %v392 = vsub.f32 %v363, %v384
        %v393 = vsub.f32 %v364, %v385
        %v394 = vsub.f32 %v365, %v386
        %v395 = vsub.f32 %v366, %v387
        %v396 = vmul.f32 %v355, %v350
        %v397 = vmul.f32 %v356, %v351
        %v398 = vmul.f32 %v357, %v352
        %v399 = vmul.f32 %v358, %v353
        %v400 = vmul.f32 %v368, %v346
        %v401 = vmul.f32 %v369, %v347
        %v402 = vmul.f32 %v370, %v348
        %v403 = vmul.f32 %v371, %v349
        %v408 = vrot.slane %v400, 4
        %v409 = vrot.slane %v401, 4
        %v410 = vrot.slane %v402, 4
        %v411 = vrot.slane %v403, 4
        %v416 = vadd.f32 %v396, %v408
        %v417 = vadd.f32 %v397, %v409
        %v418 = vadd.f32 %v398, %v410
        %v419 = vadd.f32 %v399, %v411
        %vm420 = vcmask 1043456
        %v421 = vsel %vm420, %v392, %v416
        %v422 = vsel %vm420, %v393, %v417
        %v423 = vsel %vm420, %v394, %v418
        %v424 = vsel %vm420, %v395, %v419
        %v425 = vpack.c.bf16 %v421, %v421
        %v426 = vpack.c.bf16 %v422, %v422
        %v427 = vpack.c.bf16 %v423, %v423
        %v428 = vpack.c.bf16 %v424, %v424
        %v429 = vld [vmem:[%s273] sm:$0xff]
        %v430 = vld [vmem:[%s273 + $0x8] sm:$0xff]
        %v431 = vld [vmem:[%s273 + $0x10] sm:$0xff]
        %v432 = vld [vmem:[%s273 + $0x18] sm:$0xff]
        %v433 = vld [vmem:[%s273 + $0x20] sm:$0xff]
        %v434 = vld [vmem:[%s273 + $0x28] sm:$0xff]
        %v435 = vld [vmem:[%s273 + $0x30] sm:$0xff]
        %v436 = vld [vmem:[%s273 + $0x38] sm:$0xff]
        %v437 = vld [vmem:[%s273 + $0x40] sm:$0xff]
        %v438 = vld [vmem:[%s273 + $0x48] sm:$0xff]
        %v439 = vld [vmem:[%s273 + $0x50] sm:$0xff]
        %v440 = vld [vmem:[%s273 + $0x58] sm:$0xff]
        %v441 = vld [vmem:[%s273 + $0x60] sm:$0xff]
        %v442 = vld [vmem:[%s273 + $0x68] sm:$0xff]
        %v443 = vld [vmem:[%s273 + $0x70] sm:$0xff]
        %v444 = vld [vmem:[%s273 + $0x78] sm:$0xff]
        %v445 = vld [vmem:[%s273 + $0x80] sm:$0xff]
        %v446 = vld [vmem:[%s273 + $0x88] sm:$0xff]
        %v447 = vld [vmem:[%s273 + $0x90] sm:$0xff]
        %v448 = vld [vmem:[%s273 + $0x98] sm:$0xff]
        %v449 = vld [vmem:[%s273 + $0xa0] sm:$0xff]
        %v450 = vld [vmem:[%s273 + $0xa8] sm:$0xff]
        %v451 = vld [vmem:[%s273 + $0xb0] sm:$0xff]
        %v452 = vld [vmem:[%s273 + $0xb8] sm:$0xff]
        %v453 = vld [vmem:[%s273 + $0xc0] sm:$0xff]
        %v454 = vld [vmem:[%s273 + $0xc8] sm:$0xff]
        %v455 = vld [vmem:[%s273 + $0xd0] sm:$0xff]
        %v456 = vld [vmem:[%s273 + $0xd8] sm:$0xff]
        %v457 = vld [vmem:[%s273 + $0xe0] sm:$0xff]
        %v458 = vld [vmem:[%s273 + $0xe8] sm:$0xff]
        %v459 = vld [vmem:[%s273 + $0xf0] sm:$0xff]
        %v460 = vld [vmem:[%s273 + $0xf8] sm:$0xff]
        %v461 = vld [vmem:[%s273 + $0x100] sm:$0xff]
        %v462 = vld [vmem:[%s273 + $0x108] sm:$0xff]
        %v463 = vld [vmem:[%s273 + $0x110] sm:$0xff]
        %v464 = vld [vmem:[%s273 + $0x118] sm:$0xff]
        %v465 = vld [vmem:[%s273 + $0x120] sm:$0xff]
        %v466 = vld [vmem:[%s273 + $0x128] sm:$0xff]
        %v467 = vld [vmem:[%s273 + $0x130] sm:$0xff]
        %v468 = vld [vmem:[%s273 + $0x138] sm:$0xff]
        %v469 = vld [vmem:[%s273 + $0x140] sm:$0xff]
        %v470 = vld [vmem:[%s273 + $0x148] sm:$0xff]
        %v471 = vld [vmem:[%s273 + $0x150] sm:$0xff]
        %v472 = vld [vmem:[%s273 + $0x158] sm:$0xff]
        %v473 = vld [vmem:[%s273 + $0x160] sm:$0xff]
        %v474 = vld [vmem:[%s273 + $0x168] sm:$0xff]
        %v475 = vld [vmem:[%s273 + $0x170] sm:$0xff]
        %v476 = vld [vmem:[%s273 + $0x178] sm:$0xff]
        %v477 = vld [vmem:[%s273 + $0x180] sm:$0xff]
        %v478 = vld [vmem:[%s273 + $0x188] sm:$0xff]
        %v479 = vld [vmem:[%s273 + $0x190] sm:$0xff]
        %v480 = vld [vmem:[%s273 + $0x198] sm:$0xff]
        %v481 = vld [vmem:[%s273 + $0x1a0] sm:$0xff]
        %v482 = vld [vmem:[%s273 + $0x1a8] sm:$0xff]
        %v483 = vld [vmem:[%s273 + $0x1b0] sm:$0xff]
        %v484 = vld [vmem:[%s273 + $0x1b8] sm:$0xff]
        %v485 = vld [vmem:[%s273 + $0x1c0] sm:$0xff]
        %v486 = vld [vmem:[%s273 + $0x1c8] sm:$0xff]
        %v487 = vld [vmem:[%s273 + $0x1d0] sm:$0xff]
        %v488 = vld [vmem:[%s273 + $0x1d8] sm:$0xff]
        %v489 = vld [vmem:[%s273 + $0x1e0] sm:$0xff]
        %v490 = vld [vmem:[%s273 + $0x1e8] sm:$0xff]
        %v491 = vld [vmem:[%s273 + $0x1f0] sm:$0xff]
        %v492 = vld [vmem:[%s273 + $0x1f8] sm:$0xff]
        %v557 = vunpack.c.l.b16 %v429
        %v558 = vunpack.c.h.b16 %v429
        %v559 = vunpack.c.l.b16 %v430
        %v560 = vunpack.c.h.b16 %v430
        %v561 = vunpack.c.l.b16 %v431
        %v562 = vunpack.c.h.b16 %v431
        %v563 = vunpack.c.l.b16 %v432
        %v564 = vunpack.c.h.b16 %v432
        %v565 = vunpack.c.l.b16 %v433
        %v566 = vunpack.c.h.b16 %v433
        %v567 = vunpack.c.l.b16 %v434
        %v568 = vunpack.c.h.b16 %v434
        %v569 = vunpack.c.l.b16 %v435
        %v570 = vunpack.c.h.b16 %v435
        %v571 = vunpack.c.l.b16 %v436
        %v572 = vunpack.c.h.b16 %v436
        %v573 = vunpack.c.l.b16 %v437
        %v574 = vunpack.c.h.b16 %v437
        %v575 = vunpack.c.l.b16 %v438
        %v576 = vunpack.c.h.b16 %v438
        %v577 = vunpack.c.l.b16 %v439
        %v578 = vunpack.c.h.b16 %v439
        %v579 = vunpack.c.l.b16 %v440
        %v580 = vunpack.c.h.b16 %v440
        %v581 = vunpack.c.l.b16 %v441
        %v582 = vunpack.c.h.b16 %v441
        %v583 = vunpack.c.l.b16 %v442
        %v584 = vunpack.c.h.b16 %v442
        %v585 = vunpack.c.l.b16 %v443
        %v586 = vunpack.c.h.b16 %v443
        %v587 = vunpack.c.l.b16 %v444
        %v588 = vunpack.c.h.b16 %v444
        %v589 = vunpack.c.l.b16 %v445
        %v590 = vunpack.c.h.b16 %v445
        %v591 = vunpack.c.l.b16 %v446
        %v592 = vunpack.c.h.b16 %v446
        %v593 = vunpack.c.l.b16 %v447
        %v594 = vunpack.c.h.b16 %v447
        %v595 = vunpack.c.l.b16 %v448
        %v596 = vunpack.c.h.b16 %v448
        %v597 = vunpack.c.l.b16 %v449
        %v598 = vunpack.c.h.b16 %v449
        %v599 = vunpack.c.l.b16 %v450
        %v600 = vunpack.c.h.b16 %v450
        %v601 = vunpack.c.l.b16 %v451
        %v602 = vunpack.c.h.b16 %v451
        %v603 = vunpack.c.l.b16 %v452
        %v604 = vunpack.c.h.b16 %v452
        %v605 = vunpack.c.l.b16 %v453
        %v606 = vunpack.c.h.b16 %v453
        %v607 = vunpack.c.l.b16 %v454
        %v608 = vunpack.c.h.b16 %v454
        %v609 = vunpack.c.l.b16 %v455
        %v610 = vunpack.c.h.b16 %v455
        %v611 = vunpack.c.l.b16 %v456
        %v612 = vunpack.c.h.b16 %v456
        %v613 = vunpack.c.l.b16 %v457
        %v614 = vunpack.c.h.b16 %v457
        %v615 = vunpack.c.l.b16 %v458
        %v616 = vunpack.c.h.b16 %v458
        %v617 = vunpack.c.l.b16 %v459
        %v618 = vunpack.c.h.b16 %v459
        %v619 = vunpack.c.l.b16 %v460
        %v620 = vunpack.c.h.b16 %v460
        %v621 = vunpack.c.l.b16 %v461
        %v622 = vunpack.c.h.b16 %v461
        %v623 = vunpack.c.l.b16 %v462
        %v624 = vunpack.c.h.b16 %v462
        %v625 = vunpack.c.l.b16 %v463
        %v626 = vunpack.c.h.b16 %v463
        %v627 = vunpack.c.l.b16 %v464
        %v628 = vunpack.c.h.b16 %v464
        %v629 = vunpack.c.l.b16 %v465
        %v630 = vunpack.c.h.b16 %v465
        %v631 = vunpack.c.l.b16 %v466
        %v632 = vunpack.c.h.b16 %v466
        %v633 = vunpack.c.l.b16 %v467
        %v634 = vunpack.c.h.b16 %v467
        %v635 = vunpack.c.l.b16 %v468
        %v636 = vunpack.c.h.b16 %v468
        %v637 = vunpack.c.l.b16 %v469
        %v638 = vunpack.c.h.b16 %v469
        %v639 = vunpack.c.l.b16 %v470
        %v640 = vunpack.c.h.b16 %v470
        %v641 = vunpack.c.l.b16 %v471
        %v642 = vunpack.c.h.b16 %v471
        %v643 = vunpack.c.l.b16 %v472
        %v644 = vunpack.c.h.b16 %v472
        %v645 = vunpack.c.l.b16 %v473
        %v646 = vunpack.c.h.b16 %v473
        %v647 = vunpack.c.l.b16 %v474
        %v648 = vunpack.c.h.b16 %v474
        %v649 = vunpack.c.l.b16 %v475
        %v650 = vunpack.c.h.b16 %v475
        %v651 = vunpack.c.l.b16 %v476
        %v652 = vunpack.c.h.b16 %v476
        %v653 = vunpack.c.l.b16 %v477
        %v654 = vunpack.c.h.b16 %v477
        %v655 = vunpack.c.l.b16 %v478
        %v656 = vunpack.c.h.b16 %v478
        %v657 = vunpack.c.l.b16 %v479
        %v658 = vunpack.c.h.b16 %v479
        %v659 = vunpack.c.l.b16 %v480
        %v660 = vunpack.c.h.b16 %v480
        %v661 = vunpack.c.l.b16 %v481
        %v662 = vunpack.c.h.b16 %v481
        %v663 = vunpack.c.l.b16 %v482
        %v664 = vunpack.c.h.b16 %v482
        %v665 = vunpack.c.l.b16 %v483
        %v666 = vunpack.c.h.b16 %v483
        %v667 = vunpack.c.l.b16 %v484
        %v668 = vunpack.c.h.b16 %v484
        %v669 = vunpack.c.l.b16 %v485
        %v670 = vunpack.c.h.b16 %v485
        %v671 = vunpack.c.l.b16 %v486
        %v672 = vunpack.c.h.b16 %v486
        %v673 = vunpack.c.l.b16 %v487
        %v674 = vunpack.c.h.b16 %v487
        %v675 = vunpack.c.l.b16 %v488
        %v676 = vunpack.c.h.b16 %v488
        %v677 = vunpack.c.l.b16 %v489
        %v678 = vunpack.c.h.b16 %v489
        %v679 = vunpack.c.l.b16 %v490
        %v680 = vunpack.c.h.b16 %v490
        %v681 = vunpack.c.l.b16 %v491
        %v682 = vunpack.c.h.b16 %v491
        %v683 = vunpack.c.l.b16 %v492
        %v684 = vunpack.c.h.b16 %v492
        %v685 = vpack.c.b16 %v559, %v557
        %v686 = vpack.c.b16 %v560, %v558
        %v687 = vpack.c.b16 %v563, %v561
        %v688 = vpack.c.b16 %v564, %v562
        %v689 = vpack.c.b16 %v567, %v565
        %v690 = vpack.c.b16 %v568, %v566
        %v691 = vpack.c.b16 %v571, %v569
        %v692 = vpack.c.b16 %v572, %v570
        %v693 = vpack.c.b16 %v575, %v573
        %v694 = vpack.c.b16 %v576, %v574
        %v695 = vpack.c.b16 %v579, %v577
        %v696 = vpack.c.b16 %v580, %v578
        %v697 = vpack.c.b16 %v583, %v581
        %v698 = vpack.c.b16 %v584, %v582
        %v699 = vpack.c.b16 %v587, %v585
        %v700 = vpack.c.b16 %v588, %v586
        %v701 = vpack.c.b16 %v591, %v589
        %v702 = vpack.c.b16 %v592, %v590
        %v703 = vpack.c.b16 %v595, %v593
        %v704 = vpack.c.b16 %v596, %v594
        %v705 = vpack.c.b16 %v599, %v597
        %v706 = vpack.c.b16 %v600, %v598
        %v707 = vpack.c.b16 %v603, %v601
        %v708 = vpack.c.b16 %v604, %v602
        %v709 = vpack.c.b16 %v607, %v605
        %v710 = vpack.c.b16 %v608, %v606
        %v711 = vpack.c.b16 %v611, %v609
        %v712 = vpack.c.b16 %v612, %v610
        %v713 = vpack.c.b16 %v615, %v613
        %v714 = vpack.c.b16 %v616, %v614
        %v715 = vpack.c.b16 %v619, %v617
        %v716 = vpack.c.b16 %v620, %v618
        %v717 = vpack.c.b16 %v623, %v621
        %v718 = vpack.c.b16 %v624, %v622
        %v719 = vpack.c.b16 %v627, %v625
        %v720 = vpack.c.b16 %v628, %v626
        %v721 = vpack.c.b16 %v631, %v629
        %v722 = vpack.c.b16 %v632, %v630
        %v723 = vpack.c.b16 %v635, %v633
        %v724 = vpack.c.b16 %v636, %v634
        %v725 = vpack.c.b16 %v639, %v637
        %v726 = vpack.c.b16 %v640, %v638
        %v727 = vpack.c.b16 %v643, %v641
        %v728 = vpack.c.b16 %v644, %v642
        %v729 = vpack.c.b16 %v647, %v645
        %v730 = vpack.c.b16 %v648, %v646
        %v731 = vpack.c.b16 %v651, %v649
        %v732 = vpack.c.b16 %v652, %v650
        %v733 = vpack.c.b16 %v655, %v653
        %v734 = vpack.c.b16 %v656, %v654
        %v735 = vpack.c.b16 %v659, %v657
        %v736 = vpack.c.b16 %v660, %v658
        %v737 = vpack.c.b16 %v663, %v661
        %v738 = vpack.c.b16 %v664, %v662
        %v739 = vpack.c.b16 %v667, %v665
        %v740 = vpack.c.b16 %v668, %v666
        %v741 = vpack.c.b16 %v671, %v669
        %v742 = vpack.c.b16 %v672, %v670
        %v743 = vpack.c.b16 %v675, %v673
        %v744 = vpack.c.b16 %v676, %v674
        %v745 = vpack.c.b16 %v679, %v677
        %v746 = vpack.c.b16 %v680, %v678
        %v747 = vpack.c.b16 %v683, %v681
        %v748 = vpack.c.b16 %v684, %v682
        %813 = vmatpush.bf16.msra.mxu0 %v699
        %814 = vmatpush.bf16.msra.mxu0 %v697
        %815 = vmatpush.bf16.msra.mxu0 %v695
        %816 = vmatpush.bf16.msra.mxu0 %v693
        %817 = vmatpush.bf16.msra.mxu0 %v691
        %818 = vmatpush.bf16.msra.mxu0 %v689
        %819 = vmatpush.bf16.msra.mxu0 %v687
        %820 = vmatpush.bf16.msra.mxu0 %v685
        %821 = vmatmul.bf16.gmra.mxu0 %v425
        %v822 = vpop.f32.mrf.mxu0
        %v823 = vadd.f32 0.0, %v822
        %v824 = vpop.f32.mrf.mxu0
        %825 = vdwg.mxu0
        %826 = vmatpush.bf16.msra.mxu0 %v715
        %827 = vmatpush.bf16.msra.mxu0 %v713
        %828 = vmatpush.bf16.msra.mxu0 %v711
        %829 = vmatpush.bf16.msra.mxu0 %v709
        %830 = vmatpush.bf16.msra.mxu0 %v707
        %831 = vmatpush.bf16.msra.mxu0 %v705
        %832 = vmatpush.bf16.msra.mxu0 %v703
        %833 = vmatpush.bf16.msra.mxu0 %v701
        %834 = vmatmul.bf16.gmra.mxu0 %v426
        %v835 = vpop.f32.mrf.mxu0
        %v836 = vadd.f32 %v823, %v835
        %v837 = vpop.f32.mrf.mxu0
        %838 = vdwg.mxu0
        %839 = vmatpush.bf16.msra.mxu0 %v731
        %840 = vmatpush.bf16.msra.mxu0 %v729
        %841 = vmatpush.bf16.msra.mxu0 %v727
        %842 = vmatpush.bf16.msra.mxu0 %v725
        %843 = vmatpush.bf16.msra.mxu0 %v723
        %844 = vmatpush.bf16.msra.mxu0 %v721
        %845 = vmatpush.bf16.msra.mxu0 %v719
        %846 = vmatpush.bf16.msra.mxu0 %v717
        %847 = vmatmul.bf16.gmra.mxu0 %v427
        %v848 = vpop.f32.mrf.mxu0
        %v849 = vadd.f32 %v836, %v848
        %v850 = vpop.f32.mrf.mxu0
        %851 = vdwg.mxu0
        %852 = vmatpush.bf16.msra.mxu0 %v747
        %853 = vmatpush.bf16.msra.mxu0 %v745
        %854 = vmatpush.bf16.msra.mxu0 %v743
        %855 = vmatpush.bf16.msra.mxu0 %v741
        %856 = vmatpush.bf16.msra.mxu0 %v739
        %857 = vmatpush.bf16.msra.mxu0 %v737
        %858 = vmatpush.bf16.msra.mxu0 %v735
        %859 = vmatpush.bf16.msra.mxu0 %v733
        %860 = vmatmul.bf16.gmra.mxu0 %v428
        %v861 = vpop.f32.mrf.mxu0
        %v862 = vadd.f32 %v849, %v861
        %v863 = vpop.f32.mrf.mxu0
        %864 = vdwg.mxu0
        %865 = vmatpush.bf16.msra.mxu0 %v700
        %866 = vmatpush.bf16.msra.mxu0 %v698
        %867 = vmatpush.bf16.msra.mxu0 %v696
        %868 = vmatpush.bf16.msra.mxu0 %v694
        %869 = vmatpush.bf16.msra.mxu0 %v692
        %870 = vmatpush.bf16.msra.mxu0 %v690
        %871 = vmatpush.bf16.msra.mxu0 %v688
        %872 = vmatpush.bf16.msra.mxu0 %v686
        %873 = vmatmul.bf16.gmra.mxu0 %v425
        %v874 = vpop.f32.mrf.mxu0
        %v875 = vadd.f32 0.0, %v874
        %v876 = vpop.f32.mrf.mxu0
        %877 = vdwg.mxu0
        %878 = vmatpush.bf16.msra.mxu0 %v716
        %879 = vmatpush.bf16.msra.mxu0 %v714
        %880 = vmatpush.bf16.msra.mxu0 %v712
        %881 = vmatpush.bf16.msra.mxu0 %v710
        %882 = vmatpush.bf16.msra.mxu0 %v708
        %883 = vmatpush.bf16.msra.mxu0 %v706
        %884 = vmatpush.bf16.msra.mxu0 %v704
        %885 = vmatpush.bf16.msra.mxu0 %v702
        %886 = vmatmul.bf16.gmra.mxu0 %v426
        %v887 = vpop.f32.mrf.mxu0
        %v888 = vadd.f32 %v875, %v887
        %v889 = vpop.f32.mrf.mxu0
        %890 = vdwg.mxu0
        %891 = vmatpush.bf16.msra.mxu0 %v732
        %892 = vmatpush.bf16.msra.mxu0 %v730
        %893 = vmatpush.bf16.msra.mxu0 %v728
        %894 = vmatpush.bf16.msra.mxu0 %v726
        %895 = vmatpush.bf16.msra.mxu0 %v724
        %896 = vmatpush.bf16.msra.mxu0 %v722
        %897 = vmatpush.bf16.msra.mxu0 %v720
        %898 = vmatpush.bf16.msra.mxu0 %v718
        %899 = vmatmul.bf16.gmra.mxu0 %v427
        %v900 = vpop.f32.mrf.mxu0
        %v901 = vadd.f32 %v888, %v900
        %v902 = vpop.f32.mrf.mxu0
        %903 = vdwg.mxu0
        %904 = vmatpush.bf16.msra.mxu0 %v748
        %905 = vmatpush.bf16.msra.mxu0 %v746
        %906 = vmatpush.bf16.msra.mxu0 %v744
        %907 = vmatpush.bf16.msra.mxu0 %v742
        %908 = vmatpush.bf16.msra.mxu0 %v740
        %909 = vmatpush.bf16.msra.mxu0 %v738
        %910 = vmatpush.bf16.msra.mxu0 %v736
        %911 = vmatpush.bf16.msra.mxu0 %v734
        %912 = vmatmul.bf16.gmra.mxu0 %v428
        %v913 = vpop.f32.mrf.mxu0
        %v914 = vadd.f32 %v901, %v913
        %v915 = vpop.f32.mrf.mxu0
        %916 = vdwg.mxu0
        %v917 = vld [vmem:[%s335] sm:$0xf]
        %v919 = vrot.slane %v914, 4
        %v921 = vsub.f32 %v862, %v919
        %v922 = vadd.f32 %v917, %v921
        %923 = vst [vmem:[%s335] sm:$0xf] %v922
        %v924 = vld [vmem:[%s335 + $0x4] sm:$0xf]
        %v926 = vrot.slane %v862, 4
        %v928 = vadd.f32 %v914, %v926
        %v929 = vadd.f32 %v924, %v928
        %930 = vst [vmem:[%s335 + $0x4] sm:$0xf] %v929
        %p931 = scmp.lt.s32.totalorder %s25, 3
        %s932 = scalar_select %p931, %s25, 3
        %s933 = smul.addr %s932, 8
        %s934 = scalar_lea.vmem %s4, %s933
        // Predicated region
        $region53: #{learned_reg_iteration_forward.2} parent=35 // pred_check
          %p935 = pneg %p157
        $region54: #{learned_reg_iteration_forward.2} parent=35 // pred_check_branch
          %937 = sbr.rel (%p935) target = $region56
        $region55: #{learned_reg_iteration_forward.2} parent=35 // pred_region
          _
        $region56: #{learned_reg_iteration_forward.2} parent=35 // pred_fallthru
          _
      $region36: #{learned_reg_iteration_forward.2} parent=5 // pred_fallthru
        _
      %p938 = scmp.le.s32.totalorder 2, %s16
      // Predicated region
      $region57: #{learned_reg_iteration_forward.2} parent=5 // pred_check
        %p939 = pneg %p938
      $region58: #{learned_reg_iteration_forward.2} parent=5 // pred_check_branch
        %941 = sbr.rel (%p939) target = $region60
      $region59: #{learned_reg_iteration_forward.2} parent=5 // pred_region
        %s942 = ssub.s32 %s16, 2
        // Predicated region
        $region61: #{learned_reg_iteration_forward.2} parent=59 // pred_check
          %p943 = pneg %p163
        $region62: #{learned_reg_iteration_forward.2} parent=59 // pred_check_branch
          %945 = sbr.rel (%p943) target = $region64
        $region63: #{learned_reg_iteration_forward.2} parent=59 // pred_region
          %p946 = scmp.lt.s32.totalorder %s27, 3
          %s947 = scalar_select %p946, %s27, 3
          %s948 = smul.addr %s947, 8
          %s949 = scalar_lea.vmem %s4, %s948
        $region64: #{learned_reg_iteration_forward.2} parent=59 // pred_fallthru
          _
      $region60: #{learned_reg_iteration_forward.2} parent=5 // pred_fallthru
        _
    $region6: #{learned_reg_iteration_forward.2} parent=1 // loop_footer
      %s20 = sadd.s32 1, %s16
    $region7: #{learned_reg_iteration_forward.2} parent=1 // loop_footer_branch
      %15 = sbr.rel target = $region3
    $region8: #{learned_reg_iteration_forward.2} parent=1 // loop_exit
      _
    %950 = vsyncpa [#allocation3], 1
    %s951 = scalar_lea.sflag [#allocation3], 1
    %952 = vsyncpa %s951, 1
    %953 = vsyncpa [#allocation5], 1
    %s954 = scalar_lea.sflag [#allocation5], 1
    %955 = vsyncpa %s954, 1

// kernel: learned_reg_iteration_forward.3
$region0: #{learned_reg_iteration_forward.3}
  #allocation0 [shape = 'u32[]', space=smem, size = 0x4, offset = 0x4, fixed_abs, tag = 'smem constant byte address 0x4 - core index']
  #allocation1 [shape = 'u32[72,128]{1,0:T(1,128)}', space=vmem, size = 0x9000, scoped, tag = 'internal scratch']
  #allocation2 [shape = 'f32[8,256]{1,0:T(8,128)}', space=vmem, size = 0x2000, scoped, tag = 'scratch operand']
  %s0 = inlined_call_operand.vmem [shape: f32[8,512], index: 0, kind: input, shape index: {}]
  %s1 = inlined_call_operand.hbm [shape: bf16[512,2048], index: 1, kind: input, shape index: {}]
  %s2 = inlined_call_operand.vmem [shape: f32[8,1024], index: 2, kind: input, shape index: {}]
  %s3 = inlined_call_operand.vmem [shape: f32[2,1024], index: 3, kind: input, shape index: {}]
  %s4 = inlined_call_operand.vmem [shape: f32[2,1024], index: 4, kind: output, shape index: {}]
  %s5 = sld [smem:[#allocation0]]
  $region61: #{learned_reg_iteration_forward.3} parent=0
    _
  %s7 = ssub.s32 1, %s5
  %s8 = scalar_select 0, %s7, %s5
  $region1: #{learned_reg_iteration_forward.3} parent=0
    #allocation3 [shape = 'u8[524288]{0}', space=vmem, size = 0x80000, scoped, tag = 'input window, operand 1']
    #allocation4 [shape = 's32[2]{0}', space=sflag, size = 0x8, scoped, tag = 'scoped memory for learned_reg_iteration_forward.3']
    %9 = vsyncpa [#allocation4], 0
    %s10 = scalar_lea.sflag [#allocation4], 1
    %11 = vsyncpa %s10, 0
    loop: start=0, step=1, limit=10
    $region2: #{learned_reg_iteration_forward.3} parent=1 // loop_pre_header
      _
    $region3: #{learned_reg_iteration_forward.3} parent=1 // loop_header
      %s13 = sphi 0, %s17
      %p14 = scmp.ge.s32.totalorder %s13, 10
      %s20 = sphi 0, %s32
      %s21 = sphi 0, %s28
      %s22 = sphi 0, %s20
      %s23 = sphi 0, %s21
      %s24 = sphi 0, %s22
      %s25 = sphi 0, %s23
      %s35 = sphi 0, %s37
      %s38 = sphi 0, %s35
      %s39 = sphi 0, %s38
      %s55 = sphi 0, %s39
      %s63 = sphi 0, %s65
      %s66 = sphi 0, %s63
      %s67 = sphi 0, %s66
      %s83 = sphi 0, %s67
      %s89 = sphi 0, %s91
      %s92 = sphi 0, %s89
      %s93 = sphi 0, %s92
      %s109 = sphi 0, %s93
      %s115 = sphi 0, %s117
      %s118 = sphi 0, %s115
      %s119 = sphi 0, %s118
      %s135 = sphi 0, %s119
      %s141 = sphi 0, %s143
      %s144 = sphi 0, %s141
      %s145 = sphi 0, %s144
      %s161 = sphi 0, %s145
    $region4: #{learned_reg_iteration_forward.3} parent=1 // loop_header_branch
      %16 = sbr.rel (%p14) target = $region8
    $region5: #{learned_reg_iteration_forward.3} parent=1 // loop_body
      %s18 = ssub.s32 %s13, 1
      %s19 = ssub.s32 %s13, 2
      %s26 = sadd.s32 1, %s21
      %p27 = scmp.ge.s32.totalorder %s26, 2
      %s28 = scalar_select %p27, 0, %s26
      %s29 = sadd.s32 1, %s20
      %s30 = scalar_select %p27, %s29, %s20
      %p31 = scmp.ge.s32.totalorder %s30, 4
      %s32 = scalar_select %p31, 0, %s30
      %s33 = ssub.s32 %s21, %s28
      %p34 = scmp.eq.s32.totalorder %s33, 0
      %s36 = sadd.s32 %s35, 1
      %s37 = scalar_select %p34, %s35, %s36
      %p40 = pneg %p34
      %p41 = scmp.eq.s32.totalorder %s13, 7
      %p42 = por %p40, %p41
      %p43 = scmp.ne.s32.totalorder %s35, %s38
      %p44 = scmp.eq.s32.totalorder %s13, 0
      %p45 = por %p43, %p44
      %p46 = scmp.ne.s32.totalorder %s35, %s38
      %p47 = scmp.eq.s32.totalorder %s18, 7
      %p48 = por %p46, %p47
      %p49 = scmp.ne.s32.totalorder %s38, %s39
      %p50 = scmp.eq.s32.totalorder %s18, 0
      %p51 = por %p49, %p50
      %p52 = scmp.ne.s32.totalorder %s38, %s39
      %p53 = scmp.eq.s32.totalorder %s19, 7
      %p54 = por %p52, %p53
      %p56 = scmp.ne.s32.totalorder %s39, %s55
      %p57 = scmp.eq.s32.totalorder %s19, 0
      %p58 = por %p56, %p57
      %s59 = ssub.s32 %s21, %s28
      %s60 = ssub.s32 %s20, %s32
      %s61 = sor.u32 %s59, %s60
      %p62 = scmp.eq.s32.totalorder %s61, 0
      %s64 = sadd.s32 %s63, 1
      %s65 = scalar_select %p62, %s63, %s64
      %p68 = pneg %p62
      %p69 = scmp.eq.s32.totalorder %s13, 7
      %p70 = por %p68, %p69
      %p71 = scmp.ne.s32.totalorder %s63, %s66
      %p72 = scmp.eq.s32.totalorder %s13, 0
      %p73 = por %p71, %p72
      %p74 = scmp.ne.s32.totalorder %s63, %s66
      %p75 = scmp.eq.s32.totalorder %s18, 7
      %p76 = por %p74, %p75
      %p77 = scmp.ne.s32.totalorder %s66, %s67
      %p78 = scmp.eq.s32.totalorder %s18, 0
      %p79 = por %p77, %p78
      %p80 = scmp.ne.s32.totalorder %s66, %s67
      %p81 = scmp.eq.s32.totalorder %s19, 7
      %p82 = por %p80, %p81
      %p84 = scmp.ne.s32.totalorder %s67, %s83
      %p85 = scmp.eq.s32.totalorder %s19, 0
      %p86 = por %p84, %p85
      %s87 = ssub.s32 %s20, %s32
      %p88 = scmp.eq.s32.totalorder %s87, 0
      %s90 = sadd.s32 %s89, 1
      %s91 = scalar_select %p88, %s89, %s90
      %p94 = pneg %p88
      %p95 = scmp.eq.s32.totalorder %s13, 7
      %p96 = por %p94, %p95
      %p97 = scmp.ne.s32.totalorder %s89, %s92
      %p98 = scmp.eq.s32.totalorder %s13, 0
      %p99 = por %p97, %p98
      %p100 = scmp.ne.s32.totalorder %s89, %s92
      %p101 = scmp.eq.s32.totalorder %s18, 7
      %p102 = por %p100, %p101
      %p103 = scmp.ne.s32.totalorder %s92, %s93
      %p104 = scmp.eq.s32.totalorder %s18, 0
      %p105 = por %p103, %p104
      %p106 = scmp.ne.s32.totalorder %s92, %s93
      %p107 = scmp.eq.s32.totalorder %s19, 7
      %p108 = por %p106, %p107
      %p110 = scmp.ne.s32.totalorder %s93, %s109
      %p111 = scmp.eq.s32.totalorder %s19, 0
      %p112 = por %p110, %p111
      %s113 = ssub.s32 %s20, %s32
      %p114 = scmp.eq.s32.totalorder %s113, 0
      %s116 = sadd.s32 %s115, 1
      %s117 = scalar_select %p114, %s115, %s116
      %p120 = pneg %p114
      %p121 = scmp.eq.s32.totalorder %s13, 7
      %p122 = por %p120, %p121
      %p123 = scmp.ne.s32.totalorder %s115, %s118
      %p124 = scmp.eq.s32.totalorder %s13, 0
      %p125 = por %p123, %p124
      %p126 = scmp.ne.s32.totalorder %s115, %s118
      %p127 = scmp.eq.s32.totalorder %s18, 7
      %p128 = por %p126, %p127
      %p129 = scmp.ne.s32.totalorder %s118, %s119
      %p130 = scmp.eq.s32.totalorder %s18, 0
      %p131 = por %p129, %p130
      %p132 = scmp.ne.s32.totalorder %s118, %s119
      %p133 = scmp.eq.s32.totalorder %s19, 7
      %p134 = por %p132, %p133
      %p136 = scmp.ne.s32.totalorder %s119, %s135
      %p137 = scmp.eq.s32.totalorder %s19, 0
      %p138 = por %p136, %p137
      %s139 = ssub.s32 %s20, %s32
      %p140 = scmp.eq.s32.totalorder %s139, 0
      %s142 = sadd.s32 %s141, 1
      %s143 = scalar_select %p140, %s141, %s142
      %p146 = pneg %p140
      %p147 = scmp.eq.s32.totalorder %s13, 7
      %p148 = por %p146, %p147
      %p149 = scmp.ne.s32.totalorder %s141, %s144
      %p150 = scmp.eq.s32.totalorder %s13, 0
      %p151 = por %p149, %p150
      %p152 = scmp.ne.s32.totalorder %s141, %s144
      %p153 = scmp.eq.s32.totalorder %s18, 7
      %p154 = por %p152, %p153
      %p155 = scmp.ne.s32.totalorder %s144, %s145
      %p156 = scmp.eq.s32.totalorder %s18, 0
      %p157 = por %p155, %p156
      %p158 = scmp.ne.s32.totalorder %s144, %s145
      %p159 = scmp.eq.s32.totalorder %s19, 7
      %p160 = por %p158, %p159
      %p162 = scmp.ne.s32.totalorder %s145, %s161
      %p163 = scmp.eq.s32.totalorder %s19, 0
      %p164 = por %p162, %p163
      %p165 = scmp.le.s32.totalorder 1, %s13
      %p166 = scmp.lt.s32.totalorder %s13, 9
      %p167 = pnand %p165, %p166
      %p168 = pneg %p167
      // Predicated region
      $region9: #{learned_reg_iteration_forward.3} parent=5 // pred_check
        _
      $region10: #{learned_reg_iteration_forward.3} parent=5 // pred_check_branch
        %170 = sbr.rel (%p167) target = $region12
      $region11: #{learned_reg_iteration_forward.3} parent=5 // pred_region
        %s171 = ssub.s32 %s13, 1
      $region12: #{learned_reg_iteration_forward.3} parent=5 // pred_fallthru
        _
      %p172 = scmp.lt.s32.totalorder %s13, 8
      // Predicated region
      $region13: #{learned_reg_iteration_forward.3} parent=5 // pred_check
        %p173 = pneg %p172
      $region14: #{learned_reg_iteration_forward.3} parent=5 // pred_check_branch
        %175 = sbr.rel (%p173) target = $region16
      $region15: #{learned_reg_iteration_forward.3} parent=5 // pred_region
        // Predicated region
        $region17: #{learned_reg_iteration_forward.3} parent=15 // pred_check
          %p176 = pneg %p45
        $region18: #{learned_reg_iteration_forward.3} parent=15 // pred_check_branch
          %178 = sbr.rel (%p176) target = $region20
        $region19: #{learned_reg_iteration_forward.3} parent=15 // pred_region
          %s179 = smul.u32 2, %s21
          %p180 = scmp.lt.s32.totalorder %s179, 3
          %s181 = scalar_select %p180, %s179, 3
          %s182 = smul.addr %s181, 8
          %s183 = scalar_lea.vmem %s0, %s182
          %s184 = smul.u32 2, %s21
        $region20: #{learned_reg_iteration_forward.3} parent=15 // pred_fallthru
          _
        // Predicated region
        $region21: #{learned_reg_iteration_forward.3} parent=15 // pred_check
          %p185 = pneg %p73
        $region22: #{learned_reg_iteration_forward.3} parent=15 // pred_check_branch
          %187 = sbr.rel (%p185) target = $region24
        $region23: #{learned_reg_iteration_forward.3} parent=15 // pred_region
          %s188 = sand.u32 %s63, 1
          %s189 = scalar_lea.sflag [#allocation4], %s188
          %s190 = sand.u32 %s63, 1
          %s191 = smul.addr %s190, 512
          %s192 = scalar_lea.vmem [#allocation3], %s191
          %s193 = smul.u32 32, %s21
          %s194 = smul.u32 4, %s20
          %196 = vsyncadd %s189, 0
          %s197 = smul.addr %s193, 16
          %s198 = sadd.s32 %s194, %s197
          %s199 = smul.addr %s198, 4
          %s200 = scalar_lea.hbm %s1, %s199
          %s201 = sshll.u32 %s200, 4
          %s202 = int_to_ptr.hbm [resolvable:$true] %s201
          %s203 = sshll.u32 %s192, 4
          %s204 = int_to_ptr.vmem [resolvable:$true] %s203
          %209 = dma.hbm_to_vmem [thread:$0]  %s202, 8192, %s204, %s189, 1024, 256, 16
        $region24: #{learned_reg_iteration_forward.3} parent=15 // pred_fallthru
          _
        // Predicated region
        $region25: #{learned_reg_iteration_forward.3} parent=15 // pred_check
          %p210 = pneg %p99
        $region26: #{learned_reg_iteration_forward.3} parent=15 // pred_check_branch
          %212 = sbr.rel (%p210) target = $region28
        $region27: #{learned_reg_iteration_forward.3} parent=15 // pred_region
          %s213 = smul.u32 2, %s20
          %p214 = scmp.lt.s32.totalorder %s213, 7
          %s215 = scalar_select %p214, %s213, 7
          %s216 = smul.addr %s215, 8
          %s217 = scalar_lea.vmem %s2, %s216
          %s218 = smul.u32 2, %s20
        $region28: #{learned_reg_iteration_forward.3} parent=15 // pred_fallthru
          _
        // Predicated region
        $region29: #{learned_reg_iteration_forward.3} parent=15 // pred_check
          %p219 = pneg %p125
        $region30: #{learned_reg_iteration_forward.3} parent=15 // pred_check_branch
          %221 = sbr.rel (%p219) target = $region32
        $region31: #{learned_reg_iteration_forward.3} parent=15 // pred_region
          %s222 = smul.u32 2, %s20
          %p223 = scmp.lt.s32.totalorder %s222, 7
          %s224 = scalar_select %p223, %s222, 7
          %s225 = smul.addr %s224, 2
          %s226 = scalar_lea.vmem %s3, %s225
          %s227 = smul.u32 2, %s20
        $region32: #{learned_reg_iteration_forward.3} parent=15 // pred_fallthru
          _
      $region16: #{learned_reg_iteration_forward.3} parent=5 // pred_fallthru
        _
      %p228 = scmp.le.s32.totalorder 1, %s13
      %p229 = scmp.lt.s32.totalorder %s13, 9
      %p230 = pnand %p228, %p229
      %p231 = pneg %p230
      // Predicated region
      $region33: #{learned_reg_iteration_forward.3} parent=5 // pred_check
        _
      $region34: #{learned_reg_iteration_forward.3} parent=5 // pred_check_branch
        %233 = sbr.rel (%p230) target = $region36
      $region35: #{learned_reg_iteration_forward.3} parent=5 // pred_region
        %s234 = ssub.s32 %s13, 1
        %s235 = sand.u32 %s66, 1
        %s236 = scalar_lea.sflag [#allocation4], %s235
        %s237 = sand.u32 %s66, 1
        %s238 = smul.addr %s237, 512
        %s239 = scalar_lea.vmem [#allocation3], %s238
        // Predicated region
        $region37: #{learned_reg_iteration_forward.3} parent=35 // pred_check
          %p240 = pneg %p79
        $region38: #{learned_reg_iteration_forward.3} parent=35 // pred_check_branch
          %242 = sbr.rel (%p240) target = $region40
        $region39: #{learned_reg_iteration_forward.3} parent=35 // pred_region
          %244 = dma.done %s236, 8192
        $region40: #{learned_reg_iteration_forward.3} parent=35 // pred_fallthru
          _
        %s245 = smul.u32 2, %s23
        %p246 = scmp.lt.s32.totalorder %s245, 3
        %s247 = scalar_select %p246, %s245, 3
        %s248 = smul.addr %s247, 8
        %s249 = scalar_lea.vmem %s0, %s248
        %p250 = pneg %p51
        %p251 = pneg %p48
        %s252 = sand.u32 %s66, 1
        %s253 = scalar_lea.sflag [#allocation4], %s252
        %s254 = sand.u32 %s66, 1
        %s255 = smul.addr %s254, 512
        %s256 = scalar_lea.vmem [#allocation3], %s255
        %p257 = pneg %p79
        %p258 = pneg %p76
        %s259 = smul.u32 2, %s22
        %p260 = scmp.lt.s32.totalorder %s259, 7
        %s261 = scalar_select %p260, %s259, 7
        %s262 = smul.addr %s261, 8
        %s263 = scalar_lea.vmem %s2, %s262
        %p264 = pneg %p105
        %p265 = pneg %p102
        %s266 = smul.u32 2, %s22
        %p267 = scmp.lt.s32.totalorder %s266, 7
        %s268 = scalar_select %p267, %s266, 7
        %s269 = smul.addr %s268, 2
        %s270 = scalar_lea.vmem %s3, %s269
        %p271 = pneg %p131
        %p272 = pneg %p128
        %p273 = pneg %p157
        %p274 = pneg %p154
        %s275 = smul.u32 2, %s22
        %p276 = scmp.lt.s32.totalorder %s275, 7
        %s277 = scalar_select %p276, %s275, 7
        %s278 = smul.addr %s277, 2
        %s279 = scalar_lea.vmem %s4, %s278
        %s280 = smul.u32 2, %s23
        %p281 = scmp.lt.s32.totalorder %s280, 3
        %s282 = scalar_select %p281, %s280, 3
        %s283 = smul.addr %s282, 8
        %s284 = scalar_lea.vmem %s0, %s283
        %s285 = smul.u32 2, %s23
        %s286 = smul.u32 32, %s23
        %s287 = smul.u32 4, %s22
        %s288 = smul.u32 2, %s22
        %p289 = scmp.lt.s32.totalorder %s288, 7
        %s290 = scalar_select %p289, %s288, 7
        %s291 = smul.addr %s290, 8
        %s292 = scalar_lea.vmem %s2, %s291
        %s293 = smul.u32 2, %s22
        %s294 = smul.u32 2, %s22
        %p295 = scmp.lt.s32.totalorder %s294, 7
        %s296 = scalar_select %p295, %s294, 7
        %s297 = smul.addr %s296, 2
        %s298 = scalar_lea.vmem %s3, %s297
        %s299 = smul.u32 2, %s22
        %s300 = smul.u32 2, %s22
        %p301 = scmp.lt.s32.totalorder %s300, 7
        %s302 = scalar_select %p301, %s300, 7
        %s303 = smul.addr %s302, 2
        %s304 = scalar_lea.vmem %s4, %s303
        %s305 = smul.u32 2, %s22
        %p306 = scmp.eq.s32.totalorder %s23, 0
        // Predicated region
        $region41: #{learned_reg_iteration_forward.3} parent=35 // pred_check
          %p307 = pneg %p306
        $region42: #{learned_reg_iteration_forward.3} parent=35 // pred_check_branch
          %309 = sbr.rel (%p307) target = $region44
        $region43: #{learned_reg_iteration_forward.3} parent=35 // pred_region
          %310 = vst [vmem:[#allocation2] sm:$0xff] 0.0
          %311 = vst [vmem:[#allocation2 + $0x8] sm:$0xff] 0.0
        $region44: #{learned_reg_iteration_forward.3} parent=35 // pred_fallthru
          _
        %v312 = vld [vmem:[%s284] sm:$0xff]
        %v313 = vld [vmem:[%s284 + $0x8] sm:$0xff]
        %v314 = vld [vmem:[%s239] sm:$0xff]
        %v315 = vld [vmem:[%s239 + $0x8] sm:$0xff]
        %v316 = vld [vmem:[%s239 + $0x10] sm:$0xff]
        %v317 = vld [vmem:[%s239 + $0x18] sm:$0xff]
        %v318 = vld [vmem:[%s239 + $0x20] sm:$0xff]
        %v319 = vld [vmem:[%s239 + $0x28] sm:$0xff]
        %v320 = vld [vmem:[%s239 + $0x30] sm:$0xff]
        %v321 = vld [vmem:[%s239 + $0x38] sm:$0xff]
        %v322 = vld [vmem:[%s239 + $0x40] sm:$0xff]
        %v323 = vld [vmem:[%s239 + $0x48] sm:$0xff]
        %v324 = vld [vmem:[%s239 + $0x50] sm:$0xff]
        %v325 = vld [vmem:[%s239 + $0x58] sm:$0xff]
        %v326 = vld [vmem:[%s239 + $0x60] sm:$0xff]
        %v327 = vld [vmem:[%s239 + $0x68] sm:$0xff]
        %v328 = vld [vmem:[%s239 + $0x70] sm:$0xff]
        %v329 = vld [vmem:[%s239 + $0x78] sm:$0xff]
        %v330 = vld [vmem:[%s239 + $0x80] sm:$0xff]
        %v331 = vld [vmem:[%s239 + $0x88] sm:$0xff]
        %v332 = vld [vmem:[%s239 + $0x90] sm:$0xff]
        %v333 = vld [vmem:[%s239 + $0x98] sm:$0xff]
        %v334 = vld [vmem:[%s239 + $0xa0] sm:$0xff]
        %v335 = vld [vmem:[%s239 + $0xa8] sm:$0xff]
        %v336 = vld [vmem:[%s239 + $0xb0] sm:$0xff]
        %v337 = vld [vmem:[%s239 + $0xb8] sm:$0xff]
        %v338 = vld [vmem:[%s239 + $0xc0] sm:$0xff]
        %v339 = vld [vmem:[%s239 + $0xc8] sm:$0xff]
        %v340 = vld [vmem:[%s239 + $0xd0] sm:$0xff]
        %v341 = vld [vmem:[%s239 + $0xd8] sm:$0xff]
        %v342 = vld [vmem:[%s239 + $0xe0] sm:$0xff]
        %v343 = vld [vmem:[%s239 + $0xe8] sm:$0xff]
        %v344 = vld [vmem:[%s239 + $0xf0] sm:$0xff]
        %v345 = vld [vmem:[%s239 + $0xf8] sm:$0xff]
        %v346 = vld [vmem:[%s239 + $0x100] sm:$0xff]
        %v347 = vld [vmem:[%s239 + $0x108] sm:$0xff]
        %v348 = vld [vmem:[%s239 + $0x110] sm:$0xff]
        %v349 = vld [vmem:[%s239 + $0x118] sm:$0xff]
        %v350 = vld [vmem:[%s239 + $0x120] sm:$0xff]
        %v351 = vld [vmem:[%s239 + $0x128] sm:$0xff]
        %v352 = vld [vmem:[%s239 + $0x130] sm:$0xff]
        %v353 = vld [vmem:[%s239 + $0x138] sm:$0xff]
        %v354 = vld [vmem:[%s239 + $0x140] sm:$0xff]
        %v355 = vld [vmem:[%s239 + $0x148] sm:$0xff]
        %v356 = vld [vmem:[%s239 + $0x150] sm:$0xff]
        %v357 = vld [vmem:[%s239 + $0x158] sm:$0xff]
        %v358 = vld [vmem:[%s239 + $0x160] sm:$0xff]
        %v359 = vld [vmem:[%s239 + $0x168] sm:$0xff]
        %v360 = vld [vmem:[%s239 + $0x170] sm:$0xff]
        %v361 = vld [vmem:[%s239 + $0x178] sm:$0xff]
        %v362 = vld [vmem:[%s239 + $0x180] sm:$0xff]
        %v363 = vld [vmem:[%s239 + $0x188] sm:$0xff]
        %v364 = vld [vmem:[%s239 + $0x190] sm:$0xff]
        %v365 = vld [vmem:[%s239 + $0x198] sm:$0xff]
        %v366 = vld [vmem:[%s239 + $0x1a0] sm:$0xff]
        %v367 = vld [vmem:[%s239 + $0x1a8] sm:$0xff]
        %v368 = vld [vmem:[%s239 + $0x1b0] sm:$0xff]
        %v369 = vld [vmem:[%s239 + $0x1b8] sm:$0xff]
        %v370 = vld [vmem:[%s239 + $0x1c0] sm:$0xff]
        %v371 = vld [vmem:[%s239 + $0x1c8] sm:$0xff]
        %v372 = vld [vmem:[%s239 + $0x1d0] sm:$0xff]
        %v373 = vld [vmem:[%s239 + $0x1d8] sm:$0xff]
        %v374 = vld [vmem:[%s239 + $0x1e0] sm:$0xff]
        %v375 = vld [vmem:[%s239 + $0x1e8] sm:$0xff]
        %v376 = vld [vmem:[%s239 + $0x1f0] sm:$0xff]
        %v377 = vld [vmem:[%s239 + $0x1f8] sm:$0xff]
        %v442 = vunpack.c.l.b16 %v314
        %v443 = vunpack.c.h.b16 %v314
        %v444 = vunpack.c.l.b16 %v315
        %v445 = vunpack.c.h.b16 %v315
        %v446 = vunpack.c.l.b16 %v316
        %v447 = vunpack.c.h.b16 %v316
        %v448 = vunpack.c.l.b16 %v317
        %v449 = vunpack.c.h.b16 %v317
        %v450 = vunpack.c.l.b16 %v318
        %v451 = vunpack.c.h.b16 %v318
        %v452 = vunpack.c.l.b16 %v319
        %v453 = vunpack.c.h.b16 %v319
        %v454 = vunpack.c.l.b16 %v320
        %v455 = vunpack.c.h.b16 %v320
        %v456 = vunpack.c.l.b16 %v321
        %v457 = vunpack.c.h.b16 %v321
        %v458 = vunpack.c.l.b16 %v322
        %v459 = vunpack.c.h.b16 %v322
        %v460 = vunpack.c.l.b16 %v323
        %v461 = vunpack.c.h.b16 %v323
        %v462 = vunpack.c.l.b16 %v324
        %v463 = vunpack.c.h.b16 %v324
        %v464 = vunpack.c.l.b16 %v325
        %v465 = vunpack.c.h.b16 %v325
        %v466 = vunpack.c.l.b16 %v326
        %v467 = vunpack.c.h.b16 %v326
        %v468 = vunpack.c.l.b16 %v327
        %v469 = vunpack.c.h.b16 %v327
        %v470 = vunpack.c.l.b16 %v328
        %v471 = vunpack.c.h.b16 %v328
        %v472 = vunpack.c.l.b16 %v329
        %v473 = vunpack.c.h.b16 %v329
        %v474 = vunpack.c.l.b16 %v330
        %v475 = vunpack.c.h.b16 %v330
        %v476 = vunpack.c.l.b16 %v331
        %v477 = vunpack.c.h.b16 %v331
        %v478 = vunpack.c.l.b16 %v332
        %v479 = vunpack.c.h.b16 %v332
        %v480 = vunpack.c.l.b16 %v333
        %v481 = vunpack.c.h.b16 %v333
        %v482 = vunpack.c.l.b16 %v334
        %v483 = vunpack.c.h.b16 %v334
        %v484 = vunpack.c.l.b16 %v335
        %v485 = vunpack.c.h.b16 %v335
        %v486 = vunpack.c.l.b16 %v336
        %v487 = vunpack.c.h.b16 %v336
        %v488 = vunpack.c.l.b16 %v337
        %v489 = vunpack.c.h.b16 %v337
        %v490 = vunpack.c.l.b16 %v338
        %v491 = vunpack.c.h.b16 %v338
        %v492 = vunpack.c.l.b16 %v339
        %v493 = vunpack.c.h.b16 %v339
        %v494 = vunpack.c.l.b16 %v340
        %v495 = vunpack.c.h.b16 %v340
        %v496 = vunpack.c.l.b16 %v341
        %v497 = vunpack.c.h.b16 %v341
        %v498 = vunpack.c.l.b16 %v342
        %v499 = vunpack.c.h.b16 %v342
        %v500 = vunpack.c.l.b16 %v343
        %v501 = vunpack.c.h.b16 %v343
        %v502 = vunpack.c.l.b16 %v344
        %v503 = vunpack.c.h.b16 %v344
        %v504 = vunpack.c.l.b16 %v345
        %v505 = vunpack.c.h.b16 %v345
        %v506 = vunpack.c.l.b16 %v346
        %v507 = vunpack.c.h.b16 %v346
        %v508 = vunpack.c.l.b16 %v347
        %v509 = vunpack.c.h.b16 %v347
        %v510 = vunpack.c.l.b16 %v348
        %v511 = vunpack.c.h.b16 %v348
        %v512 = vunpack.c.l.b16 %v349
        %v513 = vunpack.c.h.b16 %v349
        %v514 = vunpack.c.l.b16 %v350
        %v515 = vunpack.c.h.b16 %v350
        %v516 = vunpack.c.l.b16 %v351
        %v517 = vunpack.c.h.b16 %v351
        %v518 = vunpack.c.l.b16 %v352
        %v519 = vunpack.c.h.b16 %v352
        %v520 = vunpack.c.l.b16 %v353
        %v521 = vunpack.c.h.b16 %v353
        %v522 = vunpack.c.l.b16 %v354
        %v523 = vunpack.c.h.b16 %v354
        %v524 = vunpack.c.l.b16 %v355
        %v525 = vunpack.c.h.b16 %v355
        %v526 = vunpack.c.l.b16 %v356
        %v527 = vunpack.c.h.b16 %v356
        %v528 = vunpack.c.l.b16 %v357
        %v529 = vunpack.c.h.b16 %v357
        %v530 = vunpack.c.l.b16 %v358
        %v531 = vunpack.c.h.b16 %v358
        %v532 = vunpack.c.l.b16 %v359
        %v533 = vunpack.c.h.b16 %v359
        %v534 = vunpack.c.l.b16 %v360
        %v535 = vunpack.c.h.b16 %v360
        %v536 = vunpack.c.l.b16 %v361
        %v537 = vunpack.c.h.b16 %v361
        %v538 = vunpack.c.l.b16 %v362
        %v539 = vunpack.c.h.b16 %v362
        %v540 = vunpack.c.l.b16 %v363
        %v541 = vunpack.c.h.b16 %v363
        %v542 = vunpack.c.l.b16 %v364
        %v543 = vunpack.c.h.b16 %v364
        %v544 = vunpack.c.l.b16 %v365
        %v545 = vunpack.c.h.b16 %v365
        %v546 = vunpack.c.l.b16 %v366
        %v547 = vunpack.c.h.b16 %v366
        %v548 = vunpack.c.l.b16 %v367
        %v549 = vunpack.c.h.b16 %v367
        %v550 = vunpack.c.l.b16 %v368
        %v551 = vunpack.c.h.b16 %v368
        %v552 = vunpack.c.l.b16 %v369
        %v553 = vunpack.c.h.b16 %v369
        %v554 = vunpack.c.l.b16 %v370
        %v555 = vunpack.c.h.b16 %v370
        %v556 = vunpack.c.l.b16 %v371
        %v557 = vunpack.c.h.b16 %v371
        %v558 = vunpack.c.l.b16 %v372
        %v559 = vunpack.c.h.b16 %v372
        %v560 = vunpack.c.l.b16 %v373
        %v561 = vunpack.c.h.b16 %v373
        %v562 = vunpack.c.l.b16 %v374
        %v563 = vunpack.c.h.b16 %v374
        %v564 = vunpack.c.l.b16 %v375
        %v565 = vunpack.c.h.b16 %v375
        %v566 = vunpack.c.l.b16 %v376
        %v567 = vunpack.c.h.b16 %v376
        %v568 = vunpack.c.l.b16 %v377
        %v569 = vunpack.c.h.b16 %v377
        %v570 = vpack.c.b16 %v446, %v442
        %v571 = vpack.c.b16 %v447, %v443
        %v572 = vpack.c.b16 %v448, %v444
        %v573 = vpack.c.b16 %v449, %v445
        %v574 = vpack.c.b16 %v454, %v450
        %v575 = vpack.c.b16 %v455, %v451
        %v576 = vpack.c.b16 %v456, %v452
        %v577 = vpack.c.b16 %v457, %v453
        %v578 = vpack.c.b16 %v462, %v458
        %v579 = vpack.c.b16 %v463, %v459
        %v580 = vpack.c.b16 %v464, %v460
        %v581 = vpack.c.b16 %v465, %v461
        %v582 = vpack.c.b16 %v470, %v466
        %v583 = vpack.c.b16 %v471, %v467
        %v584 = vpack.c.b16 %v472, %v468
        %v585 = vpack.c.b16 %v473, %v469
        %v586 = vpack.c.b16 %v478, %v474
        %v587 = vpack.c.b16 %v479, %v475
        %v588 = vpack.c.b16 %v480, %v476
        %v589 = vpack.c.b16 %v481, %v477
        %v590 = vpack.c.b16 %v486, %v482
        %v591 = vpack.c.b16 %v487, %v483
        %v592 = vpack.c.b16 %v488, %v484
        %v593 = vpack.c.b16 %v489, %v485
        %v594 = vpack.c.b16 %v494, %v490
        %v595 = vpack.c.b16 %v495, %v491
        %v596 = vpack.c.b16 %v496, %v492
        %v597 = vpack.c.b16 %v497, %v493
        %v598 = vpack.c.b16 %v502, %v498
        %v599 = vpack.c.b16 %v503, %v499
        %v600 = vpack.c.b16 %v504, %v500
        %v601 = vpack.c.b16 %v505, %v501
        %v602 = vpack.c.b16 %v510, %v506
        %v603 = vpack.c.b16 %v511, %v507
        %v604 = vpack.c.b16 %v512, %v508
        %v605 = vpack.c.b16 %v513, %v509
        %v606 = vpack.c.b16 %v518, %v514
        %v607 = vpack.c.b16 %v519, %v515
        %v608 = vpack.c.b16 %v520, %v516
        %v609 = vpack.c.b16 %v521, %v517
        %v610 = vpack.c.b16 %v526, %v522
        %v611 = vpack.c.b16 %v527, %v523
        %v612 = vpack.c.b16 %v528, %v524
        %v613 = vpack.c.b16 %v529, %v525
        %v614 = vpack.c.b16 %v534, %v530
        %v615 = vpack.c.b16 %v535, %v531
        %v616 = vpack.c.b16 %v536, %v532
        %v617 = vpack.c.b16 %v537, %v533
        %v618 = vpack.c.b16 %v542, %v538
        %v619 = vpack.c.b16 %v543, %v539
        %v620 = vpack.c.b16 %v544, %v540
        %v621 = vpack.c.b16 %v545, %v541
        %v622 = vpack.c.b16 %v550, %v546
        %v623 = vpack.c.b16 %v551, %v547
        %v624 = vpack.c.b16 %v552, %v548
        %v625 = vpack.c.b16 %v553, %v549
        %v626 = vpack.c.b16 %v558, %v554
        %v627 = vpack.c.b16 %v559, %v555
        %v628 = vpack.c.b16 %v560, %v556
        %v629 = vpack.c.b16 %v561, %v557
        %v630 = vpack.c.b16 %v566, %v562
        %v631 = vpack.c.b16 %v567, %v563
        %v632 = vpack.c.b16 %v568, %v564
        %v633 = vpack.c.b16 %v569, %v565
        %698 = vmatpush.bf16.msra.mxu0 %v598
        %699 = vmatpush.bf16.msra.mxu0 %v594
        %700 = vmatpush.bf16.msra.mxu0 %v590
        %701 = vmatpush.bf16.msra.mxu0 %v586
        %702 = vmatpush.bf16.msra.mxu0 %v582
        %703 = vmatpush.bf16.msra.mxu0 %v578
        %704 = vmatpush.bf16.msra.mxu0 %v574
        %705 = vmatpush.bf16.msra.mxu0 %v570
        %706 = vmatmul.f32.gmra.mxu0 %v312
        %v707 = vpop.f32.mrf.mxu0
        %v708 = vadd.f32 0.0, %v707
        %709 = vdwg.mxu0
        %710 = vmatpush.bf16.msra.mxu0 %v630
        %711 = vmatpush.bf16.msra.mxu0 %v626
        %712 = vmatpush.bf16.msra.mxu0 %v622
        %713 = vmatpush.bf16.msra.mxu0 %v618
        %714 = vmatpush.bf16.msra.mxu0 %v614
        %715 = vmatpush.bf16.msra.mxu0 %v610
        %716 = vmatpush.bf16.msra.mxu0 %v606
        %717 = vmatpush.bf16.msra.mxu0 %v602
        %718 = vmatmul.f32.gmra.mxu0 %v313
        %v719 = vpop.f32.mrf.mxu0
        %v720 = vadd.f32 %v708, %v719
        %721 = vdwg.mxu0
        %722 = vmatpush.bf16.msra.mxu0 %v599
        %723 = vmatpush.bf16.msra.mxu0 %v595
        %724 = vmatpush.bf16.msra.mxu0 %v591
        %725 = vmatpush.bf16.msra.mxu0 %v587
        %726 = vmatpush.bf16.msra.mxu0 %v583
        %727 = vmatpush.bf16.msra.mxu0 %v579
        %728 = vmatpush.bf16.msra.mxu0 %v575
        %729 = vmatpush.bf16.msra.mxu0 %v571
        %730 = vmatmul.f32.gmra.mxu0 %v312
        %v731 = vpop.f32.mrf.mxu0
        %v732 = vadd.f32 0.0, %v731
        %733 = vdwg.mxu0
        %734 = vmatpush.bf16.msra.mxu0 %v631
        %735 = vmatpush.bf16.msra.mxu0 %v627
        %736 = vmatpush.bf16.msra.mxu0 %v623
        %737 = vmatpush.bf16.msra.mxu0 %v619
        %738 = vmatpush.bf16.msra.mxu0 %v615
        %739 = vmatpush.bf16.msra.mxu0 %v611
        %740 = vmatpush.bf16.msra.mxu0 %v607
        %741 = vmatpush.bf16.msra.mxu0 %v603
        %742 = vmatmul.f32.gmra.mxu0 %v313
        %v743 = vpop.f32.mrf.mxu0
        %v744 = vadd.f32 %v732, %v743
        %745 = vdwg.mxu0
        %746 = vmatpush.bf16.msra.mxu0 %v600
        %747 = vmatpush.bf16.msra.mxu0 %v596
        %748 = vmatpush.bf16.msra.mxu0 %v592
        %749 = vmatpush.bf16.msra.mxu0 %v588
        %750 = vmatpush.bf16.msra.mxu0 %v584
        %751 = vmatpush.bf16.msra.mxu0 %v580
        %752 = vmatpush.bf16.msra.mxu0 %v576
        %753 = vmatpush.bf16.msra.mxu0 %v572
        %754 = vmatmul.f32.gmra.mxu0 %v312
        %v755 = vpop.f32.mrf.mxu0
        %v756 = vadd.f32 0.0, %v755
        %757 = vdwg.mxu0
        %758 = vmatpush.bf16.msra.mxu0 %v632
        %759 = vmatpush.bf16.msra.mxu0 %v628
        %760 = vmatpush.bf16.msra.mxu0 %v624
        %761 = vmatpush.bf16.msra.mxu0 %v620
        %762 = vmatpush.bf16.msra.mxu0 %v616
        %763 = vmatpush.bf16.msra.mxu0 %v612
        %764 = vmatpush.bf16.msra.mxu0 %v608
        %765 = vmatpush.bf16.msra.mxu0 %v604
        %766 = vmatmul.f32.gmra.mxu0 %v313
        %v767 = vpop.f32.mrf.mxu0
        %v768 = vadd.f32 %v756, %v767
        %769 = vdwg.mxu0
        %770 = vmatpush.bf16.msra.mxu0 %v601
        %771 = vmatpush.bf16.msra.mxu0 %v597
        %772 = vmatpush.bf16.msra.mxu0 %v593
        %773 = vmatpush.bf16.msra.mxu0 %v589
        %774 = vmatpush.bf16.msra.mxu0 %v585
        %775 = vmatpush.bf16.msra.mxu0 %v581
        %776 = vmatpush.bf16.msra.mxu0 %v577
        %777 = vmatpush.bf16.msra.mxu0 %v573
        %778 = vmatmul.f32.gmra.mxu0 %v312
        %v779 = vpop.f32.mrf.mxu0
        %v780 = vadd.f32 0.0, %v779
        %781 = vdwg.mxu0
        %782 = vmatpush.bf16.msra.mxu0 %v633
        %783 = vmatpush.bf16.msra.mxu0 %v629
        %784 = vmatpush.bf16.msra.mxu0 %v625
        %785 = vmatpush.bf16.msra.mxu0 %v621
        %786 = vmatpush.bf16.msra.mxu0 %v617
        %787 = vmatpush.bf16.msra.mxu0 %v613
        %788 = vmatpush.bf16.msra.mxu0 %v609
        %789 = vmatpush.bf16.msra.mxu0 %v605
        %790 = vmatmul.f32.gmra.mxu0 %v313
        %v791 = vpop.f32.mrf.mxu0
        %v792 = vadd.f32 %v780, %v791
        %793 = vdwg.mxu0
        %v794 = vld [vmem:[#allocation2] sm:$0xf]
        %v795 = vld [vmem:[#allocation2 + $0x8] sm:$0xf]
        %v798 = vrot.slane %v768, 4
        %v799 = vrot.slane %v792, 4
        %v802 = vsub.f32 %v720, %v798
        %v803 = vsub.f32 %v744, %v799
        %v804 = vadd.f32 %v794, %v802
        %v805 = vadd.f32 %v795, %v803
        %806 = vst [vmem:[#allocation2] sm:$0xf] %v804
        %807 = vst [vmem:[#allocation2 + $0x8] sm:$0xf] %v805
        %v808 = vld [vmem:[#allocation2] sm:$0xf0]
        %v809 = vld [vmem:[#allocation2 + $0x8] sm:$0xf0]
        %v812 = vrot.slane %v720, 4
        %v813 = vrot.slane %v744, 4
        %v816 = vadd.f32 %v768, %v812
        %v817 = vadd.f32 %v792, %v813
        %v820 = vrot.slane %v816, 4
        %v821 = vrot.slane %v817, 4
        %v824 = vadd.f32 %v808, %v820
        %v825 = vadd.f32 %v809, %v821
        %826 = vst [vmem:[#allocation2] sm:$0xf0] %v824
        %827 = vst [vmem:[#allocation2 + $0x8] sm:$0xf0] %v825
        %p828 = scmp.eq.s32.totalorder %s23, 1
        // Predicated region
        $region45: #{learned_reg_iteration_forward.3} parent=35 // pred_check
          %p829 = pneg %p828
        $region46: #{learned_reg_iteration_forward.3} parent=35 // pred_check_branch
          %831 = sbr.rel (%p829) target = $region48
        $region47: #{learned_reg_iteration_forward.3} parent=35 // pred_region
          %v832 = vld [vmem:[#allocation2] sm:$0xf]
          %v833 = vld [vmem:[#allocation2 + $0x8] sm:$0xf]
          %v834 = vld [vmem:[#allocation2] sm:$0xf0]
          %v835 = vld [vmem:[#allocation2 + $0x8] sm:$0xf0]
          %v836 = vld [vmem:[%s292] sm:$0xf]
          %v837 = vld [vmem:[%s292 + $0x8] sm:$0xf]
          %v838 = vld [vmem:[%s292] sm:$0xf0]
          %v839 = vld [vmem:[%s292 + $0x8] sm:$0xf0]
          %v840 = vmul.f32 %v832, %v836
          %v841 = vmul.f32 %v833, %v837
          %v842 = vmul.f32 %v834, %v838
          %v843 = vmul.f32 %v835, %v839
          %v846 = vrot.slane %v842, 4
          %v847 = vrot.slane %v843, 4
          %v850 = vadd.f32 %v840, %v846
          %v851 = vadd.f32 %v841, %v847
          %vm852 = vcmask 1043456
          %v853 = vsel %vm852, %v850, 0.0
          %v854 = vrot.slane %v853, 4
          %v855 = vadd.f32 %v853, %v854
          %v856 = vrot.slane %v855, 2
          %v857 = vadd.f32 %v855, %v856
          %v858 = vrot.slane %v857, 1
          %v859 = vadd.f32 %v857, %v858
          %v860 = vsel %vm852, %v851, 0.0
          %v861 = vrot.slane %v860, 4
          %v862 = vadd.f32 %v860, %v861
          %v863 = vrot.slane %v862, 2
          %v864 = vadd.f32 %v862, %v863
          %v865 = vrot.slane %v864, 1
          %v866 = vadd.f32 %v864, %v865
          %v869 = vrot.slane %v836, 4
          %v870 = vrot.slane %v837, 4
          %v873 = vmul.f32 %v834, %v869
          %v874 = vmul.f32 %v835, %v870
          %v877 = vrot.slane %v838, 4
          %v878 = vrot.slane %v839, 4
          %v881 = vmul.f32 %v832, %v877
          %v882 = vmul.f32 %v833, %v878
          %v885 = vrot.slane %v881, 4
          %v886 = vrot.slane %v882, 4
          %v889 = vsub.f32 %v873, %v885
          %v890 = vsub.f32 %v874, %v886
          %v893 = vrot.slane %v889, 4
          %v894 = vrot.slane %v890, 4
          %v897 = vsel %vm852, %v893, 0.0
          %v898 = vrot.slane %v897, 4
          %v899 = vadd.f32 %v897, %v898
          %v900 = vrot.slane %v899, 2
          %v901 = vadd.f32 %v899, %v900
          %v902 = vrot.slane %v901, 1
          %v903 = vadd.f32 %v901, %v902
          %v904 = vsel %vm852, %v894, 0.0
          %v905 = vrot.slane %v904, 4
          %v906 = vadd.f32 %v904, %v905
          %v907 = vrot.slane %v906, 2
          %v908 = vadd.f32 %v906, %v907
          %v909 = vrot.slane %v908, 1
          %v910 = vadd.f32 %v908, %v909
          %v911 = vld [vmem:[%s298] ss:$2 sm:$0x3]
          %v914 = vrot.slane %v866, 7
          %vm915 = vcmask 1040384
          %v916 = vsel %vm915, %v859, %v914
          %v918 = vsub.f32 %v911, %v916
          %v919 = vlaneseq
          %vm920 = vcmp.ge.s32.totalorder %v919, 0
          %vm921 = vcmp.lt.s32.totalorder %v919, 256
          %vm922 = vmand %vm920, %vm921
          %923 = vst.msk [vmem:[%s304] ss:$2 sm:$0x3] %vm922, %v918
          %s924 = scalar_lea.vmem %s298, 1
          %v925 = vld [vmem:[%s924] ss:$2 sm:$0x3]
          %v928 = vrot.slane %v910, 7
          %v929 = vsel %vm915, %v903, %v928
          %v931 = vsub.f32 %v925, %v929
          %s932 = scalar_lea.vmem %s304, 1
          %933 = vst.msk [vmem:[%s932] ss:$2 sm:$0x3] %vm922, %v931
        $region48: #{learned_reg_iteration_forward.3} parent=35 // pred_fallthru
          _
        %s934 = smul.u32 2, %s22
        %p935 = scmp.lt.s32.totalorder %s934, 7
        %s936 = scalar_select %p935, %s934, 7
        %s937 = smul.addr %s936, 2
        %s938 = scalar_lea.vmem %s4, %s937
        // Predicated region
        $region49: #{learned_reg_iteration_forward.3} parent=35 // pred_check
          %p939 = pneg %p154
        $region50: #{learned_reg_iteration_forward.3} parent=35 // pred_check_branch
          %941 = sbr.rel (%p939) target = $region52
        $region51: #{learned_reg_iteration_forward.3} parent=35 // pred_region
          %s942 = smul.u32 2, %s22
        $region52: #{learned_reg_iteration_forward.3} parent=35 // pred_fallthru
          _
      $region36: #{learned_reg_iteration_forward.3} parent=5 // pred_fallthru
        _
      %p943 = scmp.le.s32.totalorder 2, %s13
      // Predicated region
      $region53: #{learned_reg_iteration_forward.3} parent=5 // pred_check
        %p944 = pneg %p943
      $region54: #{learned_reg_iteration_forward.3} parent=5 // pred_check_branch
        %946 = sbr.rel (%p944) target = $region56
      $region55: #{learned_reg_iteration_forward.3} parent=5 // pred_region
        %s947 = ssub.s32 %s13, 2
        // Predicated region
        $region57: #{learned_reg_iteration_forward.3} parent=55 // pred_check
          %p948 = pneg %p160
        $region58: #{learned_reg_iteration_forward.3} parent=55 // pred_check_branch
          %950 = sbr.rel (%p948) target = $region60
        $region59: #{learned_reg_iteration_forward.3} parent=55 // pred_region
          %s951 = smul.u32 2, %s24
          %p952 = scmp.lt.s32.totalorder %s951, 7
          %s953 = scalar_select %p952, %s951, 7
          %s954 = smul.addr %s953, 2
          %s955 = scalar_lea.vmem %s4, %s954
        $region60: #{learned_reg_iteration_forward.3} parent=55 // pred_fallthru
          _
      $region56: #{learned_reg_iteration_forward.3} parent=5 // pred_fallthru
        _
    $region6: #{learned_reg_iteration_forward.3} parent=1 // loop_footer
      %s17 = sadd.s32 1, %s13
    $region7: #{learned_reg_iteration_forward.3} parent=1 // loop_footer_branch
      %12 = sbr.rel target = $region3
    $region8: #{learned_reg_iteration_forward.3} parent=1 // loop_exit
      _
    %956 = vsyncpa [#allocation4], 1
    %s957 = scalar_lea.sflag [#allocation4], 1
    %958 = vsyncpa %s957, 1

</llo_original>
